<compile_context>
chip_gen: v7x
topology: tpu7x:2x2x1
jax: 0.10.0
libtpu: 0.0.40
codegen_flags: <defaults>
</compile_context>

<pallas_src>
import jax
import jax.numpy as jnp
import numpy as np
from jax.experimental import pallas as pl
from jax.experimental.pallas import tpu as pltpu

EPS = 1e-5
LANES = 128


def _round_up(x, m):
    return -(-x // m) * m


def _pick_tile(m):
    # Largest divisor tile that still leaves >= 2 grid steps (so v7x's two TensorCores
    # both get sharded work); large tiles amortize the ~0.35 us/step pipeline overhead.
    for t in (1024, 512, 256, 128, 64, 32, 16, 8):
        if m % t == 0 and m // t >= 2:
            return t
    return m


def _vmem_limit(io_bytes_per_step):
    # Double-buffered I/O + headroom for in-kernel f32 temporaries; never above the
    # 32 MiB default (v7x physical VMEM is only 64 MiB per TensorCore).
    return int(min(32 << 20, max(8 << 20, 6 * io_bytes_per_step)))


# --------------------------------------------------------------------------- kernels
def _matmul_stats_kernel(t_ref, w_ref, s_ref):
    # Pass 1: fused MXU dot (bf16 in, f32 acc); only per-tile (sum, sumsq) partials are
    # written back. The conv activations are recomputed in pass 2, so no channel-padded
    # f32 intermediate ever round-trips through HBM.
    y = jnp.dot(t_ref[...], w_ref[...], preferred_element_type=jnp.float32)
    s_ref[0, 0:1, :] = jnp.sum(y, axis=0, keepdims=True)
    s_ref[0, 1:2, :] = jnp.sum(y * y, axis=0, keepdims=True)


# --------------------------------------------------------------------------- wrappers
def conv_bn_stats(taps, w):
    m, kp = taps.shape
    cols = w.shape[1]
    tm = _pick_tile(m)
    tiles = m // tm
    io_bytes = tm * kp * 2 + kp * cols * 2 + 2 * cols * 4
    cost = pl.CostEstimate(
        flops=2 * m * kp * cols + 3 * m * cols, transcendentals=0,
        bytes_accessed=taps.size * 2 + w.size * 2 + tiles * 2 * cols * 4)
    return pl.pallas_call(
        _matmul_stats_kernel,
        out_shape=jax.ShapeDtypeStruct((tiles, 2, cols), jnp.float32),
        grid=(tiles,),
        in_specs=[pl.BlockSpec((tm, kp), lambda i: (i, 0)),
                  pl.BlockSpec((kp, cols), lambda i: (0, 0))],
        out_specs=pl.BlockSpec((1, 2, cols), lambda i: (i, 0, 0)),
        compiler_params=pltpu.CompilerParams(
            dimension_semantics=("parallel",),
            vmem_limit_bytes=_vmem_limit(io_bytes)),
        cost_estimate=cost,
    )(taps, w)


def conv_bn_apply(taps, w, stats, gamma, beta, *, fold_residual, out_cols, out_dtype):
    m, kp = taps.shape
    cols = w.shape[1]
    tiles_s = stats.shape[0]
    tm = _pick_tile(m)
    tiles = m // tm
    inv_m = 1.0 / float(m)

    def kernel(t_ref, w_ref, st_ref, g_ref, b_ref, o_ref):
        # Pass 2: recompute the fused dot (MXU is <10% utilized at these channel counts,
        # HBM traffic is the binder), reduce the tiny per-tile stats to global batch
        # scale/shift in-kernel, then BN affine (+ block-diagonal residual add for the
        # conv2 call) + ReLU with a lane-dense (128-wide) store.
        y = jnp.dot(t_ref[...], w_ref[...], preferred_element_type=jnp.float32)
        s = jnp.sum(st_ref[...], axis=0)                      # (2, cols) global sums
        mean = s[0:1, :] * inv_m
        var = jnp.maximum(s[1:2, :] * inv_m - mean * mean, 0.0)
        scale = g_ref[...] * jax.lax.rsqrt(var + EPS)         # 0 in padding lanes
        shift = b_ref[...] - mean * scale
        t = y * scale + shift
        if fold_residual:
            t = t[:, :out_cols] + t[:, out_cols:]             # conv2 branch + downsample
        o_ref[...] = jnp.maximum(t, 0.0).astype(o_ref.dtype)

    out_size = jnp.dtype(out_dtype).itemsize
    io_bytes = (tm * kp * 2 + kp * cols * 2 + tiles_s * 2 * cols * 4
                + 2 * cols * 4 + tm * out_cols * out_size)
    cost = pl.CostEstimate(
        flops=2 * m * kp * cols + 8 * m * cols, transcendentals=tiles * cols,
        bytes_accessed=taps.size * 2 + w.size * 2 + stats.size * 4
        + 2 * cols * 4 + m * out_cols * out_size)
    return pl.pallas_call(
        kernel,
        out_shape=jax.ShapeDtypeStruct((m, out_cols), out_dtype),
        grid=(tiles,),
        in_specs=[pl.BlockSpec((tm, kp), lambda i: (i, 0)),
                  pl.BlockSpec((kp, cols), lambda i: (0, 0)),
                  pl.BlockSpec((tiles_s, 2, cols), lambda i: (0, 0, 0)),
                  pl.BlockSpec((1, cols), lambda i: (0, 0)),
                  pl.BlockSpec((1, cols), lambda i: (0, 0))],
        out_specs=pl.BlockSpec((tm, out_cols), lambda i: (i, 0)),
        compiler_params=pltpu.CompilerParams(
            dimension_semantics=("parallel",),
            vmem_limit_bytes=_vmem_limit(io_bytes)),
        cost_estimate=cost,
    )(taps, w, stats, gamma, beta)


# --------------------------------------------------------------------------- glue
def _im2col_taps(x, ksize, dil, extra_cols=(), pad_to=None):
    # x: (N, D, H, W, C) bf16 -> (N*Do*Ho*Wo, pad_to) bf16 built in ONE concatenate:
    # taps ordered (kd, kh, kw, cin) to match the flattened weight rows, then optional
    # residual columns, then zero lane-padding (no separate pad/astype copies).
    # TODO(synk): still materialized by XLA in HBM; a true in-kernel halo gather needs
    # a manual-DMA (N, D-block) grid and is intentionally left out here.
    n, d, h, w, c = x.shape
    span = (ksize - 1) * dil
    do, ho, wo = d - span, h - span, w - span
    m = n * do * ho * wo
    cols = []
    for kd in range(ksize):
        for kh in range(ksize):
            for kw in range(ksize):
                p = x[:, kd * dil:kd * dil + do,
                        kh * dil:kh * dil + ho,
                        kw * dil:kw * dil + wo, :]
                cols.append(p.reshape(m, c))
    cols.extend(extra_cols)
    width = sum(a.shape[1] for a in cols)
    if pad_to is not None and pad_to > width:
        cols.append(jnp.zeros((m, pad_to - width), x.dtype))
    return jnp.concatenate(cols, axis=1), (do, ho, wo)


def basic_block_forward(x_ncdhw, p):
    # x_ncdhw: (N, C0, D, H, W) as in PyTorch; returns (N, C2, D-8, H-8, W-8).
    # Conv biases b1/b2/bds are intentionally NOT used: under training-mode BatchNorm a
    # per-channel bias is exactly cancelled by the mean subtraction (zero-accuracy-change).
    x = jnp.transpose(x_ncdhw, (0, 2, 3, 4, 1))              # NDHWC
    x_bf = x.astype(jnp.bfloat16)                            # cast BEFORE im2col
    n = x.shape[0]
    c0 = x.shape[-1]
    k = p['w1'].shape[-1]
    c1 = p['w1'].shape[0]
    c2 = p['w2'].shape[0]
    dil = 2
    k1 = k ** 3 * c0                                         # 108
    k2 = k ** 3 * c1                                         # 216
    kp1 = _round_up(k1, LANES)                               # taps           -> 128
    kp2 = _round_up(k2 + c0, LANES)                          # taps + residual -> 256

    # ---- conv1 + bn1(batch stats) + relu: stats pass + recompute/apply pass ----------
    taps1, (d1, h1, w1s) = _im2col_taps(x_bf, k, dil, pad_to=kp1)
    w1f = jnp.transpose(p['w1'], (2, 3, 4, 1, 0)).reshape(k1, c1)
    w1p = jnp.zeros((kp1, LANES), jnp.float32).at[:k1, :c1].set(w1f).astype(jnp.bfloat16)
    g1p = jnp.zeros((1, LANES), jnp.float32).at[0, :c1].set(p['g1'])
    be1p = jnp.zeros((1, LANES), jnp.float32).at[0, :c1].set(p['be1'])

    st1 = conv_bn_stats(taps1, w1p)                          # (tiles, 2, 128) partials
    y1 = conv_bn_apply(taps1, w1p, st1, g1p, be1p,
                       fold_residual=False, out_cols=LANES, out_dtype=jnp.bfloat16)
    y1 = y1[:, :c1].reshape(n, d1, h1, w1s, c1)

    # ---- conv2+bn2 || 1x1 downsample+bn folded block-diagonally into the SAME dot,
    # ---- then add + relu, using the same two-pass global-stat scheme -----------------
    res = x_bf[:, 4:-4, 4:-4, 4:-4, :]
    taps2, (d2, h2, w2s) = _im2col_taps(
        y1, k, dil, extra_cols=(res.reshape(-1, c0),), pad_to=kp2)
    w2f = jnp.transpose(p['w2'], (2, 3, 4, 1, 0)).reshape(k2, c2)
    wds = jnp.transpose(p['wds'][:, :, 0, 0, 0], (1, 0))     # (C0, C2)
    w2p = jnp.zeros((kp2, 2 * LANES), jnp.float32)
    w2p = w2p.at[:k2, :c2].set(w2f)                          # conv2      -> cols [0, C2)
    w2p = w2p.at[k2:k2 + c0, LANES:LANES + c2].set(wds)      # downsample -> [128, 128+C2)
    w2p = w2p.astype(jnp.bfloat16)
    g2p = jnp.zeros((1, 2 * LANES), jnp.float32)
    g2p = g2p.at[0, :c2].set(p['g2']).at[0, LANES:LANES + c2].set(p['gds'])
    be2p = jnp.zeros((1, 2 * LANES), jnp.float32)
    be2p = be2p.at[0, :c2].set(p['be2']).at[0, LANES:LANES + c2].set(p['beds'])

    st2 = conv_bn_stats(taps2, w2p)                          # (tiles, 2, 256) partials
    out = conv_bn_apply(taps2, w2p, st2, g2p, be2p,
                        fold_residual=True, out_cols=LANES, out_dtype=jnp.float32)
    out = out[:, :c2].reshape(n, d2, h2, w2s, c2)
    return jnp.transpose(out, (0, 4, 1, 2, 3))               # back to NCDHW


# --------------------------------------------------------------------------- reference
def ref_forward(x, p, eps=EPS):
    # Pure-JAX reference mirroring the PyTorch forward (training-mode BN, with conv
    # biases included -- which BN cancels), f32/HIGHEST.
    def conv3d(h, w, b, dil):
        out = jax.lax.conv_general_dilated(
            h, w, window_strides=(1, 1, 1), padding='VALID',
            rhs_dilation=(dil, dil, dil),
            dimension_numbers=('NCDHW', 'OIDHW', 'NCDHW'),
            precision=jax.lax.Precision.HIGHEST)
        return out + b[None, :, None, None, None]

    def bn(h, g, be):
        m = h.mean(axis=(0, 2, 3, 4), keepdims=True)
        v = ((h - m) ** 2).mean(axis=(0, 2, 3, 4), keepdims=True)
        return (h - m) * jax.lax.rsqrt(v + eps) * g[None, :, None, None, None] \
            + be[None, :, None, None, None]

    residual = x[:, :, 4:-4, 4:-4, 4:-4]
    y = jnp.maximum(bn(conv3d(x, p['w1'], p['b1'], 2), p['g1'], p['be1']), 0.0)
    y = bn(conv3d(y, p['w2'], p['b2'], 2), p['g2'], p['be2'])
    r = bn(conv3d(residual, p['wds'], p['bds'], 1), p['gds'], p['beds'])
    return jnp.maximum(y + r, 0.0)


if __name__ == "__main__":
    key = jax.random.PRNGKey(0)
    ks = jax.random.split(key, 8)
    N, C0, C1, C2, S, K = 2, 4, 8, 6, 12, 3  # inplanes1=4, outplanes1=8, outplanes2=6

    params = dict(
        w1=0.01 * jax.random.normal(ks[0], (C1, C0, K, K, K), jnp.float32),
        b1=0.01 * jax.random.normal(ks[1], (C1,), jnp.float32),
        w2=0.01 * jax.random.normal(ks[2], (C2, C1, K, K, K), jnp.float32),
        b2=0.01 * jax.random.normal(ks[3], (C2,), jnp.float32),
        wds=0.01 * jax.random.normal(ks[4], (C2, C0, 1, 1, 1), jnp.float32),
        bds=0.01 * jax.random.normal(ks[5], (C2,), jnp.float32),
        g1=jnp.ones((C1,), jnp.float32), be1=jnp.zeros((C1,), jnp.float32),
        g2=jnp.ones((C2,), jnp.float32), be2=jnp.zeros((C2,), jnp.float32),
        gds=jnp.ones((C2,), jnp.float32), beds=jnp.zeros((C2,), jnp.float32),
    )
    x = jax.random.normal(ks[6], (N, C0, S, S, S), jnp.float32)

    out = jax.jit(basic_block_forward)(x, params)
    out = jax.block_until_ready(out)

    ref = ref_forward(x, params)
    assert out.shape == ref.shape == (N, C2, S - 8, S - 8, S - 8)
    out_np = np.asarray(out, np.float32)
    ref_np = np.asarray(ref, np.float32)
    # bf16-input / f32-accumulation MXU matmuls: elementwise check with bf16-sized
    # slack plus a tight global relative-L2 check against the f32 reference.
    np.testing.assert_allclose(out_np, ref_np, rtol=2e-2, atol=5e-2)
    rel_l2 = np.linalg.norm(out_np - ref_np) / (np.linalg.norm(ref_np) + 1e-12)
    assert rel_l2 < 2e-2, rel_l2
    print("KERNEL_OK")
</pallas_src>

<mosaic_0001>
module attributes {stable_mosaic.version = 11 : i64} {
  func.func @_matmul_stats_kernel(%arg0: i32, %arg1: memref<512x128xbf16, #tpu.memory_space<vmem>>, %arg2: memref<128x128xbf16, #tpu.memory_space<vmem>>, %arg3: memref<1x2x128xf32, #tpu.memory_space<vmem>>) attributes {dimension_semantics = [#tpu.dimension_semantics<parallel>], iteration_bounds = array<i64: 2>, scalar_prefetch = 0 : i64, scratch_operands = 0 : i64, tpu.core_type = #tpu.core_type<tc>, window_params = [{transform_indices = @transform_0, window_bounds = array<i64: 512, 128>}, {pipeline_mode = #tpu.pipeline_mode<synchronous>, transform_indices = @transform_1, window_bounds = array<i64: 128, 128>}, {transform_indices = @transform_2, window_bounds = array<i64: 1, 2, 128>}]} {
    %c0 = arith.constant 0 : index
    %c0_0 = arith.constant 0 : index
    %0 = vector.load %arg1[%c0, %c0_0] : memref<512x128xbf16, #tpu.memory_space<vmem>>, vector<512x128xbf16>
    %c0_1 = arith.constant 0 : index
    %c0_2 = arith.constant 0 : index
    %1 = vector.load %arg2[%c0_1, %c0_2] : memref<128x128xbf16, #tpu.memory_space<vmem>>, vector<128x128xbf16>
    %cst = arith.constant dense<0.000000e+00> : vector<512x128xf32>
    %2 = tpu.matmul %0, %1, %cst {dimension_numbers = #tpu.dot_dimension_numbers<[1], [0], [0], [1], [0, 0, 1, 1], [], []>} : vector<512x128xbf16>, vector<128x128xbf16>, vector<512x128xf32> -> vector<512x128xf32>
    %cst_3 = arith.constant dense<0.000000e+00> : vector<128xf32>
    %3 = vector.multi_reduction <add>, %2, %cst_3 [0] : vector<512x128xf32> to vector<128xf32>
    %4 = vector.shape_cast %3 : vector<128xf32> to vector<1x128xf32>
    %c0_4 = arith.constant 0 : index
    %c0_5 = arith.constant 0 : index
    %c0_6 = arith.constant 0 : index
    %5 = vector.load %arg3[%c0_4, %c0_5, %c0_6] : memref<1x2x128xf32, #tpu.memory_space<vmem>>, vector<1x1x128xf32>
    %6 = vector.shape_cast %5 : vector<1x1x128xf32> to vector<1x128xf32>
    %7 = vector.shape_cast %4 : vector<1x128xf32> to vector<1x1x128xf32>
    tpu.vector_store %arg3[%c0_4, %c0_5, %c0_6], %7 {strides = array<i32>} : memref<1x2x128xf32, #tpu.memory_space<vmem>>, vector<1x1x128xf32>,
    %8 = arith.mulf %2, %2 : vector<512x128xf32>
    %cst_7 = arith.constant dense<0.000000e+00> : vector<128xf32>
    %9 = vector.multi_reduction <add>, %8, %cst_7 [0] : vector<512x128xf32> to vector<128xf32>
    %10 = vector.shape_cast %9 : vector<128xf32> to vector<1x128xf32>
    %c0_8 = arith.constant 0 : index
    %c1 = arith.constant 1 : index
    %c0_9 = arith.constant 0 : index
    %11 = vector.load %arg3[%c0_8, %c1, %c0_9] : memref<1x2x128xf32, #tpu.memory_space<vmem>>, vector<1x1x128xf32>
    %12 = vector.shape_cast %11 : vector<1x1x128xf32> to vector<1x128xf32>
    %13 = vector.shape_cast %10 : vector<1x128xf32> to vector<1x1x128xf32>
    tpu.vector_store %arg3[%c0_8, %c1, %c0_9], %13 {strides = array<i32>} : memref<1x2x128xf32, #tpu.memory_space<vmem>>, vector<1x1x128xf32>,
    return
  }
  func.func @transform_0(%arg0: i32) -> (i32, i32) {
    %c0_i32 = arith.constant 0 : i32
    %c0_i32_0 = arith.constant 0 : i32
    return %arg0, %c0_i32 : i32, i32
  }
  func.func @transform_1(%arg0: i32) -> (i32, i32) {
    %c0_i32 = arith.constant 0 : i32
    %c0_i32_0 = arith.constant 0 : i32
    %c0_i32_1 = arith.constant 0 : i32
    return %c0_i32, %c0_i32_0 : i32, i32
  }
  func.func @transform_2(%arg0: i32) -> (i32, i32, i32) {
    %c0_i32 = arith.constant 0 : i32
    %c0_i32_0 = arith.constant 0 : i32
    %c0_i32_1 = arith.constant 0 : i32
    return %arg0, %c0_i32, %c0_i32_0 : i32, i32, i32
  }
}

module attributes {stable_mosaic.version = 11 : i64} {
  func.func @kernel(%arg0: i32, %arg1: memref<512x128xbf16, #tpu.memory_space<vmem>>, %arg2: memref<128x128xbf16, #tpu.memory_space<vmem>>, %arg3: memref<2x2x128xf32, #tpu.memory_space<vmem>>, %arg4: memref<1x128xf32, #tpu.memory_space<vmem>>, %arg5: memref<1x128xf32, #tpu.memory_space<vmem>>, %arg6: memref<512x128xbf16, #tpu.memory_space<vmem>>) attributes {dimension_semantics = [#tpu.dimension_semantics<parallel>], iteration_bounds = array<i64: 2>, scalar_prefetch = 0 : i64, scratch_operands = 0 : i64, tpu.core_type = #tpu.core_type<tc>, window_params = [{transform_indices = @transform_0, window_bounds = array<i64: 512, 128>}, {pipeline_mode = #tpu.pipeline_mode<synchronous>, transform_indices = @transform_1, window_bounds = array<i64: 128, 128>}, {pipeline_mode = #tpu.pipeline_mode<synchronous>, transform_indices = @transform_2, window_bounds = array<i64: 2, 2, 128>}, {pipeline_mode = #tpu.pipeline_mode<synchronous>, transform_indices = @transform_3, window_bounds = array<i64: 1, 128>}, {pipeline_mode = #tpu.pipeline_mode<synchronous>, transform_indices = @transform_4, window_bounds = array<i64: 1, 128>}, {transform_indices = @transform_5, window_bounds = array<i64: 512, 128>}]} {
    %c0 = arith.constant 0 : index
    %c0_0 = arith.constant 0 : index
    %0 = vector.load %arg1[%c0, %c0_0] : memref<512x128xbf16, #tpu.memory_space<vmem>>, vector<512x128xbf16>
    %c0_1 = arith.constant 0 : index
    %c0_2 = arith.constant 0 : index
    %1 = vector.load %arg2[%c0_1, %c0_2] : memref<128x128xbf16, #tpu.memory_space<vmem>>, vector<128x128xbf16>
    %cst = arith.constant dense<0.000000e+00> : vector<512x128xf32>
    %2 = tpu.matmul %0, %1, %cst {dimension_numbers = #tpu.dot_dimension_numbers<[1], [0], [0], [1], [0, 0, 1, 1], [], []>} : vector<512x128xbf16>, vector<128x128xbf16>, vector<512x128xf32> -> vector<512x128xf32>
    %c0_3 = arith.constant 0 : index
    %c0_4 = arith.constant 0 : index
    %c0_5 = arith.constant 0 : index
    %3 = vector.load %arg3[%c0_3, %c0_4, %c0_5] : memref<2x2x128xf32, #tpu.memory_space<vmem>>, vector<2x2x128xf32>
    %cst_6 = arith.constant dense<0.000000e+00> : vector<2x128xf32>
    %4 = vector.multi_reduction <add>, %3, %cst_6 [0] : vector<2x2x128xf32> to vector<2x128xf32>
    %5 = vector.extract_strided_slice %4 {offsets = [0, 0], sizes = [1, 128], strides = [1, 1]} : vector<2x128xf32> to vector<1x128xf32>
    %cst_7 = arith.constant 9.765625E-4 : f32
    %6 = vector.broadcast %cst_7 : f32 to vector<1x128xf32>
    %7 = arith.mulf %5, %6 : vector<1x128xf32>
    %8 = vector.extract_strided_slice %4 {offsets = [1, 0], sizes = [1, 128], strides = [1, 1]} : vector<2x128xf32> to vector<1x128xf32>
    %cst_8 = arith.constant 9.765625E-4 : f32
    %9 = vector.broadcast %cst_8 : f32 to vector<1x128xf32>
    %10 = arith.mulf %8, %9 : vector<1x128xf32>
    %11 = arith.mulf %7, %7 : vector<1x128xf32>
    %12 = arith.subf %10, %11 : vector<1x128xf32>
    %cst_9 = arith.constant 0.000000e+00 : f32
    %13 = vector.broadcast %cst_9 : f32 to vector<1x128xf32>
    %14 = arith.maximumf %12, %13 : vector<1x128xf32>
    %c0_10 = arith.constant 0 : index
    %c0_11 = arith.constant 0 : index
    %15 = vector.load %arg4[%c0_10, %c0_11] : memref<1x128xf32, #tpu.memory_space<vmem>>, vector<1x128xf32>
    %cst_12 = arith.constant 9.99999974E-6 : f32
    %16 = vector.broadcast %cst_12 : f32 to vector<1x128xf32>
    %17 = arith.addf %14, %16 : vector<1x128xf32>
    %18 = math.rsqrt %17 : vector<1x128xf32>
    %19 = arith.mulf %15, %18 : vector<1x128xf32>
    %c0_13 = arith.constant 0 : index
    %c0_14 = arith.constant 0 : index
    %20 = vector.load %arg5[%c0_13, %c0_14] : memref<1x128xf32, #tpu.memory_space<vmem>>, vector<1x128xf32>
    %21 = arith.mulf %7, %19 : vector<1x128xf32>
    %22 = arith.subf %20, %21 : vector<1x128xf32>
    %23 = vector.broadcast %19 : vector<1x128xf32> to vector<512x128xf32>
    %24 = arith.mulf %2, %23 : vector<512x128xf32>
    %25 = vector.broadcast %22 : vector<1x128xf32> to vector<512x128xf32>
    %26 = arith.addf %24, %25 : vector<512x128xf32>
    %cst_15 = arith.constant 0.000000e+00 : f32
    %27 = vector.broadcast %cst_15 : f32 to vector<512x128xf32>
    %28 = arith.maximumf %26, %27 : vector<512x128xf32>
    %29 = arith.truncf %28 : vector<512x128xf32> to vector<512x128xbf16>
    %c0_16 = arith.constant 0 : index
    %c0_17 = arith.constant 0 : index
    %30 = vector.load %arg6[%c0_16, %c0_17] : memref<512x128xbf16, #tpu.memory_space<vmem>>, vector<512x128xbf16>
    tpu.vector_store %arg6[%c0_16, %c0_17], %29 {strides = array<i32>} : memref<512x128xbf16, #tpu.memory_space<vmem>>, vector<512x128xbf16>,
    return
  }
  func.func @transform_0(%arg0: i32) -> (i32, i32) {
    %c0_i32 = arith.constant 0 : i32
    %c0_i32_0 = arith.constant 0 : i32
    return %arg0, %c0_i32 : i32, i32
  }
  func.func @transform_1(%arg0: i32) -> (i32, i32) {
    %c0_i32 = arith.constant 0 : i32
    %c0_i32_0 = arith.constant 0 : i32
    %c0_i32_1 = arith.constant 0 : i32
    return %c0_i32, %c0_i32_0 : i32, i32
  }
  func.func @transform_2(%arg0: i32) -> (i32, i32, i32) {
    %c0_i32 = arith.constant 0 : i32
    %c0_i32_0 = arith.constant 0 : i32
    %c0_i32_1 = arith.constant 0 : i32
    %c0_i32_2 = arith.constant 0 : i32
    return %c0_i32, %c0_i32_0, %c0_i32_1 : i32, i32, i32
  }
  func.func @transform_3(%arg0: i32) -> (i32, i32) {
    %c0_i32 = arith.constant 0 : i32
    %c0_i32_0 = arith.constant 0 : i32
    %c0_i32_1 = arith.constant 0 : i32
    return %c0_i32, %c0_i32_0 : i32, i32
  }
  func.func @transform_4(%arg0: i32) -> (i32, i32) {
    %c0_i32 = arith.constant 0 : i32
    %c0_i32_0 = arith.constant 0 : i32
    %c0_i32_1 = arith.constant 0 : i32
    return %c0_i32, %c0_i32_0 : i32, i32
  }
  func.func @transform_5(%arg0: i32) -> (i32, i32) {
    %c0_i32 = arith.constant 0 : i32
    %c0_i32_0 = arith.constant 0 : i32
    return %arg0, %c0_i32 : i32, i32
  }
}

module attributes {stable_mosaic.version = 11 : i64} {
  func.func @_matmul_stats_kernel(%arg0: i32, %arg1: memref<64x256xbf16, #tpu.memory_space<vmem>>, %arg2: memref<256x256xbf16, #tpu.memory_space<vmem>>, %arg3: memref<1x2x256xf32, #tpu.memory_space<vmem>>) attributes {dimension_semantics = [#tpu.dimension_semantics<parallel>], iteration_bounds = array<i64: 2>, scalar_prefetch = 0 : i64, scratch_operands = 0 : i64, tpu.core_type = #tpu.core_type<tc>, window_params = [{transform_indices = @transform_0, window_bounds = array<i64: 64, 256>}, {pipeline_mode = #tpu.pipeline_mode<synchronous>, transform_indices = @transform_1, window_bounds = array<i64: 256, 256>}, {transform_indices = @transform_2, window_bounds = array<i64: 1, 2, 256>}]} {
    %c0 = arith.constant 0 : index
    %c0_0 = arith.constant 0 : index
    %0 = vector.load %arg1[%c0, %c0_0] : memref<64x256xbf16, #tpu.memory_space<vmem>>, vector<64x256xbf16>
    %c0_1 = arith.constant 0 : index
    %c0_2 = arith.constant 0 : index
    %1 = vector.load %arg2[%c0_1, %c0_2] : memref<256x256xbf16, #tpu.memory_space<vmem>>, vector<256x256xbf16>
    %cst = arith.constant dense<0.000000e+00> : vector<64x256xf32>
    %2 = tpu.matmul %0, %1, %cst {dimension_numbers = #tpu.dot_dimension_numbers<[1], [0], [0], [1], [0, 0, 1, 1], [], []>} : vector<64x256xbf16>, vector<256x256xbf16>, vector<64x256xf32> -> vector<64x256xf32>
    %cst_3 = arith.constant dense<0.000000e+00> : vector<256xf32>
    %3 = vector.multi_reduction <add>, %2, %cst_3 [0] : vector<64x256xf32> to vector<256xf32>
    %4 = vector.shape_cast %3 : vector<256xf32> to vector<1x256xf32>
    %c0_4 = arith.constant 0 : index
    %c0_5 = arith.constant 0 : index
    %c0_6 = arith.constant 0 : index
    %5 = vector.load %arg3[%c0_4, %c0_5, %c0_6] : memref<1x2x256xf32, #tpu.memory_space<vmem>>, vector<1x1x256xf32>
    %6 = vector.shape_cast %5 : vector<1x1x256xf32> to vector<1x256xf32>
    %7 = vector.shape_cast %4 : vector<1x256xf32> to vector<1x1x256xf32>
    tpu.vector_store %arg3[%c0_4, %c0_5, %c0_6], %7 {strides = array<i32>} : memref<1x2x256xf32, #tpu.memory_space<vmem>>, vector<1x1x256xf32>,
    %8 = arith.mulf %2, %2 : vector<64x256xf32>
    %cst_7 = arith.constant dense<0.000000e+00> : vector<256xf32>
    %9 = vector.multi_reduction <add>, %8, %cst_7 [0] : vector<64x256xf32> to vector<256xf32>
    %10 = vector.shape_cast %9 : vector<256xf32> to vector<1x256xf32>
    %c0_8 = arith.constant 0 : index
    %c1 = arith.constant 1 : index
    %c0_9 = arith.constant 0 : index
    %11 = vector.load %arg3[%c0_8, %c1, %c0_9] : memref<1x2x256xf32, #tpu.memory_space<vmem>>, vector<1x1x256xf32>
    %12 = vector.shape_cast %11 : vector<1x1x256xf32> to vector<1x256xf32>
    %13 = vector.shape_cast %10 : vector<1x256xf32> to vector<1x1x256xf32>
    tpu.vector_store %arg3[%c0_8, %c1, %c0_9], %13 {strides = array<i32>} : memref<1x2x256xf32, #tpu.memory_space<vmem>>, vector<1x1x256xf32>,
    return
  }
  func.func @transform_0(%arg0: i32) -> (i32, i32) {
    %c0_i32 = arith.constant 0 : i32
    %c0_i32_0 = arith.constant 0 : i32
    return %arg0, %c0_i32 : i32, i32
  }
  func.func @transform_1(%arg0: i32) -> (i32, i32) {
    %c0_i32 = arith.constant 0 : i32
    %c0_i32_0 = arith.constant 0 : i32
    %c0_i32_1 = arith.constant 0 : i32
    return %c0_i32, %c0_i32_0 : i32, i32
  }
  func.func @transform_2(%arg0: i32) -> (i32, i32, i32) {
    %c0_i32 = arith.constant 0 : i32
    %c0_i32_0 = arith.constant 0 : i32
    %c0_i32_1 = arith.constant 0 : i32
    return %arg0, %c0_i32, %c0_i32_0 : i32, i32, i32
  }
}

module attributes {stable_mosaic.version = 11 : i64} {
  func.func @kernel(%arg0: i32, %arg1: memref<64x256xbf16, #tpu.memory_space<vmem>>, %arg2: memref<256x256xbf16, #tpu.memory_space<vmem>>, %arg3: memref<2x2x256xf32, #tpu.memory_space<vmem>>, %arg4: memref<1x256xf32, #tpu.memory_space<vmem>>, %arg5: memref<1x256xf32, #tpu.memory_space<vmem>>, %arg6: memref<64x128xf32, #tpu.memory_space<vmem>>) attributes {dimension_semantics = [#tpu.dimension_semantics<parallel>], iteration_bounds = array<i64: 2>, scalar_prefetch = 0 : i64, scratch_operands = 0 : i64, tpu.core_type = #tpu.core_type<tc>, window_params = [{transform_indices = @transform_0, window_bounds = array<i64: 64, 256>}, {pipeline_mode = #tpu.pipeline_mode<synchronous>, transform_indices = @transform_1, window_bounds = array<i64: 256, 256>}, {pipeline_mode = #tpu.pipeline_mode<synchronous>, transform_indices = @transform_2, window_bounds = array<i64: 2, 2, 256>}, {pipeline_mode = #tpu.pipeline_mode<synchronous>, transform_indices = @transform_3, window_bounds = array<i64: 1, 256>}, {pipeline_mode = #tpu.pipeline_mode<synchronous>, transform_indices = @transform_4, window_bounds = array<i64: 1, 256>}, {transform_indices = @transform_5, window_bounds = array<i64: 64, 128>}]} {
    %c0 = arith.constant 0 : index
    %c0_0 = arith.constant 0 : index
    %0 = vector.load %arg1[%c0, %c0_0] : memref<64x256xbf16, #tpu.memory_space<vmem>>, vector<64x256xbf16>
    %c0_1 = arith.constant 0 : index
    %c0_2 = arith.constant 0 : index
    %1 = vector.load %arg2[%c0_1, %c0_2] : memref<256x256xbf16, #tpu.memory_space<vmem>>, vector<256x256xbf16>
    %cst = arith.constant dense<0.000000e+00> : vector<64x256xf32>
    %2 = tpu.matmul %0, %1, %cst {dimension_numbers = #tpu.dot_dimension_numbers<[1], [0], [0], [1], [0, 0, 1, 1], [], []>} : vector<64x256xbf16>, vector<256x256xbf16>, vector<64x256xf32> -> vector<64x256xf32>
    %c0_3 = arith.constant 0 : index
    %c0_4 = arith.constant 0 : index
    %c0_5 = arith.constant 0 : index
    %3 = vector.load %arg3[%c0_3, %c0_4, %c0_5] : memref<2x2x256xf32, #tpu.memory_space<vmem>>, vector<2x2x256xf32>
    %cst_6 = arith.constant dense<0.000000e+00> : vector<2x256xf32>
    %4 = vector.multi_reduction <add>, %3, %cst_6 [0] : vector<2x2x256xf32> to vector<2x256xf32>
    %5 = vector.extract_strided_slice %4 {offsets = [0, 0], sizes = [1, 256], strides = [1, 1]} : vector<2x256xf32> to vector<1x256xf32>
    %cst_7 = arith.constant 7.812500e-03 : f32
    %6 = vector.broadcast %cst_7 : f32 to vector<1x256xf32>
    %7 = arith.mulf %5, %6 : vector<1x256xf32>
    %8 = vector.extract_strided_slice %4 {offsets = [1, 0], sizes = [1, 256], strides = [1, 1]} : vector<2x256xf32> to vector<1x256xf32>
    %cst_8 = arith.constant 7.812500e-03 : f32
    %9 = vector.broadcast %cst_8 : f32 to vector<1x256xf32>
    %10 = arith.mulf %8, %9 : vector<1x256xf32>
    %11 = arith.mulf %7, %7 : vector<1x256xf32>
    %12 = arith.subf %10, %11 : vector<1x256xf32>
    %cst_9 = arith.constant 0.000000e+00 : f32
    %13 = vector.broadcast %cst_9 : f32 to vector<1x256xf32>
    %14 = arith.maximumf %12, %13 : vector<1x256xf32>
    %c0_10 = arith.constant 0 : index
    %c0_11 = arith.constant 0 : index
    %15 = vector.load %arg4[%c0_10, %c0_11] : memref<1x256xf32, #tpu.memory_space<vmem>>, vector<1x256xf32>
    %cst_12 = arith.constant 9.99999974E-6 : f32
    %16 = vector.broadcast %cst_12 : f32 to vector<1x256xf32>
    %17 = arith.addf %14, %16 : vector<1x256xf32>
    %18 = math.rsqrt %17 : vector<1x256xf32>
    %19 = arith.mulf %15, %18 : vector<1x256xf32>
    %c0_13 = arith.constant 0 : index
    %c0_14 = arith.constant 0 : index
    %20 = vector.load %arg5[%c0_13, %c0_14] : memref<1x256xf32, #tpu.memory_space<vmem>>, vector<1x256xf32>
    %21 = arith.mulf %7, %19 : vector<1x256xf32>
    %22 = arith.subf %20, %21 : vector<1x256xf32>
    %23 = vector.broadcast %19 : vector<1x256xf32> to vector<64x256xf32>
    %24 = arith.mulf %2, %23 : vector<64x256xf32>
    %25 = vector.broadcast %22 : vector<1x256xf32> to vector<64x256xf32>
    %26 = arith.addf %24, %25 : vector<64x256xf32>
    %27 = vector.extract_strided_slice %26 {offsets = [0, 0], sizes = [64, 128], strides = [1, 1]} : vector<64x256xf32> to vector<64x128xf32>
    %28 = vector.extract_strided_slice %26 {offsets = [0, 128], sizes = [64, 128], strides = [1, 1]} : vector<64x256xf32> to vector<64x128xf32>
    %29 = arith.addf %27, %28 : vector<64x128xf32>
    %cst_15 = arith.constant 0.000000e+00 : f32
    %30 = vector.broadcast %cst_15 : f32 to vector<64x128xf32>
    %31 = arith.maximumf %29, %30 : vector<64x128xf32>
    %c0_16 = arith.constant 0 : index
    %c0_17 = arith.constant 0 : index
    %32 = vector.load %arg6[%c0_16, %c0_17] : memref<64x128xf32, #tpu.memory_space<vmem>>, vector<64x128xf32>
    tpu.vector_store %arg6[%c0_16, %c0_17], %31 {strides = array<i32>} : memref<64x128xf32, #tpu.memory_space<vmem>>, vector<64x128xf32>,
    return
  }
  func.func @transform_0(%arg0: i32) -> (i32, i32) {
    %c0_i32 = arith.constant 0 : i32
    %c0_i32_0 = arith.constant 0 : i32
    return %arg0, %c0_i32 : i32, i32
  }
  func.func @transform_1(%arg0: i32) -> (i32, i32) {
    %c0_i32 = arith.constant 0 : i32
    %c0_i32_0 = arith.constant 0 : i32
    %c0_i32_1 = arith.constant 0 : i32
    return %c0_i32, %c0_i32_0 : i32, i32
  }
  func.func @transform_2(%arg0: i32) -> (i32, i32, i32) {
    %c0_i32 = arith.constant 0 : i32
    %c0_i32_0 = arith.constant 0 : i32
    %c0_i32_1 = arith.constant 0 : i32
    %c0_i32_2 = arith.constant 0 : i32
    return %c0_i32, %c0_i32_0, %c0_i32_1 : i32, i32, i32
  }
  func.func @transform_3(%arg0: i32) -> (i32, i32) {
    %c0_i32 = arith.constant 0 : i32
    %c0_i32_0 = arith.constant 0 : i32
    %c0_i32_1 = arith.constant 0 : i32
    return %c0_i32, %c0_i32_0 : i32, i32
  }
  func.func @transform_4(%arg0: i32) -> (i32, i32) {
    %c0_i32 = arith.constant 0 : i32
    %c0_i32_0 = arith.constant 0 : i32
    %c0_i32_1 = arith.constant 0 : i32
    return %c0_i32, %c0_i32_0 : i32, i32
  }
  func.func @transform_5(%arg0: i32) -> (i32, i32) {
    %c0_i32 = arith.constant 0 : i32
    %c0_i32_0 = arith.constant 0 : i32
    return %arg0, %c0_i32 : i32, i32
  }
}

</mosaic_0001>

<llo_original>
// kernel: basic_block_forward.4
$region0: #{basic_block_forward.4}
  #allocation0 [shape = 'u32[]', space=smem, size = 0x4, offset = 0x4, fixed_abs, tag = 'smem constant byte address 0x4 - core index']
  #allocation1 [shape = 'u32[144,128]{1,0:T(1,128)}', space=vmem, size = 0x12000, scoped, tag = 'internal scratch']
  %s0 = inlined_call_operand.vmem [shape: bf16[1024,128], index: 0, kind: input, shape index: {}]
  %s1 = inlined_call_operand.vmem [shape: bf16[128,128], index: 1, kind: input, shape index: {}]
  %s2 = inlined_call_operand.vmem [shape: f32[2,2,128], index: 2, kind: output, shape index: {}]
  %s3 = sld [smem:[#allocation0]]
  $region41: #{basic_block_forward.4} parent=0
    _
  %s5 = ssub.s32 1, %s3
  %s6 = scalar_select 0, %s5, %s3
  loop: start=0, step=1, limit=4
  $region2: #{basic_block_forward.4} parent=0 // loop_pre_header
    _
  $region3: #{basic_block_forward.4} parent=0 // loop_header
    %s8 = sphi 0, %s12
    %p9 = scmp.ge.s32.totalorder %s8, 4
    %s18 = sphi 0, %s20
    %s21 = sphi 0, %s18
    %s22 = sphi 0, %s21
    %s38 = sphi 0, %s22
    %s42 = sphi 0, %s42
    %s44 = sphi 0, %s42
    %s45 = sphi 0, %s44
    %s59 = sphi 0, %s45
    %s65 = sphi 0, %s67
    %s68 = sphi 0, %s65
    %s69 = sphi 0, %s68
    %s85 = sphi 0, %s69
  $region4: #{basic_block_forward.4} parent=0 // loop_header_branch
    %11 = sbr.rel (%p9) target = $region8
  $region5: #{basic_block_forward.4} parent=0 // loop_body
    %s13 = ssub.s32 %s8, 1
    %s14 = ssub.s32 %s8, 2
    %s15 = sadd.s32 %s8, 1
    %s16 = ssub.s32 %s8, %s15
    %p17 = scmp.eq.s32.totalorder %s16, 0
    %s19 = sadd.s32 %s18, 1
    %s20 = scalar_select %p17, %s18, %s19
    %p23 = pneg %p17
    %p24 = scmp.eq.s32.totalorder %s8, 1
    %p25 = por %p23, %p24
    %p26 = scmp.ne.s32.totalorder %s18, %s21
    %p27 = scmp.eq.s32.totalorder %s8, 0
    %p28 = por %p26, %p27
    %p29 = scmp.ne.s32.totalorder %s18, %s21
    %p30 = scmp.eq.s32.totalorder %s13, 1
    %p31 = por %p29, %p30
    %p32 = scmp.ne.s32.totalorder %s21, %s22
    %p33 = scmp.eq.s32.totalorder %s13, 0
    %p34 = por %p32, %p33
    %p35 = scmp.ne.s32.totalorder %s21, %s22
    %p36 = scmp.eq.s32.totalorder %s14, 1
    %p37 = por %p35, %p36
    %p39 = scmp.ne.s32.totalorder %s22, %s38
    %p40 = scmp.eq.s32.totalorder %s14, 0
    %p41 = por %p39, %p40
    %s43 = sadd.s32 %s42, 1
    %p46 = scmp.eq.s32.totalorder %s8, 1
    %p47 = scmp.ne.s32.totalorder %s42, %s44
    %p48 = scmp.eq.s32.totalorder %s8, 0
    %p49 = por %p47, %p48
    %p50 = scmp.ne.s32.totalorder %s42, %s44
    %p51 = scmp.eq.s32.totalorder %s13, 1
    %p52 = por %p50, %p51
    %p53 = scmp.ne.s32.totalorder %s44, %s45
    %p54 = scmp.eq.s32.totalorder %s13, 0
    %p55 = por %p53, %p54
    %p56 = scmp.ne.s32.totalorder %s44, %s45
    %p57 = scmp.eq.s32.totalorder %s14, 1
    %p58 = por %p56, %p57
    %p60 = scmp.ne.s32.totalorder %s45, %s59
    %p61 = scmp.eq.s32.totalorder %s14, 0
    %p62 = por %p60, %p61
    %s63 = ssub.s32 %s8, %s15
    %p64 = scmp.eq.s32.totalorder %s63, 0
    %s66 = sadd.s32 %s65, 1
    %s67 = scalar_select %p64, %s65, %s66
    %p70 = pneg %p64
    %p71 = scmp.eq.s32.totalorder %s8, 1
    %p72 = por %p70, %p71
    %p73 = scmp.ne.s32.totalorder %s65, %s68
    %p74 = scmp.eq.s32.totalorder %s8, 0
    %p75 = por %p73, %p74
    %p76 = scmp.ne.s32.totalorder %s65, %s68
    %p77 = scmp.eq.s32.totalorder %s13, 1
    %p78 = por %p76, %p77
    %p79 = scmp.ne.s32.totalorder %s68, %s69
    %p80 = scmp.eq.s32.totalorder %s13, 0
    %p81 = por %p79, %p80
    %p82 = scmp.ne.s32.totalorder %s68, %s69
    %p83 = scmp.eq.s32.totalorder %s14, 1
    %p84 = por %p82, %p83
    %p86 = scmp.ne.s32.totalorder %s69, %s85
    %p87 = scmp.eq.s32.totalorder %s14, 0
    %p88 = por %p86, %p87
    %p89 = scmp.le.s32.totalorder 1, %s8
    %p90 = scmp.lt.s32.totalorder %s8, 3
    %p91 = pnand %p89, %p90
    %p92 = pneg %p91
    // Predicated region
    $region9: #{basic_block_forward.4} parent=5 // pred_check
      _
    $region10: #{basic_block_forward.4} parent=5 // pred_check_branch
      %94 = sbr.rel (%p91) target = $region12
    $region11: #{basic_block_forward.4} parent=5 // pred_region
      %s95 = ssub.s32 %s8, 1
      // Predicated region
      $region13: #{basic_block_forward.4} parent=11 // pred_check
        %p96 = pneg %p55
      $region14: #{basic_block_forward.4} parent=11 // pred_check_branch
        %98 = sbr.rel (%p96) target = $region16
      $region15: #{basic_block_forward.4} parent=11 // pred_region
        _
      $region16: #{basic_block_forward.4} parent=11 // pred_fallthru
        _
    $region12: #{basic_block_forward.4} parent=5 // pred_fallthru
      _
    %p99 = scmp.lt.s32.totalorder %s8, 2
    // Predicated region
    $region17: #{basic_block_forward.4} parent=5 // pred_check
      %p100 = pneg %p99
    $region18: #{basic_block_forward.4} parent=5 // pred_check_branch
      %102 = sbr.rel (%p100) target = $region20
    $region19: #{basic_block_forward.4} parent=5 // pred_region
      // Predicated region
      $region21: #{basic_block_forward.4} parent=19 // pred_check
        %p103 = pneg %p28
      $region22: #{basic_block_forward.4} parent=19 // pred_check_branch
        %105 = sbr.rel (%p103) target = $region24
      $region23: #{basic_block_forward.4} parent=19 // pred_region
        %s106 = smul.u32 64, %s8
        %p107 = scmp.lt.s32.totalorder %s106, 127
        %s108 = scalar_select %p107, %s106, 127
        %s109 = smul.addr %s108, 4
        %s110 = scalar_lea.vmem %s0, %s109
        %s111 = smul.u32 64, %s8
      $region24: #{basic_block_forward.4} parent=19 // pred_fallthru
        _
    $region20: #{basic_block_forward.4} parent=5 // pred_fallthru
      _
    %p112 = scmp.le.s32.totalorder 1, %s8
    %p113 = scmp.lt.s32.totalorder %s8, 3
    %p114 = pnand %p112, %p113
    %p115 = pneg %p114
    // Predicated region
    $region25: #{basic_block_forward.4} parent=5 // pred_check
      _
    $region26: #{basic_block_forward.4} parent=5 // pred_check_branch
      %117 = sbr.rel (%p114) target = $region28
    $region27: #{basic_block_forward.4} parent=5 // pred_region
      %s118 = ssub.s32 %s8, 1
      %s119 = smul.u32 64, %s13
      %p120 = scmp.lt.s32.totalorder %s119, 127
      %s121 = scalar_select %p120, %s119, 127
      %s122 = smul.addr %s121, 4
      %s123 = scalar_lea.vmem %s0, %s122
      %p124 = pneg %p34
      %p125 = pneg %p31
      %p126 = pneg %p55
      %p127 = pneg %p52
      %p128 = pneg %p81
      %p129 = pneg %p78
      %p130 = scmp.lt.s32.totalorder %s13, 1
      %s131 = scalar_select %p130, %s13, 1
      %s132 = smul.addr %s131, 2
      %s133 = scalar_lea.vmem %s2, %s132
      %s134 = smul.u32 64, %s13
      %p135 = scmp.lt.s32.totalorder %s134, 127
      %s136 = scalar_select %p135, %s134, 127
      %s137 = smul.addr %s136, 4
      %s138 = scalar_lea.vmem %s0, %s137
      %s139 = smul.u32 64, %s13
      %p140 = scmp.lt.s32.totalorder %s13, 1
      %s141 = scalar_select %p140, %s13, 1
      %s142 = smul.addr %s141, 2
      %s143 = scalar_lea.vmem %s2, %s142
      %v145 = vld [vmem:[%s138] sm:$0xf]
      %v146 = vld [vmem:[%s138 + $0x4] sm:$0xf]
      %v147 = vld [vmem:[%s138 + $0x8] sm:$0xf]
      %v148 = vld [vmem:[%s138 + $0xc] sm:$0xf]
      %v149 = vld [vmem:[%s138 + $0x10] sm:$0xf]
      %v150 = vld [vmem:[%s138 + $0x14] sm:$0xf]
      %v151 = vld [vmem:[%s138 + $0x18] sm:$0xf]
      %v152 = vld [vmem:[%s138 + $0x1c] sm:$0xf]
      %v153 = vld [vmem:[%s138 + $0x20] sm:$0xf]
      %v154 = vld [vmem:[%s138 + $0x24] sm:$0xf]
      %v155 = vld [vmem:[%s138 + $0x28] sm:$0xf]
      %v156 = vld [vmem:[%s138 + $0x2c] sm:$0xf]
      %v157 = vld [vmem:[%s138 + $0x30] sm:$0xf]
      %v158 = vld [vmem:[%s138 + $0x34] sm:$0xf]
      %v159 = vld [vmem:[%s138 + $0x38] sm:$0xf]
      %v160 = vld [vmem:[%s138 + $0x3c] sm:$0xf]
      %v161 = vld [vmem:[%s138 + $0x40] sm:$0xf]
      %v162 = vld [vmem:[%s138 + $0x44] sm:$0xf]
      %v163 = vld [vmem:[%s138 + $0x48] sm:$0xf]
      %v164 = vld [vmem:[%s138 + $0x4c] sm:$0xf]
      %v165 = vld [vmem:[%s138 + $0x50] sm:$0xf]
      %v166 = vld [vmem:[%s138 + $0x54] sm:$0xf]
      %v167 = vld [vmem:[%s138 + $0x58] sm:$0xf]
      %v168 = vld [vmem:[%s138 + $0x5c] sm:$0xf]
      %v169 = vld [vmem:[%s138 + $0x60] sm:$0xf]
      %v170 = vld [vmem:[%s138 + $0x64] sm:$0xf]
      %v171 = vld [vmem:[%s138 + $0x68] sm:$0xf]
      %v172 = vld [vmem:[%s138 + $0x6c] sm:$0xf]
      %v173 = vld [vmem:[%s138 + $0x70] sm:$0xf]
      %v174 = vld [vmem:[%s138 + $0x74] sm:$0xf]
      %v175 = vld [vmem:[%s138 + $0x78] sm:$0xf]
      %v176 = vld [vmem:[%s138 + $0x7c] sm:$0xf]
      %v177 = vld [vmem:[%s138 + $0x80] sm:$0xf]
      %v178 = vld [vmem:[%s138 + $0x84] sm:$0xf]
      %v179 = vld [vmem:[%s138 + $0x88] sm:$0xf]
      %v180 = vld [vmem:[%s138 + $0x8c] sm:$0xf]
      %v181 = vld [vmem:[%s138 + $0x90] sm:$0xf]
      %v182 = vld [vmem:[%s138 + $0x94] sm:$0xf]
      %v183 = vld [vmem:[%s138 + $0x98] sm:$0xf]
      %v184 = vld [vmem:[%s138 + $0x9c] sm:$0xf]
      %v185 = vld [vmem:[%s138 + $0xa0] sm:$0xf]
      %v186 = vld [vmem:[%s138 + $0xa4] sm:$0xf]
      %v187 = vld [vmem:[%s138 + $0xa8] sm:$0xf]
      %v188 = vld [vmem:[%s138 + $0xac] sm:$0xf]
      %v189 = vld [vmem:[%s138 + $0xb0] sm:$0xf]
      %v190 = vld [vmem:[%s138 + $0xb4] sm:$0xf]
      %v191 = vld [vmem:[%s138 + $0xb8] sm:$0xf]
      %v192 = vld [vmem:[%s138 + $0xbc] sm:$0xf]
      %v193 = vld [vmem:[%s138 + $0xc0] sm:$0xf]
      %v194 = vld [vmem:[%s138 + $0xc4] sm:$0xf]
      %v195 = vld [vmem:[%s138 + $0xc8] sm:$0xf]
      %v196 = vld [vmem:[%s138 + $0xcc] sm:$0xf]
      %v197 = vld [vmem:[%s138 + $0xd0] sm:$0xf]
      %v198 = vld [vmem:[%s138 + $0xd4] sm:$0xf]
      %v199 = vld [vmem:[%s138 + $0xd8] sm:$0xf]
      %v200 = vld [vmem:[%s138 + $0xdc] sm:$0xf]
      %v201 = vld [vmem:[%s138 + $0xe0] sm:$0xf]
      %v202 = vld [vmem:[%s138 + $0xe4] sm:$0xf]
      %v203 = vld [vmem:[%s138 + $0xe8] sm:$0xf]
      %v204 = vld [vmem:[%s138 + $0xec] sm:$0xf]
      %v205 = vld [vmem:[%s138 + $0xf0] sm:$0xf]
      %v206 = vld [vmem:[%s138 + $0xf4] sm:$0xf]
      %v207 = vld [vmem:[%s138 + $0xf8] sm:$0xf]
      %v208 = vld [vmem:[%s138 + $0xfc] sm:$0xf]
      %v209 = vld [vmem:[%s1] sm:$0xf]
      %v210 = vld [vmem:[%s1 + $0x4] sm:$0xf]
      %v211 = vld [vmem:[%s1 + $0x8] sm:$0xf]
      %v212 = vld [vmem:[%s1 + $0xc] sm:$0xf]
      %v213 = vld [vmem:[%s1 + $0x10] sm:$0xf]
      %v214 = vld [vmem:[%s1 + $0x14] sm:$0xf]
      %v215 = vld [vmem:[%s1 + $0x18] sm:$0xf]
      %v216 = vld [vmem:[%s1 + $0x1c] sm:$0xf]
      %v217 = vld [vmem:[%s1 + $0x20] sm:$0xf]
      %v218 = vld [vmem:[%s1 + $0x24] sm:$0xf]
      %v219 = vld [vmem:[%s1 + $0x28] sm:$0xf]
      %v220 = vld [vmem:[%s1 + $0x2c] sm:$0xf]
      %v221 = vld [vmem:[%s1 + $0x30] sm:$0xf]
      %v222 = vld [vmem:[%s1 + $0x34] sm:$0xf]
      %v223 = vld [vmem:[%s1 + $0x38] sm:$0xf]
      %v224 = vld [vmem:[%s1 + $0x3c] sm:$0xf]
      %v289 = vunpack.c.l.b16 %v145
      %v290 = vunpack.c.l.b16 %v146
      %v291 = vunpack.c.l.b16 %v147
      %v292 = vunpack.c.l.b16 %v148
      %v293 = vunpack.c.l.b16 %v149
      %v294 = vunpack.c.l.b16 %v150
      %v295 = vunpack.c.l.b16 %v151
      %v296 = vunpack.c.l.b16 %v152
      %v297 = vunpack.c.l.b16 %v153
      %v298 = vunpack.c.l.b16 %v154
      %v299 = vunpack.c.l.b16 %v155
      %v300 = vunpack.c.l.b16 %v156
      %v301 = vunpack.c.l.b16 %v157
      %v302 = vunpack.c.l.b16 %v158
      %v303 = vunpack.c.l.b16 %v159
      %v304 = vunpack.c.l.b16 %v160
      %v305 = vunpack.c.l.b16 %v161
      %v306 = vunpack.c.l.b16 %v162
      %v307 = vunpack.c.l.b16 %v163
      %v308 = vunpack.c.l.b16 %v164
      %v309 = vunpack.c.l.b16 %v165
      %v310 = vunpack.c.l.b16 %v166
      %v311 = vunpack.c.l.b16 %v167
      %v312 = vunpack.c.l.b16 %v168
      %v313 = vunpack.c.l.b16 %v169
      %v314 = vunpack.c.l.b16 %v170
      %v315 = vunpack.c.l.b16 %v171
      %v316 = vunpack.c.l.b16 %v172
      %v317 = vunpack.c.l.b16 %v173
      %v318 = vunpack.c.l.b16 %v174
      %v319 = vunpack.c.l.b16 %v175
      %v320 = vunpack.c.l.b16 %v176
      %v321 = vunpack.c.l.b16 %v177
      %v322 = vunpack.c.l.b16 %v178
      %v323 = vunpack.c.l.b16 %v179
      %v324 = vunpack.c.l.b16 %v180
      %v325 = vunpack.c.l.b16 %v181
      %v326 = vunpack.c.l.b16 %v182
      %v327 = vunpack.c.l.b16 %v183
      %v328 = vunpack.c.l.b16 %v184
      %v329 = vunpack.c.l.b16 %v185
      %v330 = vunpack.c.l.b16 %v186
      %v331 = vunpack.c.l.b16 %v187
      %v332 = vunpack.c.l.b16 %v188
      %v333 = vunpack.c.l.b16 %v189
      %v334 = vunpack.c.l.b16 %v190
      %v335 = vunpack.c.l.b16 %v191
      %v336 = vunpack.c.l.b16 %v192
      %v337 = vunpack.c.l.b16 %v193
      %v338 = vunpack.c.l.b16 %v194
      %v339 = vunpack.c.l.b16 %v195
      %v340 = vunpack.c.l.b16 %v196
      %v341 = vunpack.c.l.b16 %v197
      %v342 = vunpack.c.l.b16 %v198
      %v343 = vunpack.c.l.b16 %v199
      %v344 = vunpack.c.l.b16 %v200
      %v345 = vunpack.c.l.b16 %v201
      %v346 = vunpack.c.l.b16 %v202
      %v347 = vunpack.c.l.b16 %v203
      %v348 = vunpack.c.l.b16 %v204
      %v349 = vunpack.c.l.b16 %v205
      %v350 = vunpack.c.l.b16 %v206
      %v351 = vunpack.c.l.b16 %v207
      %v352 = vunpack.c.l.b16 %v208
      %v353 = vpack.c.b16 %v290, %v289
      %v354 = vpack.c.b16 %v292, %v291
      %v355 = vpack.c.b16 %v294, %v293
      %v356 = vpack.c.b16 %v296, %v295
      %v357 = vpack.c.b16 %v298, %v297
      %v358 = vpack.c.b16 %v300, %v299
      %v359 = vpack.c.b16 %v302, %v301
      %v360 = vpack.c.b16 %v304, %v303
      %v361 = vpack.c.b16 %v306, %v305
      %v362 = vpack.c.b16 %v308, %v307
      %v363 = vpack.c.b16 %v310, %v309
      %v364 = vpack.c.b16 %v312, %v311
      %v365 = vpack.c.b16 %v314, %v313
      %v366 = vpack.c.b16 %v316, %v315
      %v367 = vpack.c.b16 %v318, %v317
      %v368 = vpack.c.b16 %v320, %v319
      %v369 = vpack.c.b16 %v322, %v321
      %v370 = vpack.c.b16 %v324, %v323
      %v371 = vpack.c.b16 %v326, %v325
      %v372 = vpack.c.b16 %v328, %v327
      %v373 = vpack.c.b16 %v330, %v329
      %v374 = vpack.c.b16 %v332, %v331
      %v375 = vpack.c.b16 %v334, %v333
      %v376 = vpack.c.b16 %v336, %v335
      %v377 = vpack.c.b16 %v338, %v337
      %v378 = vpack.c.b16 %v340, %v339
      %v379 = vpack.c.b16 %v342, %v341
      %v380 = vpack.c.b16 %v344, %v343
      %v381 = vpack.c.b16 %v346, %v345
      %v382 = vpack.c.b16 %v348, %v347
      %v383 = vpack.c.b16 %v350, %v349
      %v384 = vpack.c.b16 %v352, %v351
      %v433 = vunpack.c.l.b16 %v209
      %v434 = vunpack.c.l.b16 %v210
      %v435 = vunpack.c.l.b16 %v211
      %v436 = vunpack.c.l.b16 %v212
      %v437 = vunpack.c.l.b16 %v213
      %v438 = vunpack.c.l.b16 %v214
      %v439 = vunpack.c.l.b16 %v215
      %v440 = vunpack.c.l.b16 %v216
      %v441 = vunpack.c.l.b16 %v217
      %v442 = vunpack.c.l.b16 %v218
      %v443 = vunpack.c.l.b16 %v219
      %v444 = vunpack.c.l.b16 %v220
      %v445 = vunpack.c.l.b16 %v221
      %v446 = vunpack.c.l.b16 %v222
      %v447 = vunpack.c.l.b16 %v223
      %v448 = vunpack.c.l.b16 %v224
      %v449 = vpack.c.b16 %v434, %v433
      %v450 = vpack.c.b16 %v436, %v435
      %v451 = vpack.c.b16 %v438, %v437
      %v452 = vpack.c.b16 %v440, %v439
      %v453 = vpack.c.b16 %v442, %v441
      %v454 = vpack.c.b16 %v444, %v443
      %v455 = vpack.c.b16 %v446, %v445
      %v456 = vpack.c.b16 %v448, %v447
      %465 = vmatprep.subr.bf16.mxu0 0
      %466 = vmatpush1.bf16.msra.mxu0 %v449
      %467 = vmatprep.subr.bf16.mxu0 0
      %468 = vmatpush1.bf16.msra.mxu0 %v450
      %469 = vmatprep.subr.bf16.mxu0 0
      %470 = vmatpush1.bf16.msra.mxu0 %v451
      %471 = vmatprep.subr.bf16.mxu0 0
      %472 = vmatpush1.bf16.msra.mxu0 %v452
      %473 = vmatprep.subr.bf16.mxu0 0
      %474 = vmatpush1.bf16.msra.mxu0 %v453
      %475 = vmatprep.subr.bf16.mxu0 0
      %476 = vmatpush1.bf16.msra.mxu0 %v454
      %477 = vmatprep.subr.bf16.mxu0 0
      %478 = vmatpush1.bf16.msra.mxu0 %v455
      %479 = vmatprep.subr.bf16.mxu0 0
      %480 = vmatpush1.bf16.msra.mxu0 %v456
      %481 = vmatprep.subr.bf16.mxu0 0
      %482 = vmatpush1.bf16.msra.mxu0 0
      %483 = vmatprep.subr.bf16.mxu0 0
      %484 = vmatpush1.bf16.msra.mxu0 0
      %485 = vmatprep.subr.bf16.mxu0 0
      %486 = vmatpush1.bf16.msra.mxu0 0
      %487 = vmatprep.subr.bf16.mxu0 0
      %488 = vmatpush1.bf16.msra.mxu0 0
      %489 = vmatprep.subr.bf16.mxu0 0
      %490 = vmatpush1.bf16.msra.mxu0 0
      %491 = vmatprep.subr.bf16.mxu0 0
      %492 = vmatpush1.bf16.msra.mxu0 0
      %493 = vmatprep.subr.bf16.mxu0 0
      %494 = vmatpush1.bf16.msra.mxu0 0
      %495 = vmatprep.subr.bf16.mxu0 0
      %496 = vmatpush1.bf16.msra.mxu0 0
      %497 = vmatprep.mubr.bf16.mxu0 0
      %498 = vmatmul.mubr.bf16.gmra.mrb[0].mxu0 %v353
      %v499 = vpop.f32.mrb[0].mxu0
      %v500 = vadd.f32 0.0, %v499
      %v501 = vpop.f32.mrb[0].mxu0
      %v502 = vpop.f32.mrb[0].mxu0
      %v503 = vadd.f32 0.0, %v502
      %v504 = vpop.f32.mrb[0].mxu0
      %505 = vmatprep.mubr.bf16.mxu0 0
      %506 = vmatmul.mubr.bf16.gmra.mrb[0].mxu0 %v354
      %v507 = vpop.f32.mrb[0].mxu0
      %v508 = vadd.f32 0.0, %v507
      %v509 = vpop.f32.mrb[0].mxu0
      %v510 = vpop.f32.mrb[0].mxu0
      %v511 = vadd.f32 0.0, %v510
      %v512 = vpop.f32.mrb[0].mxu0
      %513 = vmatprep.mubr.bf16.mxu0 0
      %514 = vmatmul.mubr.bf16.gmra.mrb[0].mxu0 %v355
      %v515 = vpop.f32.mrb[0].mxu0
      %v516 = vadd.f32 0.0, %v515
      %v517 = vpop.f32.mrb[0].mxu0
      %v518 = vpop.f32.mrb[0].mxu0
      %v519 = vadd.f32 0.0, %v518
      %v520 = vpop.f32.mrb[0].mxu0
      %521 = vmatprep.mubr.bf16.mxu0 0
      %522 = vmatmul.mubr.bf16.gmra.mrb[0].mxu0 %v356
      %v523 = vpop.f32.mrb[0].mxu0
      %v524 = vadd.f32 0.0, %v523
      %v525 = vpop.f32.mrb[0].mxu0
      %v526 = vpop.f32.mrb[0].mxu0
      %v527 = vadd.f32 0.0, %v526
      %v528 = vpop.f32.mrb[0].mxu0
      %529 = vmatprep.mubr.bf16.mxu0 0
      %530 = vmatmul.mubr.bf16.gmra.mrb[0].mxu0 %v357
      %v531 = vpop.f32.mrb[0].mxu0
      %v532 = vadd.f32 0.0, %v531
      %v533 = vpop.f32.mrb[0].mxu0
      %v534 = vpop.f32.mrb[0].mxu0
      %v535 = vadd.f32 0.0, %v534
      %v536 = vpop.f32.mrb[0].mxu0
      %537 = vmatprep.mubr.bf16.mxu0 0
      %538 = vmatmul.mubr.bf16.gmra.mrb[0].mxu0 %v358
      %v539 = vpop.f32.mrb[0].mxu0
      %v540 = vadd.f32 0.0, %v539
      %v541 = vpop.f32.mrb[0].mxu0
      %v542 = vpop.f32.mrb[0].mxu0
      %v543 = vadd.f32 0.0, %v542
      %v544 = vpop.f32.mrb[0].mxu0
      %545 = vmatprep.mubr.bf16.mxu0 0
      %546 = vmatmul.mubr.bf16.gmra.mrb[0].mxu0 %v359
      %v547 = vpop.f32.mrb[0].mxu0
      %v548 = vadd.f32 0.0, %v547
      %v549 = vpop.f32.mrb[0].mxu0
      %v550 = vpop.f32.mrb[0].mxu0
      %v551 = vadd.f32 0.0, %v550
      %v552 = vpop.f32.mrb[0].mxu0
      %553 = vmatprep.mubr.bf16.mxu0 0
      %554 = vmatmul.mubr.bf16.gmra.mrb[0].mxu0 %v360
      %v555 = vpop.f32.mrb[0].mxu0
      %v556 = vadd.f32 0.0, %v555
      %v557 = vpop.f32.mrb[0].mxu0
      %v558 = vpop.f32.mrb[0].mxu0
      %v559 = vadd.f32 0.0, %v558
      %v560 = vpop.f32.mrb[0].mxu0
      %561 = vmatprep.mubr.bf16.mxu0 0
      %562 = vmatmul.mubr.bf16.gmra.mrb[0].mxu0 %v361
      %v563 = vpop.f32.mrb[0].mxu0
      %v564 = vadd.f32 0.0, %v563
      %v565 = vpop.f32.mrb[0].mxu0
      %v566 = vpop.f32.mrb[0].mxu0
      %v567 = vadd.f32 0.0, %v566
      %v568 = vpop.f32.mrb[0].mxu0
      %569 = vmatprep.mubr.bf16.mxu0 0
      %570 = vmatmul.mubr.bf16.gmra.mrb[0].mxu0 %v362
      %v571 = vpop.f32.mrb[0].mxu0
      %v572 = vadd.f32 0.0, %v571
      %v573 = vpop.f32.mrb[0].mxu0
      %v574 = vpop.f32.mrb[0].mxu0
      %v575 = vadd.f32 0.0, %v574
      %v576 = vpop.f32.mrb[0].mxu0
      %577 = vmatprep.mubr.bf16.mxu0 0
      %578 = vmatmul.mubr.bf16.gmra.mrb[0].mxu0 %v363
      %v579 = vpop.f32.mrb[0].mxu0
      %v580 = vadd.f32 0.0, %v579
      %v581 = vpop.f32.mrb[0].mxu0
      %v582 = vpop.f32.mrb[0].mxu0
      %v583 = vadd.f32 0.0, %v582
      %v584 = vpop.f32.mrb[0].mxu0
      %585 = vmatprep.mubr.bf16.mxu0 0
      %586 = vmatmul.mubr.bf16.gmra.mrb[0].mxu0 %v364
      %v587 = vpop.f32.mrb[0].mxu0
      %v588 = vadd.f32 0.0, %v587
      %v589 = vpop.f32.mrb[0].mxu0
      %v590 = vpop.f32.mrb[0].mxu0
      %v591 = vadd.f32 0.0, %v590
      %v592 = vpop.f32.mrb[0].mxu0
      %593 = vmatprep.mubr.bf16.mxu0 0
      %594 = vmatmul.mubr.bf16.gmra.mrb[0].mxu0 %v365
      %v595 = vpop.f32.mrb[0].mxu0
      %v596 = vadd.f32 0.0, %v595
      %v597 = vpop.f32.mrb[0].mxu0
      %v598 = vpop.f32.mrb[0].mxu0
      %v599 = vadd.f32 0.0, %v598
      %v600 = vpop.f32.mrb[0].mxu0
      %601 = vmatprep.mubr.bf16.mxu0 0
      %602 = vmatmul.mubr.bf16.gmra.mrb[0].mxu0 %v366
      %v603 = vpop.f32.mrb[0].mxu0
      %v604 = vadd.f32 0.0, %v603
      %v605 = vpop.f32.mrb[0].mxu0
      %v606 = vpop.f32.mrb[0].mxu0
      %v607 = vadd.f32 0.0, %v606
      %v608 = vpop.f32.mrb[0].mxu0
      %609 = vmatprep.mubr.bf16.mxu0 0
      %610 = vmatmul.mubr.bf16.gmra.mrb[0].mxu0 %v367
      %v611 = vpop.f32.mrb[0].mxu0
      %v612 = vadd.f32 0.0, %v611
      %v613 = vpop.f32.mrb[0].mxu0
      %v614 = vpop.f32.mrb[0].mxu0
      %v615 = vadd.f32 0.0, %v614
      %v616 = vpop.f32.mrb[0].mxu0
      %617 = vmatprep.mubr.bf16.mxu0 0
      %618 = vmatmul.mubr.bf16.gmra.mrb[0].mxu0 %v368
      %v619 = vpop.f32.mrb[0].mxu0
      %v620 = vadd.f32 0.0, %v619
      %v621 = vpop.f32.mrb[0].mxu0
      %v622 = vpop.f32.mrb[0].mxu0
      %v623 = vadd.f32 0.0, %v622
      %v624 = vpop.f32.mrb[0].mxu0
      %625 = vmatprep.mubr.bf16.mxu0 0
      %626 = vmatmul.mubr.bf16.gmra.mrb[0].mxu0 %v369
      %v627 = vpop.f32.mrb[0].mxu0
      %v628 = vadd.f32 0.0, %v627
      %v629 = vpop.f32.mrb[0].mxu0
      %v630 = vpop.f32.mrb[0].mxu0
      %v631 = vadd.f32 0.0, %v630
      %v632 = vpop.f32.mrb[0].mxu0
      %633 = vmatprep.mubr.bf16.mxu0 0
      %634 = vmatmul.mubr.bf16.gmra.mrb[0].mxu0 %v370
      %v635 = vpop.f32.mrb[0].mxu0
      %v636 = vadd.f32 0.0, %v635
      %v637 = vpop.f32.mrb[0].mxu0
      %v638 = vpop.f32.mrb[0].mxu0
      %v639 = vadd.f32 0.0, %v638
      %v640 = vpop.f32.mrb[0].mxu0
      %641 = vmatprep.mubr.bf16.mxu0 0
      %642 = vmatmul.mubr.bf16.gmra.mrb[0].mxu0 %v371
      %v643 = vpop.f32.mrb[0].mxu0
      %v644 = vadd.f32 0.0, %v643
      %v645 = vpop.f32.mrb[0].mxu0
      %v646 = vpop.f32.mrb[0].mxu0
      %v647 = vadd.f32 0.0, %v646
      %v648 = vpop.f32.mrb[0].mxu0
      %649 = vmatprep.mubr.bf16.mxu0 0
      %650 = vmatmul.mubr.bf16.gmra.mrb[0].mxu0 %v372
      %v651 = vpop.f32.mrb[0].mxu0
      %v652 = vadd.f32 0.0, %v651
      %v653 = vpop.f32.mrb[0].mxu0
      %v654 = vpop.f32.mrb[0].mxu0
      %v655 = vadd.f32 0.0, %v654
      %v656 = vpop.f32.mrb[0].mxu0
      %657 = vmatprep.mubr.bf16.mxu0 0
      %658 = vmatmul.mubr.bf16.gmra.mrb[0].mxu0 %v373
      %v659 = vpop.f32.mrb[0].mxu0
      %v660 = vadd.f32 0.0, %v659
      %v661 = vpop.f32.mrb[0].mxu0
      %v662 = vpop.f32.mrb[0].mxu0
      %v663 = vadd.f32 0.0, %v662
      %v664 = vpop.f32.mrb[0].mxu0
      %665 = vmatprep.mubr.bf16.mxu0 0
      %666 = vmatmul.mubr.bf16.gmra.mrb[0].mxu0 %v374
      %v667 = vpop.f32.mrb[0].mxu0
      %v668 = vadd.f32 0.0, %v667
      %v669 = vpop.f32.mrb[0].mxu0
      %v670 = vpop.f32.mrb[0].mxu0
      %v671 = vadd.f32 0.0, %v670
      %v672 = vpop.f32.mrb[0].mxu0
      %673 = vmatprep.mubr.bf16.mxu0 0
      %674 = vmatmul.mubr.bf16.gmra.mrb[0].mxu0 %v375
      %v675 = vpop.f32.mrb[0].mxu0
      %v676 = vadd.f32 0.0, %v675
      %v677 = vpop.f32.mrb[0].mxu0
      %v678 = vpop.f32.mrb[0].mxu0
      %v679 = vadd.f32 0.0, %v678
      %v680 = vpop.f32.mrb[0].mxu0
      %681 = vmatprep.mubr.bf16.mxu0 0
      %682 = vmatmul.mubr.bf16.gmra.mrb[0].mxu0 %v376
      %v683 = vpop.f32.mrb[0].mxu0
      %v684 = vadd.f32 0.0, %v683
      %v685 = vpop.f32.mrb[0].mxu0
      %v686 = vpop.f32.mrb[0].mxu0
      %v687 = vadd.f32 0.0, %v686
      %v688 = vpop.f32.mrb[0].mxu0
      %689 = vmatprep.mubr.bf16.mxu0 0
      %690 = vmatmul.mubr.bf16.gmra.mrb[0].mxu0 %v377
      %v691 = vpop.f32.mrb[0].mxu0
      %v692 = vadd.f32 0.0, %v691
      %v693 = vpop.f32.mrb[0].mxu0
      %v694 = vpop.f32.mrb[0].mxu0
      %v695 = vadd.f32 0.0, %v694
      %v696 = vpop.f32.mrb[0].mxu0
      %697 = vmatprep.mubr.bf16.mxu0 0
      %698 = vmatmul.mubr.bf16.gmra.mrb[0].mxu0 %v378
      %v699 = vpop.f32.mrb[0].mxu0
      %v700 = vadd.f32 0.0, %v699
      %v701 = vpop.f32.mrb[0].mxu0
      %v702 = vpop.f32.mrb[0].mxu0
      %v703 = vadd.f32 0.0, %v702
      %v704 = vpop.f32.mrb[0].mxu0
      %705 = vmatprep.mubr.bf16.mxu0 0
      %706 = vmatmul.mubr.bf16.gmra.mrb[0].mxu0 %v379
      %v707 = vpop.f32.mrb[0].mxu0
      %v708 = vadd.f32 0.0, %v707
      %v709 = vpop.f32.mrb[0].mxu0
      %v710 = vpop.f32.mrb[0].mxu0
      %v711 = vadd.f32 0.0, %v710
      %v712 = vpop.f32.mrb[0].mxu0
      %713 = vmatprep.mubr.bf16.mxu0 0
      %714 = vmatmul.mubr.bf16.gmra.mrb[0].mxu0 %v380
      %v715 = vpop.f32.mrb[0].mxu0
      %v716 = vadd.f32 0.0, %v715
      %v717 = vpop.f32.mrb[0].mxu0
      %v718 = vpop.f32.mrb[0].mxu0
      %v719 = vadd.f32 0.0, %v718
      %v720 = vpop.f32.mrb[0].mxu0
      %721 = vmatprep.mubr.bf16.mxu0 0
      %722 = vmatmul.mubr.bf16.gmra.mrb[0].mxu0 %v381
      %v723 = vpop.f32.mrb[0].mxu0
      %v724 = vadd.f32 0.0, %v723
      %v725 = vpop.f32.mrb[0].mxu0
      %v726 = vpop.f32.mrb[0].mxu0
      %v727 = vadd.f32 0.0, %v726
      %v728 = vpop.f32.mrb[0].mxu0
      %729 = vmatprep.mubr.bf16.mxu0 0
      %730 = vmatmul.mubr.bf16.gmra.mrb[0].mxu0 %v382
      %v731 = vpop.f32.mrb[0].mxu0
      %v732 = vadd.f32 0.0, %v731
      %v733 = vpop.f32.mrb[0].mxu0
      %v734 = vpop.f32.mrb[0].mxu0
      %v735 = vadd.f32 0.0, %v734
      %v736 = vpop.f32.mrb[0].mxu0
      %737 = vmatprep.mubr.bf16.mxu0 0
      %738 = vmatmul.mubr.bf16.gmra.mrb[0].mxu0 %v383
      %v739 = vpop.f32.mrb[0].mxu0
      %v740 = vadd.f32 0.0, %v739
      %v741 = vpop.f32.mrb[0].mxu0
      %v742 = vpop.f32.mrb[0].mxu0
      %v743 = vadd.f32 0.0, %v742
      %v744 = vpop.f32.mrb[0].mxu0
      %745 = vmatprep.mubr.bf16.mxu0 0
      %746 = vmatmul.mubr.bf16.gmra.mrb[0].mxu0 %v384
      %v747 = vpop.f32.mrb[0].mxu0
      %v748 = vadd.f32 0.0, %v747
      %v749 = vpop.f32.mrb[0].mxu0
      %v750 = vpop.f32.mrb[0].mxu0
      %v751 = vadd.f32 0.0, %v750
      %v752 = vpop.f32.mrb[0].mxu0
      %753 = vdwg.mxu0
      %v754 = vadd.f32 %v500, %v503
      %v755 = vadd.f32 %v754, %v508
      %v756 = vadd.f32 %v755, %v511
      %v757 = vadd.f32 %v756, %v516
      %v758 = vadd.f32 %v757, %v519
      %v759 = vadd.f32 %v758, %v524
      %v760 = vadd.f32 %v759, %v527
      %v761 = vadd.f32 %v760, %v532
      %v762 = vadd.f32 %v761, %v535
      %v763 = vadd.f32 %v762, %v540
      %v764 = vadd.f32 %v763, %v543
      %v765 = vadd.f32 %v764, %v548
      %v766 = vadd.f32 %v765, %v551
      %v767 = vadd.f32 %v766, %v556
      %v768 = vadd.f32 %v767, %v559
      %v769 = vadd.f32 %v768, %v564
      %v770 = vadd.f32 %v769, %v567
      %v771 = vadd.f32 %v770, %v572
      %v772 = vadd.f32 %v771, %v575
      %v773 = vadd.f32 %v772, %v580
      %v774 = vadd.f32 %v773, %v583
      %v775 = vadd.f32 %v774, %v588
      %v776 = vadd.f32 %v775, %v591
      %v777 = vadd.f32 %v776, %v596
      %v778 = vadd.f32 %v777, %v599
      %v779 = vadd.f32 %v778, %v604
      %v780 = vadd.f32 %v779, %v607
      %v781 = vadd.f32 %v780, %v612
      %v782 = vadd.f32 %v781, %v615
      %v783 = vadd.f32 %v782, %v620
      %v784 = vadd.f32 %v783, %v623
      %v785 = vadd.f32 %v784, %v628
      %v786 = vadd.f32 %v785, %v631
      %v787 = vadd.f32 %v786, %v636
      %v788 = vadd.f32 %v787, %v639
      %v789 = vadd.f32 %v788, %v644
      %v790 = vadd.f32 %v789, %v647
      %v791 = vadd.f32 %v790, %v652
      %v792 = vadd.f32 %v791, %v655
      %v793 = vadd.f32 %v792, %v660
      %v794 = vadd.f32 %v793, %v663
      %v795 = vadd.f32 %v794, %v668
      %v796 = vadd.f32 %v795, %v671
      %v797 = vadd.f32 %v796, %v676
      %v798 = vadd.f32 %v797, %v679
      %v799 = vadd.f32 %v798, %v684
      %v800 = vadd.f32 %v799, %v687
      %v801 = vadd.f32 %v800, %v692
      %v802 = vadd.f32 %v801, %v695
      %v803 = vadd.f32 %v802, %v700
      %v804 = vadd.f32 %v803, %v703
      %v805 = vadd.f32 %v804, %v708
      %v806 = vadd.f32 %v805, %v711
      %v807 = vadd.f32 %v806, %v716
      %v808 = vadd.f32 %v807, %v719
      %v809 = vadd.f32 %v808, %v724
      %v810 = vadd.f32 %v809, %v727
      %v811 = vadd.f32 %v810, %v732
      %v812 = vadd.f32 %v811, %v735
      %v813 = vadd.f32 %v812, %v740
      %v814 = vadd.f32 %v813, %v743
      %v815 = vadd.f32 %v814, %v748
      %v816 = vadd.f32 %v815, %v751
      %v817 = vrot.slane %v816, 4
      %v818 = vadd.f32 %v816, %v817
      %v819 = vrot.slane %v818, 2
      %v820 = vadd.f32 %v818, %v819
      %v821 = vrot.slane %v820, 1
      %v822 = vadd.f32 %v820, %v821
      %823 = vst [vmem:[%s143] sm:$0x1] %v822
      %v824 = vmul.f32 %v500, %v500
      %v825 = vmul.f32 %v503, %v503
      %v826 = vmul.f32 %v508, %v508
      %v827 = vmul.f32 %v511, %v511
      %v828 = vmul.f32 %v516, %v516
      %v829 = vmul.f32 %v519, %v519
      %v830 = vmul.f32 %v524, %v524
      %v831 = vmul.f32 %v527, %v527
      %v832 = vmul.f32 %v532, %v532
      %v833 = vmul.f32 %v535, %v535
      %v834 = vmul.f32 %v540, %v540
      %v835 = vmul.f32 %v543, %v543
      %v836 = vmul.f32 %v548, %v548
      %v837 = vmul.f32 %v551, %v551
      %v838 = vmul.f32 %v556, %v556
      %v839 = vmul.f32 %v559, %v559
      %v840 = vmul.f32 %v564, %v564
      %v841 = vmul.f32 %v567, %v567
      %v842 = vmul.f32 %v572, %v572
      %v843 = vmul.f32 %v575, %v575
      %v844 = vmul.f32 %v580, %v580
      %v845 = vmul.f32 %v583, %v583
      %v846 = vmul.f32 %v588, %v588
      %v847 = vmul.f32 %v591, %v591
      %v848 = vmul.f32 %v596, %v596
      %v849 = vmul.f32 %v599, %v599
      %v850 = vmul.f32 %v604, %v604
      %v851 = vmul.f32 %v607, %v607
      %v852 = vmul.f32 %v612, %v612
      %v853 = vmul.f32 %v615, %v615
      %v854 = vmul.f32 %v620, %v620
      %v855 = vmul.f32 %v623, %v623
      %v856 = vmul.f32 %v628, %v628
      %v857 = vmul.f32 %v631, %v631
      %v858 = vmul.f32 %v636, %v636
      %v859 = vmul.f32 %v639, %v639
      %v860 = vmul.f32 %v644, %v644
      %v861 = vmul.f32 %v647, %v647
      %v862 = vmul.f32 %v652, %v652
      %v863 = vmul.f32 %v655, %v655
      %v864 = vmul.f32 %v660, %v660
      %v865 = vmul.f32 %v663, %v663
      %v866 = vmul.f32 %v668, %v668
      %v867 = vmul.f32 %v671, %v671
      %v868 = vmul.f32 %v676, %v676
      %v869 = vmul.f32 %v679, %v679
      %v870 = vmul.f32 %v684, %v684
      %v871 = vmul.f32 %v687, %v687
      %v872 = vmul.f32 %v692, %v692
      %v873 = vmul.f32 %v695, %v695
      %v874 = vmul.f32 %v700, %v700
      %v875 = vmul.f32 %v703, %v703
      %v876 = vmul.f32 %v708, %v708
      %v877 = vmul.f32 %v711, %v711
      %v878 = vmul.f32 %v716, %v716
      %v879 = vmul.f32 %v719, %v719
      %v880 = vmul.f32 %v724, %v724
      %v881 = vmul.f32 %v727, %v727
      %v882 = vmul.f32 %v732, %v732
      %v883 = vmul.f32 %v735, %v735
      %v884 = vmul.f32 %v740, %v740
      %v885 = vmul.f32 %v743, %v743
      %v886 = vmul.f32 %v748, %v748
      %v887 = vmul.f32 %v751, %v751
      %v888 = vadd.f32 %v824, %v825
      %v889 = vadd.f32 %v888, %v826
      %v890 = vadd.f32 %v889, %v827
      %v891 = vadd.f32 %v890, %v828
      %v892 = vadd.f32 %v891, %v829
      %v893 = vadd.f32 %v892, %v830
      %v894 = vadd.f32 %v893, %v831
      %v895 = vadd.f32 %v894, %v832
      %v896 = vadd.f32 %v895, %v833
      %v897 = vadd.f32 %v896, %v834
      %v898 = vadd.f32 %v897, %v835
      %v899 = vadd.f32 %v898, %v836
      %v900 = vadd.f32 %v899, %v837
      %v901 = vadd.f32 %v900, %v838
      %v902 = vadd.f32 %v901, %v839
      %v903 = vadd.f32 %v902, %v840
      %v904 = vadd.f32 %v903, %v841
      %v905 = vadd.f32 %v904, %v842
      %v906 = vadd.f32 %v905, %v843
      %v907 = vadd.f32 %v906, %v844
      %v908 = vadd.f32 %v907, %v845
      %v909 = vadd.f32 %v908, %v846
      %v910 = vadd.f32 %v909, %v847
      %v911 = vadd.f32 %v910, %v848
      %v912 = vadd.f32 %v911, %v849
      %v913 = vadd.f32 %v912, %v850
      %v914 = vadd.f32 %v913, %v851
      %v915 = vadd.f32 %v914, %v852
      %v916 = vadd.f32 %v915, %v853
      %v917 = vadd.f32 %v916, %v854
      %v918 = vadd.f32 %v917, %v855
      %v919 = vadd.f32 %v918, %v856
      %v920 = vadd.f32 %v919, %v857
      %v921 = vadd.f32 %v920, %v858
      %v922 = vadd.f32 %v921, %v859
      %v923 = vadd.f32 %v922, %v860
      %v924 = vadd.f32 %v923, %v861
      %v925 = vadd.f32 %v924, %v862
      %v926 = vadd.f32 %v925, %v863
      %v927 = vadd.f32 %v926, %v864
      %v928 = vadd.f32 %v927, %v865
      %v929 = vadd.f32 %v928, %v866
      %v930 = vadd.f32 %v929, %v867
      %v931 = vadd.f32 %v930, %v868
      %v932 = vadd.f32 %v931, %v869
      %v933 = vadd.f32 %v932, %v870
      %v934 = vadd.f32 %v933, %v871
      %v935 = vadd.f32 %v934, %v872
      %v936 = vadd.f32 %v935, %v873
      %v937 = vadd.f32 %v936, %v874
      %v938 = vadd.f32 %v937, %v875
      %v939 = vadd.f32 %v938, %v876
      %v940 = vadd.f32 %v939, %v877
      %v941 = vadd.f32 %v940, %v878
      %v942 = vadd.f32 %v941, %v879
      %v943 = vadd.f32 %v942, %v880
      %v944 = vadd.f32 %v943, %v881
      %v945 = vadd.f32 %v944, %v882
      %v946 = vadd.f32 %v945, %v883
      %v947 = vadd.f32 %v946, %v884
      %v948 = vadd.f32 %v947, %v885
      %v949 = vadd.f32 %v948, %v886
      %v950 = vadd.f32 %v949, %v887
      %v951 = vrot.slane %v950, 4
      %v952 = vadd.f32 %v950, %v951
      %v953 = vrot.slane %v952, 2
      %v954 = vadd.f32 %v952, %v953
      %v955 = vrot.slane %v954, 1
      %v956 = vadd.f32 %v954, %v955
      %957 = vst [vmem:[%s143 + $0x1] sm:$0x1] %v956
      %p958 = scmp.lt.s32.totalorder %s13, 1
      %s959 = scalar_select %p958, %s13, 1
      %s960 = smul.addr %s959, 2
      %s961 = scalar_lea.vmem %s2, %s960
      // Predicated region
      $region29: #{basic_block_forward.4} parent=27 // pred_check
        %p962 = pneg %p78
      $region30: #{basic_block_forward.4} parent=27 // pred_check_branch
        %964 = sbr.rel (%p962) target = $region32
      $region31: #{basic_block_forward.4} parent=27 // pred_region
        _
      $region32: #{basic_block_forward.4} parent=27 // pred_fallthru
        _
    $region28: #{basic_block_forward.4} parent=5 // pred_fallthru
      _
    %p965 = scmp.le.s32.totalorder 2, %s8
    // Predicated region
    $region33: #{basic_block_forward.4} parent=5 // pred_check
      %p966 = pneg %p965
    $region34: #{basic_block_forward.4} parent=5 // pred_check_branch
      %968 = sbr.rel (%p966) target = $region36
    $region35: #{basic_block_forward.4} parent=5 // pred_region
      %s969 = ssub.s32 %s8, 2
      // Predicated region
      $region37: #{basic_block_forward.4} parent=35 // pred_check
        %p970 = pneg %p84
      $region38: #{basic_block_forward.4} parent=35 // pred_check_branch
        %972 = sbr.rel (%p970) target = $region40
      $region39: #{basic_block_forward.4} parent=35 // pred_region
        %p973 = scmp.lt.s32.totalorder %s14, 1
        %s974 = scalar_select %p973, %s14, 1
        %s975 = smul.addr %s974, 2
        %s976 = scalar_lea.vmem %s2, %s975
      $region40: #{basic_block_forward.4} parent=35 // pred_fallthru
        _
    $region36: #{basic_block_forward.4} parent=5 // pred_fallthru
      _
  $region6: #{basic_block_forward.4} parent=0 // loop_footer
    %s12 = sadd.s32 1, %s8
  $region7: #{basic_block_forward.4} parent=0 // loop_footer_branch
    %7 = sbr.rel target = $region3
  $region8: #{basic_block_forward.4} parent=0 // loop_exit
    _

// kernel: basic_block_forward.5
$region0: #{basic_block_forward.5}
  #allocation0 [shape = 'u32[]', space=smem, size = 0x4, offset = 0x4, fixed_abs, tag = 'smem constant byte address 0x4 - core index']
  #allocation1 [shape = 'u32[144,128]{1,0:T(1,128)}', space=vmem, size = 0x12000, scoped, tag = 'internal scratch']
  %s0 = inlined_call_operand.vmem [shape: bf16[1024,128], index: 0, kind: input, shape index: {}]
  %s1 = inlined_call_operand.vmem [shape: bf16[128,128], index: 1, kind: input, shape index: {}]
  %s2 = inlined_call_operand.vmem [shape: f32[2,2,128], index: 2, kind: input, shape index: {}]
  %s3 = inlined_call_operand.vmem [shape: f32[1,128], index: 3, kind: input, shape index: {}]
  %s4 = inlined_call_operand.vmem [shape: f32[1,128], index: 4, kind: input, shape index: {}]
  %s5 = inlined_call_operand.vmem [shape: bf16[1024,128], index: 5, kind: output, shape index: {}]
  %s6 = sld [smem:[#allocation0]]
  $region53: #{basic_block_forward.5} parent=0
    _
  %s8 = ssub.s32 1, %s6
  %s9 = scalar_select 0, %s8, %s6
  loop: start=0, step=1, limit=4
  $region2: #{basic_block_forward.5} parent=0 // loop_pre_header
    _
  $region3: #{basic_block_forward.5} parent=0 // loop_header
    %s11 = sphi 0, %s15
    %p12 = scmp.ge.s32.totalorder %s11, 4
    %s21 = sphi 0, %s23
    %s24 = sphi 0, %s21
    %s25 = sphi 0, %s24
    %s41 = sphi 0, %s25
    %s45 = sphi 0, %s45
    %s47 = sphi 0, %s45
    %s48 = sphi 0, %s47
    %s62 = sphi 0, %s48
    %s66 = sphi 0, %s66
    %s68 = sphi 0, %s66
    %s69 = sphi 0, %s68
    %s83 = sphi 0, %s69
    %s87 = sphi 0, %s87
    %s89 = sphi 0, %s87
    %s90 = sphi 0, %s89
    %s104 = sphi 0, %s90
    %s108 = sphi 0, %s108
    %s110 = sphi 0, %s108
    %s111 = sphi 0, %s110
    %s125 = sphi 0, %s111
    %s131 = sphi 0, %s133
    %s134 = sphi 0, %s131
    %s135 = sphi 0, %s134
    %s151 = sphi 0, %s135
  $region4: #{basic_block_forward.5} parent=0 // loop_header_branch
    %14 = sbr.rel (%p12) target = $region8
  $region5: #{basic_block_forward.5} parent=0 // loop_body
    %s16 = ssub.s32 %s11, 1
    %s17 = ssub.s32 %s11, 2
    %s18 = sadd.s32 %s11, 1
    %s19 = ssub.s32 %s11, %s18
    %p20 = scmp.eq.s32.totalorder %s19, 0
    %s22 = sadd.s32 %s21, 1
    %s23 = scalar_select %p20, %s21, %s22
    %p26 = pneg %p20
    %p27 = scmp.eq.s32.totalorder %s11, 1
    %p28 = por %p26, %p27
    %p29 = scmp.ne.s32.totalorder %s21, %s24
    %p30 = scmp.eq.s32.totalorder %s11, 0
    %p31 = por %p29, %p30
    %p32 = scmp.ne.s32.totalorder %s21, %s24
    %p33 = scmp.eq.s32.totalorder %s16, 1
    %p34 = por %p32, %p33
    %p35 = scmp.ne.s32.totalorder %s24, %s25
    %p36 = scmp.eq.s32.totalorder %s16, 0
    %p37 = por %p35, %p36
    %p38 = scmp.ne.s32.totalorder %s24, %s25
    %p39 = scmp.eq.s32.totalorder %s17, 1
    %p40 = por %p38, %p39
    %p42 = scmp.ne.s32.totalorder %s25, %s41
    %p43 = scmp.eq.s32.totalorder %s17, 0
    %p44 = por %p42, %p43
    %s46 = sadd.s32 %s45, 1
    %p49 = scmp.eq.s32.totalorder %s11, 1
    %p50 = scmp.ne.s32.totalorder %s45, %s47
    %p51 = scmp.eq.s32.totalorder %s11, 0
    %p52 = por %p50, %p51
    %p53 = scmp.ne.s32.totalorder %s45, %s47
    %p54 = scmp.eq.s32.totalorder %s16, 1
    %p55 = por %p53, %p54
    %p56 = scmp.ne.s32.totalorder %s47, %s48
    %p57 = scmp.eq.s32.totalorder %s16, 0
    %p58 = por %p56, %p57
    %p59 = scmp.ne.s32.totalorder %s47, %s48
    %p60 = scmp.eq.s32.totalorder %s17, 1
    %p61 = por %p59, %p60
    %p63 = scmp.ne.s32.totalorder %s48, %s62
    %p64 = scmp.eq.s32.totalorder %s17, 0
    %p65 = por %p63, %p64
    %s67 = sadd.s32 %s66, 1
    %p70 = scmp.eq.s32.totalorder %s11, 1
    %p71 = scmp.ne.s32.totalorder %s66, %s68
    %p72 = scmp.eq.s32.totalorder %s11, 0
    %p73 = por %p71, %p72
    %p74 = scmp.ne.s32.totalorder %s66, %s68
    %p75 = scmp.eq.s32.totalorder %s16, 1
    %p76 = por %p74, %p75
    %p77 = scmp.ne.s32.totalorder %s68, %s69
    %p78 = scmp.eq.s32.totalorder %s16, 0
    %p79 = por %p77, %p78
    %p80 = scmp.ne.s32.totalorder %s68, %s69
    %p81 = scmp.eq.s32.totalorder %s17, 1
    %p82 = por %p80, %p81
    %p84 = scmp.ne.s32.totalorder %s69, %s83
    %p85 = scmp.eq.s32.totalorder %s17, 0
    %p86 = por %p84, %p85
    %s88 = sadd.s32 %s87, 1
    %p91 = scmp.eq.s32.totalorder %s11, 1
    %p92 = scmp.ne.s32.totalorder %s87, %s89
    %p93 = scmp.eq.s32.totalorder %s11, 0
    %p94 = por %p92, %p93
    %p95 = scmp.ne.s32.totalorder %s87, %s89
    %p96 = scmp.eq.s32.totalorder %s16, 1
    %p97 = por %p95, %p96
    %p98 = scmp.ne.s32.totalorder %s89, %s90
    %p99 = scmp.eq.s32.totalorder %s16, 0
    %p100 = por %p98, %p99
    %p101 = scmp.ne.s32.totalorder %s89, %s90
    %p102 = scmp.eq.s32.totalorder %s17, 1
    %p103 = por %p101, %p102
    %p105 = scmp.ne.s32.totalorder %s90, %s104
    %p106 = scmp.eq.s32.totalorder %s17, 0
    %p107 = por %p105, %p106
    %s109 = sadd.s32 %s108, 1
    %p112 = scmp.eq.s32.totalorder %s11, 1
    %p113 = scmp.ne.s32.totalorder %s108, %s110
    %p114 = scmp.eq.s32.totalorder %s11, 0
    %p115 = por %p113, %p114
    %p116 = scmp.ne.s32.totalorder %s108, %s110
    %p117 = scmp.eq.s32.totalorder %s16, 1
    %p118 = por %p116, %p117
    %p119 = scmp.ne.s32.totalorder %s110, %s111
    %p120 = scmp.eq.s32.totalorder %s16, 0
    %p121 = por %p119, %p120
    %p122 = scmp.ne.s32.totalorder %s110, %s111
    %p123 = scmp.eq.s32.totalorder %s17, 1
    %p124 = por %p122, %p123
    %p126 = scmp.ne.s32.totalorder %s111, %s125
    %p127 = scmp.eq.s32.totalorder %s17, 0
    %p128 = por %p126, %p127
    %s129 = ssub.s32 %s11, %s18
    %p130 = scmp.eq.s32.totalorder %s129, 0
    %s132 = sadd.s32 %s131, 1
    %s133 = scalar_select %p130, %s131, %s132
    %p136 = pneg %p130
    %p137 = scmp.eq.s32.totalorder %s11, 1
    %p138 = por %p136, %p137
    %p139 = scmp.ne.s32.totalorder %s131, %s134
    %p140 = scmp.eq.s32.totalorder %s11, 0
    %p141 = por %p139, %p140
    %p142 = scmp.ne.s32.totalorder %s131, %s134
    %p143 = scmp.eq.s32.totalorder %s16, 1
    %p144 = por %p142, %p143
    %p145 = scmp.ne.s32.totalorder %s134, %s135
    %p146 = scmp.eq.s32.totalorder %s16, 0
    %p147 = por %p145, %p146
    %p148 = scmp.ne.s32.totalorder %s134, %s135
    %p149 = scmp.eq.s32.totalorder %s17, 1
    %p150 = por %p148, %p149
    %p152 = scmp.ne.s32.totalorder %s135, %s151
    %p153 = scmp.eq.s32.totalorder %s17, 0
    %p154 = por %p152, %p153
    %p155 = scmp.le.s32.totalorder 1, %s11
    %p156 = scmp.lt.s32.totalorder %s11, 3
    %p157 = pnand %p155, %p156
    %p158 = pneg %p157
    // Predicated region
    $region9: #{basic_block_forward.5} parent=5 // pred_check
      _
    $region10: #{basic_block_forward.5} parent=5 // pred_check_branch
      %160 = sbr.rel (%p157) target = $region12
    $region11: #{basic_block_forward.5} parent=5 // pred_region
      %s161 = ssub.s32 %s11, 1
      // Predicated region
      $region13: #{basic_block_forward.5} parent=11 // pred_check
        %p162 = pneg %p58
      $region14: #{basic_block_forward.5} parent=11 // pred_check_branch
        %164 = sbr.rel (%p162) target = $region16
      $region15: #{basic_block_forward.5} parent=11 // pred_region
        _
      $region16: #{basic_block_forward.5} parent=11 // pred_fallthru
        _
      // Predicated region
      $region17: #{basic_block_forward.5} parent=11 // pred_check
        %p165 = pneg %p79
      $region18: #{basic_block_forward.5} parent=11 // pred_check_branch
        %167 = sbr.rel (%p165) target = $region20
      $region19: #{basic_block_forward.5} parent=11 // pred_region
        _
      $region20: #{basic_block_forward.5} parent=11 // pred_fallthru
        _
      // Predicated region
      $region21: #{basic_block_forward.5} parent=11 // pred_check
        %p168 = pneg %p100
      $region22: #{basic_block_forward.5} parent=11 // pred_check_branch
        %170 = sbr.rel (%p168) target = $region24
      $region23: #{basic_block_forward.5} parent=11 // pred_region
        _
      $region24: #{basic_block_forward.5} parent=11 // pred_fallthru
        _
      // Predicated region
      $region25: #{basic_block_forward.5} parent=11 // pred_check
        %p171 = pneg %p121
      $region26: #{basic_block_forward.5} parent=11 // pred_check_branch
        %173 = sbr.rel (%p171) target = $region28
      $region27: #{basic_block_forward.5} parent=11 // pred_region
        _
      $region28: #{basic_block_forward.5} parent=11 // pred_fallthru
        _
    $region12: #{basic_block_forward.5} parent=5 // pred_fallthru
      _
    %p174 = scmp.lt.s32.totalorder %s11, 2
    // Predicated region
    $region29: #{basic_block_forward.5} parent=5 // pred_check
      %p175 = pneg %p174
    $region30: #{basic_block_forward.5} parent=5 // pred_check_branch
      %177 = sbr.rel (%p175) target = $region32
    $region31: #{basic_block_forward.5} parent=5 // pred_region
      // Predicated region
      $region33: #{basic_block_forward.5} parent=31 // pred_check
        %p178 = pneg %p31
      $region34: #{basic_block_forward.5} parent=31 // pred_check_branch
        %180 = sbr.rel (%p178) target = $region36
      $region35: #{basic_block_forward.5} parent=31 // pred_region
        %s181 = smul.u32 64, %s11
        %p182 = scmp.lt.s32.totalorder %s181, 127
        %s183 = scalar_select %p182, %s181, 127
        %s184 = smul.addr %s183, 4
        %s185 = scalar_lea.vmem %s0, %s184
        %s186 = smul.u32 64, %s11
      $region36: #{basic_block_forward.5} parent=31 // pred_fallthru
        _
    $region32: #{basic_block_forward.5} parent=5 // pred_fallthru
      _
    %p187 = scmp.le.s32.totalorder 1, %s11
    %p188 = scmp.lt.s32.totalorder %s11, 3
    %p189 = pnand %p187, %p188
    %p190 = pneg %p189
    // Predicated region
    $region37: #{basic_block_forward.5} parent=5 // pred_check
      _
    $region38: #{basic_block_forward.5} parent=5 // pred_check_branch
      %192 = sbr.rel (%p189) target = $region40
    $region39: #{basic_block_forward.5} parent=5 // pred_region
      %s193 = ssub.s32 %s11, 1
      %s194 = smul.u32 64, %s16
      %p195 = scmp.lt.s32.totalorder %s194, 127
      %s196 = scalar_select %p195, %s194, 127
      %s197 = smul.addr %s196, 4
      %s198 = scalar_lea.vmem %s0, %s197
      %p199 = pneg %p37
      %p200 = pneg %p34
      %p201 = pneg %p58
      %p202 = pneg %p55
      %p203 = pneg %p79
      %p204 = pneg %p76
      %p205 = pneg %p100
      %p206 = pneg %p97
      %p207 = pneg %p121
      %p208 = pneg %p118
      %p209 = pneg %p147
      %p210 = pneg %p144
      %s211 = smul.u32 64, %s16
      %p212 = scmp.lt.s32.totalorder %s211, 127
      %s213 = scalar_select %p212, %s211, 127
      %s214 = smul.addr %s213, 4
      %s215 = scalar_lea.vmem %s5, %s214
      %s216 = smul.u32 64, %s16
      %p217 = scmp.lt.s32.totalorder %s216, 127
      %s218 = scalar_select %p217, %s216, 127
      %s219 = smul.addr %s218, 4
      %s220 = scalar_lea.vmem %s0, %s219
      %s221 = smul.u32 64, %s16
      %s222 = smul.u32 64, %s16
      %p223 = scmp.lt.s32.totalorder %s222, 127
      %s224 = scalar_select %p223, %s222, 127
      %s225 = smul.addr %s224, 4
      %s226 = scalar_lea.vmem %s5, %s225
      %s227 = smul.u32 64, %s16
      %v229 = vld [vmem:[%s220] sm:$0xf]
      %v230 = vld [vmem:[%s220 + $0x4] sm:$0xf]
      %v231 = vld [vmem:[%s220 + $0x8] sm:$0xf]
      %v232 = vld [vmem:[%s220 + $0xc] sm:$0xf]
      %v233 = vld [vmem:[%s220 + $0x10] sm:$0xf]
      %v234 = vld [vmem:[%s220 + $0x14] sm:$0xf]
      %v235 = vld [vmem:[%s220 + $0x18] sm:$0xf]
      %v236 = vld [vmem:[%s220 + $0x1c] sm:$0xf]
      %v237 = vld [vmem:[%s220 + $0x20] sm:$0xf]
      %v238 = vld [vmem:[%s220 + $0x24] sm:$0xf]
      %v239 = vld [vmem:[%s220 + $0x28] sm:$0xf]
      %v240 = vld [vmem:[%s220 + $0x2c] sm:$0xf]
      %v241 = vld [vmem:[%s220 + $0x30] sm:$0xf]
      %v242 = vld [vmem:[%s220 + $0x34] sm:$0xf]
      %v243 = vld [vmem:[%s220 + $0x38] sm:$0xf]
      %v244 = vld [vmem:[%s220 + $0x3c] sm:$0xf]
      %v245 = vld [vmem:[%s220 + $0x40] sm:$0xf]
      %v246 = vld [vmem:[%s220 + $0x44] sm:$0xf]
      %v247 = vld [vmem:[%s220 + $0x48] sm:$0xf]
      %v248 = vld [vmem:[%s220 + $0x4c] sm:$0xf]
      %v249 = vld [vmem:[%s220 + $0x50] sm:$0xf]
      %v250 = vld [vmem:[%s220 + $0x54] sm:$0xf]
      %v251 = vld [vmem:[%s220 + $0x58] sm:$0xf]
      %v252 = vld [vmem:[%s220 + $0x5c] sm:$0xf]
      %v253 = vld [vmem:[%s220 + $0x60] sm:$0xf]
      %v254 = vld [vmem:[%s220 + $0x64] sm:$0xf]
      %v255 = vld [vmem:[%s220 + $0x68] sm:$0xf]
      %v256 = vld [vmem:[%s220 + $0x6c] sm:$0xf]
      %v257 = vld [vmem:[%s220 + $0x70] sm:$0xf]
      %v258 = vld [vmem:[%s220 + $0x74] sm:$0xf]
      %v259 = vld [vmem:[%s220 + $0x78] sm:$0xf]
      %v260 = vld [vmem:[%s220 + $0x7c] sm:$0xf]
      %v261 = vld [vmem:[%s220 + $0x80] sm:$0xf]
      %v262 = vld [vmem:[%s220 + $0x84] sm:$0xf]
      %v263 = vld [vmem:[%s220 + $0x88] sm:$0xf]
      %v264 = vld [vmem:[%s220 + $0x8c] sm:$0xf]
      %v265 = vld [vmem:[%s220 + $0x90] sm:$0xf]
      %v266 = vld [vmem:[%s220 + $0x94] sm:$0xf]
      %v267 = vld [vmem:[%s220 + $0x98] sm:$0xf]
      %v268 = vld [vmem:[%s220 + $0x9c] sm:$0xf]
      %v269 = vld [vmem:[%s220 + $0xa0] sm:$0xf]
      %v270 = vld [vmem:[%s220 + $0xa4] sm:$0xf]
      %v271 = vld [vmem:[%s220 + $0xa8] sm:$0xf]
      %v272 = vld [vmem:[%s220 + $0xac] sm:$0xf]
      %v273 = vld [vmem:[%s220 + $0xb0] sm:$0xf]
      %v274 = vld [vmem:[%s220 + $0xb4] sm:$0xf]
      %v275 = vld [vmem:[%s220 + $0xb8] sm:$0xf]
      %v276 = vld [vmem:[%s220 + $0xbc] sm:$0xf]
      %v277 = vld [vmem:[%s220 + $0xc0] sm:$0xf]
      %v278 = vld [vmem:[%s220 + $0xc4] sm:$0xf]
      %v279 = vld [vmem:[%s220 + $0xc8] sm:$0xf]
      %v280 = vld [vmem:[%s220 + $0xcc] sm:$0xf]
      %v281 = vld [vmem:[%s220 + $0xd0] sm:$0xf]
      %v282 = vld [vmem:[%s220 + $0xd4] sm:$0xf]
      %v283 = vld [vmem:[%s220 + $0xd8] sm:$0xf]
      %v284 = vld [vmem:[%s220 + $0xdc] sm:$0xf]
      %v285 = vld [vmem:[%s220 + $0xe0] sm:$0xf]
      %v286 = vld [vmem:[%s220 + $0xe4] sm:$0xf]
      %v287 = vld [vmem:[%s220 + $0xe8] sm:$0xf]
      %v288 = vld [vmem:[%s220 + $0xec] sm:$0xf]
      %v289 = vld [vmem:[%s220 + $0xf0] sm:$0xf]
      %v290 = vld [vmem:[%s220 + $0xf4] sm:$0xf]
      %v291 = vld [vmem:[%s220 + $0xf8] sm:$0xf]
      %v292 = vld [vmem:[%s220 + $0xfc] sm:$0xf]
      %v293 = vld [vmem:[%s1] sm:$0xf]
      %v294 = vld [vmem:[%s1 + $0x4] sm:$0xf]
      %v295 = vld [vmem:[%s1 + $0x8] sm:$0xf]
      %v296 = vld [vmem:[%s1 + $0xc] sm:$0xf]
      %v297 = vld [vmem:[%s1 + $0x10] sm:$0xf]
      %v298 = vld [vmem:[%s1 + $0x14] sm:$0xf]
      %v299 = vld [vmem:[%s1 + $0x18] sm:$0xf]
      %v300 = vld [vmem:[%s1 + $0x1c] sm:$0xf]
      %v301 = vld [vmem:[%s1 + $0x20] sm:$0xf]
      %v302 = vld [vmem:[%s1 + $0x24] sm:$0xf]
      %v303 = vld [vmem:[%s1 + $0x28] sm:$0xf]
      %v304 = vld [vmem:[%s1 + $0x2c] sm:$0xf]
      %v305 = vld [vmem:[%s1 + $0x30] sm:$0xf]
      %v306 = vld [vmem:[%s1 + $0x34] sm:$0xf]
      %v307 = vld [vmem:[%s1 + $0x38] sm:$0xf]
      %v308 = vld [vmem:[%s1 + $0x3c] sm:$0xf]
      %v373 = vunpack.c.l.b16 %v229
      %v374 = vunpack.c.l.b16 %v230
      %v375 = vunpack.c.l.b16 %v231
      %v376 = vunpack.c.l.b16 %v232
      %v377 = vunpack.c.l.b16 %v233
      %v378 = vunpack.c.l.b16 %v234
      %v379 = vunpack.c.l.b16 %v235
      %v380 = vunpack.c.l.b16 %v236
      %v381 = vunpack.c.l.b16 %v237
      %v382 = vunpack.c.l.b16 %v238
      %v383 = vunpack.c.l.b16 %v239
      %v384 = vunpack.c.l.b16 %v240
      %v385 = vunpack.c.l.b16 %v241
      %v386 = vunpack.c.l.b16 %v242
      %v387 = vunpack.c.l.b16 %v243
      %v388 = vunpack.c.l.b16 %v244
      %v389 = vunpack.c.l.b16 %v245
      %v390 = vunpack.c.l.b16 %v246
      %v391 = vunpack.c.l.b16 %v247
      %v392 = vunpack.c.l.b16 %v248
      %v393 = vunpack.c.l.b16 %v249
      %v394 = vunpack.c.l.b16 %v250
      %v395 = vunpack.c.l.b16 %v251
      %v396 = vunpack.c.l.b16 %v252
      %v397 = vunpack.c.l.b16 %v253
      %v398 = vunpack.c.l.b16 %v254
      %v399 = vunpack.c.l.b16 %v255
      %v400 = vunpack.c.l.b16 %v256
      %v401 = vunpack.c.l.b16 %v257
      %v402 = vunpack.c.l.b16 %v258
      %v403 = vunpack.c.l.b16 %v259
      %v404 = vunpack.c.l.b16 %v260
      %v405 = vunpack.c.l.b16 %v261
      %v406 = vunpack.c.l.b16 %v262
      %v407 = vunpack.c.l.b16 %v263
      %v408 = vunpack.c.l.b16 %v264
      %v409 = vunpack.c.l.b16 %v265
      %v410 = vunpack.c.l.b16 %v266
      %v411 = vunpack.c.l.b16 %v267
      %v412 = vunpack.c.l.b16 %v268
      %v413 = vunpack.c.l.b16 %v269
      %v414 = vunpack.c.l.b16 %v270
      %v415 = vunpack.c.l.b16 %v271
      %v416 = vunpack.c.l.b16 %v272
      %v417 = vunpack.c.l.b16 %v273
      %v418 = vunpack.c.l.b16 %v274
      %v419 = vunpack.c.l.b16 %v275
      %v420 = vunpack.c.l.b16 %v276
      %v421 = vunpack.c.l.b16 %v277
      %v422 = vunpack.c.l.b16 %v278
      %v423 = vunpack.c.l.b16 %v279
      %v424 = vunpack.c.l.b16 %v280
      %v425 = vunpack.c.l.b16 %v281
      %v426 = vunpack.c.l.b16 %v282
      %v427 = vunpack.c.l.b16 %v283
      %v428 = vunpack.c.l.b16 %v284
      %v429 = vunpack.c.l.b16 %v285
      %v430 = vunpack.c.l.b16 %v286
      %v431 = vunpack.c.l.b16 %v287
      %v432 = vunpack.c.l.b16 %v288
      %v433 = vunpack.c.l.b16 %v289
      %v434 = vunpack.c.l.b16 %v290
      %v435 = vunpack.c.l.b16 %v291
      %v436 = vunpack.c.l.b16 %v292
      %v437 = vpack.c.b16 %v374, %v373
      %v438 = vpack.c.b16 %v376, %v375
      %v439 = vpack.c.b16 %v378, %v377
      %v440 = vpack.c.b16 %v380, %v379
      %v441 = vpack.c.b16 %v382, %v381
      %v442 = vpack.c.b16 %v384, %v383
      %v443 = vpack.c.b16 %v386, %v385
      %v444 = vpack.c.b16 %v388, %v387
      %v445 = vpack.c.b16 %v390, %v389
      %v446 = vpack.c.b16 %v392, %v391
      %v447 = vpack.c.b16 %v394, %v393
      %v448 = vpack.c.b16 %v396, %v395
      %v449 = vpack.c.b16 %v398, %v397
      %v450 = vpack.c.b16 %v400, %v399
      %v451 = vpack.c.b16 %v402, %v401
      %v452 = vpack.c.b16 %v404, %v403
      %v453 = vpack.c.b16 %v406, %v405
      %v454 = vpack.c.b16 %v408, %v407
      %v455 = vpack.c.b16 %v410, %v409
      %v456 = vpack.c.b16 %v412, %v411
      %v457 = vpack.c.b16 %v414, %v413
      %v458 = vpack.c.b16 %v416, %v415
      %v459 = vpack.c.b16 %v418, %v417
      %v460 = vpack.c.b16 %v420, %v419
      %v461 = vpack.c.b16 %v422, %v421
      %v462 = vpack.c.b16 %v424, %v423
      %v463 = vpack.c.b16 %v426, %v425
      %v464 = vpack.c.b16 %v428, %v427
      %v465 = vpack.c.b16 %v430, %v429
      %v466 = vpack.c.b16 %v432, %v431
      %v467 = vpack.c.b16 %v434, %v433
      %v468 = vpack.c.b16 %v436, %v435
      %v517 = vunpack.c.l.b16 %v293
      %v518 = vunpack.c.l.b16 %v294
      %v519 = vunpack.c.l.b16 %v295
      %v520 = vunpack.c.l.b16 %v296
      %v521 = vunpack.c.l.b16 %v297
      %v522 = vunpack.c.l.b16 %v298
      %v523 = vunpack.c.l.b16 %v299
      %v524 = vunpack.c.l.b16 %v300
      %v525 = vunpack.c.l.b16 %v301
      %v526 = vunpack.c.l.b16 %v302
      %v527 = vunpack.c.l.b16 %v303
      %v528 = vunpack.c.l.b16 %v304
      %v529 = vunpack.c.l.b16 %v305
      %v530 = vunpack.c.l.b16 %v306
      %v531 = vunpack.c.l.b16 %v307
      %v532 = vunpack.c.l.b16 %v308
      %v533 = vpack.c.b16 %v518, %v517
      %v534 = vpack.c.b16 %v520, %v519
      %v535 = vpack.c.b16 %v522, %v521
      %v536 = vpack.c.b16 %v524, %v523
      %v537 = vpack.c.b16 %v526, %v525
      %v538 = vpack.c.b16 %v528, %v527
      %v539 = vpack.c.b16 %v530, %v529
      %v540 = vpack.c.b16 %v532, %v531
      %549 = vmatprep.subr.bf16.mxu0 0
      %550 = vmatpush1.bf16.msra.mxu0 %v533
      %551 = vmatprep.subr.bf16.mxu0 0
      %552 = vmatpush1.bf16.msra.mxu0 %v534
      %553 = vmatprep.subr.bf16.mxu0 0
      %554 = vmatpush1.bf16.msra.mxu0 %v535
      %555 = vmatprep.subr.bf16.mxu0 0
      %556 = vmatpush1.bf16.msra.mxu0 %v536
      %557 = vmatprep.subr.bf16.mxu0 0
      %558 = vmatpush1.bf16.msra.mxu0 %v537
      %559 = vmatprep.subr.bf16.mxu0 0
      %560 = vmatpush1.bf16.msra.mxu0 %v538
      %561 = vmatprep.subr.bf16.mxu0 0
      %562 = vmatpush1.bf16.msra.mxu0 %v539
      %563 = vmatprep.subr.bf16.mxu0 0
      %564 = vmatpush1.bf16.msra.mxu0 %v540
      %565 = vmatprep.subr.bf16.mxu0 0
      %566 = vmatpush1.bf16.msra.mxu0 0
      %567 = vmatprep.subr.bf16.mxu0 0
      %568 = vmatpush1.bf16.msra.mxu0 0
      %569 = vmatprep.subr.bf16.mxu0 0
      %570 = vmatpush1.bf16.msra.mxu0 0
      %571 = vmatprep.subr.bf16.mxu0 0
      %572 = vmatpush1.bf16.msra.mxu0 0
      %573 = vmatprep.subr.bf16.mxu0 0
      %574 = vmatpush1.bf16.msra.mxu0 0
      %575 = vmatprep.subr.bf16.mxu0 0
      %576 = vmatpush1.bf16.msra.mxu0 0
      %577 = vmatprep.subr.bf16.mxu0 0
      %578 = vmatpush1.bf16.msra.mxu0 0
      %579 = vmatprep.subr.bf16.mxu0 0
      %580 = vmatpush1.bf16.msra.mxu0 0
      %581 = vmatprep.mubr.bf16.mxu0 0
      %582 = vmatmul.mubr.bf16.gmra.mrb[0].mxu0 %v437
      %v583 = vpop.f32.mrb[0].mxu0
      %v584 = vadd.f32 0.0, %v583
      %v585 = vpop.f32.mrb[0].mxu0
      %v586 = vpop.f32.mrb[0].mxu0
      %v587 = vadd.f32 0.0, %v586
      %v588 = vpop.f32.mrb[0].mxu0
      %589 = vmatprep.mubr.bf16.mxu0 0
      %590 = vmatmul.mubr.bf16.gmra.mrb[0].mxu0 %v438
      %v591 = vpop.f32.mrb[0].mxu0
      %v592 = vadd.f32 0.0, %v591
      %v593 = vpop.f32.mrb[0].mxu0
      %v594 = vpop.f32.mrb[0].mxu0
      %v595 = vadd.f32 0.0, %v594
      %v596 = vpop.f32.mrb[0].mxu0
      %597 = vmatprep.mubr.bf16.mxu0 0
      %598 = vmatmul.mubr.bf16.gmra.mrb[0].mxu0 %v439
      %v599 = vpop.f32.mrb[0].mxu0
      %v600 = vadd.f32 0.0, %v599
      %v601 = vpop.f32.mrb[0].mxu0
      %v602 = vpop.f32.mrb[0].mxu0
      %v603 = vadd.f32 0.0, %v602
      %v604 = vpop.f32.mrb[0].mxu0
      %605 = vmatprep.mubr.bf16.mxu0 0
      %606 = vmatmul.mubr.bf16.gmra.mrb[0].mxu0 %v440
      %v607 = vpop.f32.mrb[0].mxu0
      %v608 = vadd.f32 0.0, %v607
      %v609 = vpop.f32.mrb[0].mxu0
      %v610 = vpop.f32.mrb[0].mxu0
      %v611 = vadd.f32 0.0, %v610
      %v612 = vpop.f32.mrb[0].mxu0
      %613 = vmatprep.mubr.bf16.mxu0 0
      %614 = vmatmul.mubr.bf16.gmra.mrb[0].mxu0 %v441
      %v615 = vpop.f32.mrb[0].mxu0
      %v616 = vadd.f32 0.0, %v615
      %v617 = vpop.f32.mrb[0].mxu0
      %v618 = vpop.f32.mrb[0].mxu0
      %v619 = vadd.f32 0.0, %v618
      %v620 = vpop.f32.mrb[0].mxu0
      %621 = vmatprep.mubr.bf16.mxu0 0
      %622 = vmatmul.mubr.bf16.gmra.mrb[0].mxu0 %v442
      %v623 = vpop.f32.mrb[0].mxu0
      %v624 = vadd.f32 0.0, %v623
      %v625 = vpop.f32.mrb[0].mxu0
      %v626 = vpop.f32.mrb[0].mxu0
      %v627 = vadd.f32 0.0, %v626
      %v628 = vpop.f32.mrb[0].mxu0
      %629 = vmatprep.mubr.bf16.mxu0 0
      %630 = vmatmul.mubr.bf16.gmra.mrb[0].mxu0 %v443
      %v631 = vpop.f32.mrb[0].mxu0
      %v632 = vadd.f32 0.0, %v631
      %v633 = vpop.f32.mrb[0].mxu0
      %v634 = vpop.f32.mrb[0].mxu0
      %v635 = vadd.f32 0.0, %v634
      %v636 = vpop.f32.mrb[0].mxu0
      %637 = vmatprep.mubr.bf16.mxu0 0
      %638 = vmatmul.mubr.bf16.gmra.mrb[0].mxu0 %v444
      %v639 = vpop.f32.mrb[0].mxu0
      %v640 = vadd.f32 0.0, %v639
      %v641 = vpop.f32.mrb[0].mxu0
      %v642 = vpop.f32.mrb[0].mxu0
      %v643 = vadd.f32 0.0, %v642
      %v644 = vpop.f32.mrb[0].mxu0
      %645 = vmatprep.mubr.bf16.mxu0 0
      %646 = vmatmul.mubr.bf16.gmra.mrb[0].mxu0 %v445
      %v647 = vpop.f32.mrb[0].mxu0
      %v648 = vadd.f32 0.0, %v647
      %v649 = vpop.f32.mrb[0].mxu0
      %v650 = vpop.f32.mrb[0].mxu0
      %v651 = vadd.f32 0.0, %v650
      %v652 = vpop.f32.mrb[0].mxu0
      %653 = vmatprep.mubr.bf16.mxu0 0
      %654 = vmatmul.mubr.bf16.gmra.mrb[0].mxu0 %v446
      %v655 = vpop.f32.mrb[0].mxu0
      %v656 = vadd.f32 0.0, %v655
      %v657 = vpop.f32.mrb[0].mxu0
      %v658 = vpop.f32.mrb[0].mxu0
      %v659 = vadd.f32 0.0, %v658
      %v660 = vpop.f32.mrb[0].mxu0
      %661 = vmatprep.mubr.bf16.mxu0 0
      %662 = vmatmul.mubr.bf16.gmra.mrb[0].mxu0 %v447
      %v663 = vpop.f32.mrb[0].mxu0
      %v664 = vadd.f32 0.0, %v663
      %v665 = vpop.f32.mrb[0].mxu0
      %v666 = vpop.f32.mrb[0].mxu0
      %v667 = vadd.f32 0.0, %v666
      %v668 = vpop.f32.mrb[0].mxu0
      %669 = vmatprep.mubr.bf16.mxu0 0
      %670 = vmatmul.mubr.bf16.gmra.mrb[0].mxu0 %v448
      %v671 = vpop.f32.mrb[0].mxu0
      %v672 = vadd.f32 0.0, %v671
      %v673 = vpop.f32.mrb[0].mxu0
      %v674 = vpop.f32.mrb[0].mxu0
      %v675 = vadd.f32 0.0, %v674
      %v676 = vpop.f32.mrb[0].mxu0
      %677 = vmatprep.mubr.bf16.mxu0 0
      %678 = vmatmul.mubr.bf16.gmra.mrb[0].mxu0 %v449
      %v679 = vpop.f32.mrb[0].mxu0
      %v680 = vadd.f32 0.0, %v679
      %v681 = vpop.f32.mrb[0].mxu0
      %v682 = vpop.f32.mrb[0].mxu0
      %v683 = vadd.f32 0.0, %v682
      %v684 = vpop.f32.mrb[0].mxu0
      %685 = vmatprep.mubr.bf16.mxu0 0
      %686 = vmatmul.mubr.bf16.gmra.mrb[0].mxu0 %v450
      %v687 = vpop.f32.mrb[0].mxu0
      %v688 = vadd.f32 0.0, %v687
      %v689 = vpop.f32.mrb[0].mxu0
      %v690 = vpop.f32.mrb[0].mxu0
      %v691 = vadd.f32 0.0, %v690
      %v692 = vpop.f32.mrb[0].mxu0
      %693 = vmatprep.mubr.bf16.mxu0 0
      %694 = vmatmul.mubr.bf16.gmra.mrb[0].mxu0 %v451
      %v695 = vpop.f32.mrb[0].mxu0
      %v696 = vadd.f32 0.0, %v695
      %v697 = vpop.f32.mrb[0].mxu0
      %v698 = vpop.f32.mrb[0].mxu0
      %v699 = vadd.f32 0.0, %v698
      %v700 = vpop.f32.mrb[0].mxu0
      %701 = vmatprep.mubr.bf16.mxu0 0
      %702 = vmatmul.mubr.bf16.gmra.mrb[0].mxu0 %v452
      %v703 = vpop.f32.mrb[0].mxu0
      %v704 = vadd.f32 0.0, %v703
      %v705 = vpop.f32.mrb[0].mxu0
      %v706 = vpop.f32.mrb[0].mxu0
      %v707 = vadd.f32 0.0, %v706
      %v708 = vpop.f32.mrb[0].mxu0
      %709 = vmatprep.mubr.bf16.mxu0 0
      %710 = vmatmul.mubr.bf16.gmra.mrb[0].mxu0 %v453
      %v711 = vpop.f32.mrb[0].mxu0
      %v712 = vadd.f32 0.0, %v711
      %v713 = vpop.f32.mrb[0].mxu0
      %v714 = vpop.f32.mrb[0].mxu0
      %v715 = vadd.f32 0.0, %v714
      %v716 = vpop.f32.mrb[0].mxu0
      %717 = vmatprep.mubr.bf16.mxu0 0
      %718 = vmatmul.mubr.bf16.gmra.mrb[0].mxu0 %v454
      %v719 = vpop.f32.mrb[0].mxu0
      %v720 = vadd.f32 0.0, %v719
      %v721 = vpop.f32.mrb[0].mxu0
      %v722 = vpop.f32.mrb[0].mxu0
      %v723 = vadd.f32 0.0, %v722
      %v724 = vpop.f32.mrb[0].mxu0
      %725 = vmatprep.mubr.bf16.mxu0 0
      %726 = vmatmul.mubr.bf16.gmra.mrb[0].mxu0 %v455
      %v727 = vpop.f32.mrb[0].mxu0
      %v728 = vadd.f32 0.0, %v727
      %v729 = vpop.f32.mrb[0].mxu0
      %v730 = vpop.f32.mrb[0].mxu0
      %v731 = vadd.f32 0.0, %v730
      %v732 = vpop.f32.mrb[0].mxu0
      %733 = vmatprep.mubr.bf16.mxu0 0
      %734 = vmatmul.mubr.bf16.gmra.mrb[0].mxu0 %v456
      %v735 = vpop.f32.mrb[0].mxu0
      %v736 = vadd.f32 0.0, %v735
      %v737 = vpop.f32.mrb[0].mxu0
      %v738 = vpop.f32.mrb[0].mxu0
      %v739 = vadd.f32 0.0, %v738
      %v740 = vpop.f32.mrb[0].mxu0
      %741 = vmatprep.mubr.bf16.mxu0 0
      %742 = vmatmul.mubr.bf16.gmra.mrb[0].mxu0 %v457
      %v743 = vpop.f32.mrb[0].mxu0
      %v744 = vadd.f32 0.0, %v743
      %v745 = vpop.f32.mrb[0].mxu0
      %v746 = vpop.f32.mrb[0].mxu0
      %v747 = vadd.f32 0.0, %v746
      %v748 = vpop.f32.mrb[0].mxu0
      %749 = vmatprep.mubr.bf16.mxu0 0
      %750 = vmatmul.mubr.bf16.gmra.mrb[0].mxu0 %v458
      %v751 = vpop.f32.mrb[0].mxu0
      %v752 = vadd.f32 0.0, %v751
      %v753 = vpop.f32.mrb[0].mxu0
      %v754 = vpop.f32.mrb[0].mxu0
      %v755 = vadd.f32 0.0, %v754
      %v756 = vpop.f32.mrb[0].mxu0
      %757 = vmatprep.mubr.bf16.mxu0 0
      %758 = vmatmul.mubr.bf16.gmra.mrb[0].mxu0 %v459
      %v759 = vpop.f32.mrb[0].mxu0
      %v760 = vadd.f32 0.0, %v759
      %v761 = vpop.f32.mrb[0].mxu0
      %v762 = vpop.f32.mrb[0].mxu0
      %v763 = vadd.f32 0.0, %v762
      %v764 = vpop.f32.mrb[0].mxu0
      %765 = vmatprep.mubr.bf16.mxu0 0
      %766 = vmatmul.mubr.bf16.gmra.mrb[0].mxu0 %v460
      %v767 = vpop.f32.mrb[0].mxu0
      %v768 = vadd.f32 0.0, %v767
      %v769 = vpop.f32.mrb[0].mxu0
      %v770 = vpop.f32.mrb[0].mxu0
      %v771 = vadd.f32 0.0, %v770
      %v772 = vpop.f32.mrb[0].mxu0
      %773 = vmatprep.mubr.bf16.mxu0 0
      %774 = vmatmul.mubr.bf16.gmra.mrb[0].mxu0 %v461
      %v775 = vpop.f32.mrb[0].mxu0
      %v776 = vadd.f32 0.0, %v775
      %v777 = vpop.f32.mrb[0].mxu0
      %v778 = vpop.f32.mrb[0].mxu0
      %v779 = vadd.f32 0.0, %v778
      %v780 = vpop.f32.mrb[0].mxu0
      %781 = vmatprep.mubr.bf16.mxu0 0
      %782 = vmatmul.mubr.bf16.gmra.mrb[0].mxu0 %v462
      %v783 = vpop.f32.mrb[0].mxu0
      %v784 = vadd.f32 0.0, %v783
      %v785 = vpop.f32.mrb[0].mxu0
      %v786 = vpop.f32.mrb[0].mxu0
      %v787 = vadd.f32 0.0, %v786
      %v788 = vpop.f32.mrb[0].mxu0
      %789 = vmatprep.mubr.bf16.mxu0 0
      %790 = vmatmul.mubr.bf16.gmra.mrb[0].mxu0 %v463
      %v791 = vpop.f32.mrb[0].mxu0
      %v792 = vadd.f32 0.0, %v791
      %v793 = vpop.f32.mrb[0].mxu0
      %v794 = vpop.f32.mrb[0].mxu0
      %v795 = vadd.f32 0.0, %v794
      %v796 = vpop.f32.mrb[0].mxu0
      %797 = vmatprep.mubr.bf16.mxu0 0
      %798 = vmatmul.mubr.bf16.gmra.mrb[0].mxu0 %v464
      %v799 = vpop.f32.mrb[0].mxu0
      %v800 = vadd.f32 0.0, %v799
      %v801 = vpop.f32.mrb[0].mxu0
      %v802 = vpop.f32.mrb[0].mxu0
      %v803 = vadd.f32 0.0, %v802
      %v804 = vpop.f32.mrb[0].mxu0
      %805 = vmatprep.mubr.bf16.mxu0 0
      %806 = vmatmul.mubr.bf16.gmra.mrb[0].mxu0 %v465
      %v807 = vpop.f32.mrb[0].mxu0
      %v808 = vadd.f32 0.0, %v807
      %v809 = vpop.f32.mrb[0].mxu0
      %v810 = vpop.f32.mrb[0].mxu0
      %v811 = vadd.f32 0.0, %v810
      %v812 = vpop.f32.mrb[0].mxu0
      %813 = vmatprep.mubr.bf16.mxu0 0
      %814 = vmatmul.mubr.bf16.gmra.mrb[0].mxu0 %v466
      %v815 = vpop.f32.mrb[0].mxu0
      %v816 = vadd.f32 0.0, %v815
      %v817 = vpop.f32.mrb[0].mxu0
      %v818 = vpop.f32.mrb[0].mxu0
      %v819 = vadd.f32 0.0, %v818
      %v820 = vpop.f32.mrb[0].mxu0
      %821 = vmatprep.mubr.bf16.mxu0 0
      %822 = vmatmul.mubr.bf16.gmra.mrb[0].mxu0 %v467
      %v823 = vpop.f32.mrb[0].mxu0
      %v824 = vadd.f32 0.0, %v823
      %v825 = vpop.f32.mrb[0].mxu0
      %v826 = vpop.f32.mrb[0].mxu0
      %v827 = vadd.f32 0.0, %v826
      %v828 = vpop.f32.mrb[0].mxu0
      %829 = vmatprep.mubr.bf16.mxu0 0
      %830 = vmatmul.mubr.bf16.gmra.mrb[0].mxu0 %v468
      %v831 = vpop.f32.mrb[0].mxu0
      %v832 = vadd.f32 0.0, %v831
      %v833 = vpop.f32.mrb[0].mxu0
      %v834 = vpop.f32.mrb[0].mxu0
      %v835 = vadd.f32 0.0, %v834
      %v836 = vpop.f32.mrb[0].mxu0
      %837 = vdwg.mxu0
      %v838 = vld [vmem:[%s2] sm:$0x3]
      %v839 = vld [vmem:[%s2 + $0x2] sm:$0x3]
      %vm840 = vcmask 1041408
      %v841 = vsel %vm840, %v838, 0.0
      %v842 = vsel %vm840, %v839, 0.0
      %v843 = vadd.f32 %v841, %v842
      %v844 = vmul.f32 %v843, 0.0009765625
      %v845 = vmul.f32 %v844, %v844
      %v847 = vrot.slane %v845, 7
      %v849 = vsub.f32 %v844, %v847
      %v850 = vmax.f32 %v849, 0.0
      %v851 = vld [vmem:[%s3] sm:$0x1]
      %v852 = vadd.f32 %v850, 1e-05
      %v853 = vrsqrt.pop %v852
      %v856 = vunpack.c.l.s4 1966171168
      %v857 = vunpack.c.0.s8 %v856
      %v858 = vlaneseq
      %v859 = vshrl.u32 %v858, 7
      %v860 = vsub.s32 %v857, %v859
      %v861 = vrot.slane %v853, %v860
      %v862 = vcombine.high %v861, %v861
      %v864 = vunpack.c.l.s4 1966171168
      %v865 = vunpack.c.0.s8 %v864
      %v866 = vlaneseq
      %v867 = vshrl.u32 %v866, 7
      %v868 = vsub.s32 %v865, %v867
      %v869 = vrot.slane %v862, %v868
      %v871 = vmul.f32 %v851, %v869
      %v872 = vld [vmem:[%s4] sm:$0x1]
      %v873 = vmul.f32 %v844, %v871
      %v874 = vsub.f32 %v872, %v873
      %v876 = vlaneseq
      %v877 = vshrl.u32 %v876, 7
      %v878 = vsub.s32 0, %v877
      %v879 = vrot.slane %v871, %v878
      %v881 = vmul.f32 %v584, %v879
      %v882 = vmul.f32 %v587, %v879
      %v883 = vmul.f32 %v592, %v879
      %v884 = vmul.f32 %v595, %v879
      %v885 = vmul.f32 %v600, %v879
      %v886 = vmul.f32 %v603, %v879
      %v887 = vmul.f32 %v608, %v879
      %v888 = vmul.f32 %v611, %v879
      %v889 = vmul.f32 %v616, %v879
      %v890 = vmul.f32 %v619, %v879
      %v891 = vmul.f32 %v624, %v879
      %v892 = vmul.f32 %v627, %v879
      %v893 = vmul.f32 %v632, %v879
      %v894 = vmul.f32 %v635, %v879
      %v895 = vmul.f32 %v640, %v879
      %v896 = vmul.f32 %v643, %v879
      %v897 = vmul.f32 %v648, %v879
      %v898 = vmul.f32 %v651, %v879
      %v899 = vmul.f32 %v656, %v879
      %v900 = vmul.f32 %v659, %v879
      %v901 = vmul.f32 %v664, %v879
      %v902 = vmul.f32 %v667, %v879
      %v903 = vmul.f32 %v672, %v879
      %v904 = vmul.f32 %v675, %v879
      %v905 = vmul.f32 %v680, %v879
      %v906 = vmul.f32 %v683, %v879
      %v907 = vmul.f32 %v688, %v879
      %v908 = vmul.f32 %v691, %v879
      %v909 = vmul.f32 %v696, %v879
      %v910 = vmul.f32 %v699, %v879
      %v911 = vmul.f32 %v704, %v879
      %v912 = vmul.f32 %v707, %v879
      %v913 = vmul.f32 %v712, %v879
      %v914 = vmul.f32 %v715, %v879
      %v915 = vmul.f32 %v720, %v879
      %v916 = vmul.f32 %v723, %v879
      %v917 = vmul.f32 %v728, %v879
      %v918 = vmul.f32 %v731, %v879
      %v919 = vmul.f32 %v736, %v879
      %v920 = vmul.f32 %v739, %v879
      %v921 = vmul.f32 %v744, %v879
      %v922 = vmul.f32 %v747, %v879
      %v923 = vmul.f32 %v752, %v879
      %v924 = vmul.f32 %v755, %v879
      %v925 = vmul.f32 %v760, %v879
      %v926 = vmul.f32 %v763, %v879
      %v927 = vmul.f32 %v768, %v879
      %v928 = vmul.f32 %v771, %v879
      %v929 = vmul.f32 %v776, %v879
      %v930 = vmul.f32 %v779, %v879
      %v931 = vmul.f32 %v784, %v879
      %v932 = vmul.f32 %v787, %v879
      %v933 = vmul.f32 %v792, %v879
      %v934 = vmul.f32 %v795, %v879
      %v935 = vmul.f32 %v800, %v879
      %v936 = vmul.f32 %v803, %v879
      %v937 = vmul.f32 %v808, %v879
      %v938 = vmul.f32 %v811, %v879
      %v939 = vmul.f32 %v816, %v879
      %v940 = vmul.f32 %v819, %v879
      %v941 = vmul.f32 %v824, %v879
      %v942 = vmul.f32 %v827, %v879
      %v943 = vmul.f32 %v832, %v879
      %v944 = vmul.f32 %v835, %v879
      %v946 = vlaneseq
      %v947 = vshrl.u32 %v946, 7
      %v948 = vsub.s32 0, %v947
      %v949 = vrot.slane %v874, %v948
      %v951 = vadd.f32 %v881, %v949
      %v952 = vadd.f32 %v882, %v949
      %v953 = vadd.f32 %v883, %v949
      %v954 = vadd.f32 %v884, %v949
      %v955 = vadd.f32 %v885, %v949
      %v956 = vadd.f32 %v886, %v949
      %v957 = vadd.f32 %v887, %v949
      %v958 = vadd.f32 %v888, %v949
      %v959 = vadd.f32 %v889, %v949
      %v960 = vadd.f32 %v890, %v949
      %v961 = vadd.f32 %v891, %v949
      %v962 = vadd.f32 %v892, %v949
      %v963 = vadd.f32 %v893, %v949
      %v964 = vadd.f32 %v894, %v949
      %v965 = vadd.f32 %v895, %v949
      %v966 = vadd.f32 %v896, %v949
      %v967 = vadd.f32 %v897, %v949
      %v968 = vadd.f32 %v898, %v949
      %v969 = vadd.f32 %v899, %v949
      %v970 = vadd.f32 %v900, %v949
      %v971 = vadd.f32 %v901, %v949
      %v972 = vadd.f32 %v902, %v949
      %v973 = vadd.f32 %v903, %v949
      %v974 = vadd.f32 %v904, %v949
      %v975 = vadd.f32 %v905, %v949
      %v976 = vadd.f32 %v906, %v949
      %v977 = vadd.f32 %v907, %v949
      %v978 = vadd.f32 %v908, %v949
      %v979 = vadd.f32 %v909, %v949
      %v980 = vadd.f32 %v910, %v949
      %v981 = vadd.f32 %v911, %v949
      %v982 = vadd.f32 %v912, %v949
      %v983 = vadd.f32 %v913, %v949
      %v984 = vadd.f32 %v914, %v949
      %v985 = vadd.f32 %v915, %v949
      %v986 = vadd.f32 %v916, %v949
      %v987 = vadd.f32 %v917, %v949
      %v988 = vadd.f32 %v918, %v949
      %v989 = vadd.f32 %v919, %v949
      %v990 = vadd.f32 %v920, %v949
      %v991 = vadd.f32 %v921, %v949
      %v992 = vadd.f32 %v922, %v949
      %v993 = vadd.f32 %v923, %v949
      %v994 = vadd.f32 %v924, %v949
      %v995 = vadd.f32 %v925, %v949
      %v996 = vadd.f32 %v926, %v949
      %v997 = vadd.f32 %v927, %v949
      %v998 = vadd.f32 %v928, %v949
      %v999 = vadd.f32 %v929, %v949
      %v1000 = vadd.f32 %v930, %v949
      %v1001 = vadd.f32 %v931, %v949
      %v1002 = vadd.f32 %v932, %v949
      %v1003 = vadd.f32 %v933, %v949
      %v1004 = vadd.f32 %v934, %v949
      %v1005 = vadd.f32 %v935, %v949
      %v1006 = vadd.f32 %v936, %v949
      %v1007 = vadd.f32 %v937, %v949
      %v1008 = vadd.f32 %v938, %v949
      %v1009 = vadd.f32 %v939, %v949
      %v1010 = vadd.f32 %v940, %v949
      %v1011 = vadd.f32 %v941, %v949
      %v1012 = vadd.f32 %v942, %v949
      %v1013 = vadd.f32 %v943, %v949
      %v1014 = vadd.f32 %v944, %v949
      %v1015 = vmax.f32 %v951, 0.0
      %v1016 = vmax.f32 %v952, 0.0
      %v1017 = vmax.f32 %v953, 0.0
      %v1018 = vmax.f32 %v954, 0.0
      %v1019 = vmax.f32 %v955, 0.0
      %v1020 = vmax.f32 %v956, 0.0
      %v1021 = vmax.f32 %v957, 0.0
      %v1022 = vmax.f32 %v958, 0.0
      %v1023 = vmax.f32 %v959, 0.0
      %v1024 = vmax.f32 %v960, 0.0
      %v1025 = vmax.f32 %v961, 0.0
      %v1026 = vmax.f32 %v962, 0.0
      %v1027 = vmax.f32 %v963, 0.0
      %v1028 = vmax.f32 %v964, 0.0
      %v1029 = vmax.f32 %v965, 0.0
      %v1030 = vmax.f32 %v966, 0.0
      %v1031 = vmax.f32 %v967, 0.0
      %v1032 = vmax.f32 %v968, 0.0
      %v1033 = vmax.f32 %v969, 0.0
      %v1034 = vmax.f32 %v970, 0.0
      %v1035 = vmax.f32 %v971, 0.0
      %v1036 = vmax.f32 %v972, 0.0
      %v1037 = vmax.f32 %v973, 0.0
      %v1038 = vmax.f32 %v974, 0.0
      %v1039 = vmax.f32 %v975, 0.0
      %v1040 = vmax.f32 %v976, 0.0
      %v1041 = vmax.f32 %v977, 0.0
      %v1042 = vmax.f32 %v978, 0.0
      %v1043 = vmax.f32 %v979, 0.0
      %v1044 = vmax.f32 %v980, 0.0
      %v1045 = vmax.f32 %v981, 0.0
      %v1046 = vmax.f32 %v982, 0.0
      %v1047 = vmax.f32 %v983, 0.0
      %v1048 = vmax.f32 %v984, 0.0
      %v1049 = vmax.f32 %v985, 0.0
      %v1050 = vmax.f32 %v986, 0.0
      %v1051 = vmax.f32 %v987, 0.0
      %v1052 = vmax.f32 %v988, 0.0
      %v1053 = vmax.f32 %v989, 0.0
      %v1054 = vmax.f32 %v990, 0.0
      %v1055 = vmax.f32 %v991, 0.0
      %v1056 = vmax.f32 %v992, 0.0
      %v1057 = vmax.f32 %v993, 0.0
      %v1058 = vmax.f32 %v994, 0.0
      %v1059 = vmax.f32 %v995, 0.0
      %v1060 = vmax.f32 %v996, 0.0
      %v1061 = vmax.f32 %v997, 0.0
      %v1062 = vmax.f32 %v998, 0.0
      %v1063 = vmax.f32 %v999, 0.0
      %v1064 = vmax.f32 %v1000, 0.0
      %v1065 = vmax.f32 %v1001, 0.0
      %v1066 = vmax.f32 %v1002, 0.0
      %v1067 = vmax.f32 %v1003, 0.0
      %v1068 = vmax.f32 %v1004, 0.0
      %v1069 = vmax.f32 %v1005, 0.0
      %v1070 = vmax.f32 %v1006, 0.0
      %v1071 = vmax.f32 %v1007, 0.0
      %v1072 = vmax.f32 %v1008, 0.0
      %v1073 = vmax.f32 %v1009, 0.0
      %v1074 = vmax.f32 %v1010, 0.0
      %v1075 = vmax.f32 %v1011, 0.0
      %v1076 = vmax.f32 %v1012, 0.0
      %v1077 = vmax.f32 %v1013, 0.0
      %v1078 = vmax.f32 %v1014, 0.0
      %v1079 = vpack.c.bf16 %v1016, %v1015
      %v1080 = vpack.c.bf16 %v1018, %v1017
      %v1081 = vpack.c.bf16 %v1020, %v1019
      %v1082 = vpack.c.bf16 %v1022, %v1021
      %v1083 = vpack.c.bf16 %v1024, %v1023
      %v1084 = vpack.c.bf16 %v1026, %v1025
      %v1085 = vpack.c.bf16 %v1028, %v1027
      %v1086 = vpack.c.bf16 %v1030, %v1029
      %v1087 = vpack.c.bf16 %v1032, %v1031
      %v1088 = vpack.c.bf16 %v1034, %v1033
      %v1089 = vpack.c.bf16 %v1036, %v1035
      %v1090 = vpack.c.bf16 %v1038, %v1037
      %v1091 = vpack.c.bf16 %v1040, %v1039
      %v1092 = vpack.c.bf16 %v1042, %v1041
      %v1093 = vpack.c.bf16 %v1044, %v1043
      %v1094 = vpack.c.bf16 %v1046, %v1045
      %v1095 = vpack.c.bf16 %v1048, %v1047
      %v1096 = vpack.c.bf16 %v1050, %v1049
      %v1097 = vpack.c.bf16 %v1052, %v1051
      %v1098 = vpack.c.bf16 %v1054, %v1053
      %v1099 = vpack.c.bf16 %v1056, %v1055
      %v1100 = vpack.c.bf16 %v1058, %v1057
      %v1101 = vpack.c.bf16 %v1060, %v1059
      %v1102 = vpack.c.bf16 %v1062, %v1061
      %v1103 = vpack.c.bf16 %v1064, %v1063
      %v1104 = vpack.c.bf16 %v1066, %v1065
      %v1105 = vpack.c.bf16 %v1068, %v1067
      %v1106 = vpack.c.bf16 %v1070, %v1069
      %v1107 = vpack.c.bf16 %v1072, %v1071
      %v1108 = vpack.c.bf16 %v1074, %v1073
      %v1109 = vpack.c.bf16 %v1076, %v1075
      %v1110 = vpack.c.bf16 %v1078, %v1077
      %v1143 = vunpack.c.l.b16 %v1079
      %v1144 = vunpack.c.h.b16 %v1079
      %v1145 = vunpack.c.l.b16 %v1080
      %v1146 = vunpack.c.h.b16 %v1080
      %v1147 = vunpack.c.l.b16 %v1081
      %v1148 = vunpack.c.h.b16 %v1081
      %v1149 = vunpack.c.l.b16 %v1082
      %v1150 = vunpack.c.h.b16 %v1082
      %v1151 = vunpack.c.l.b16 %v1083
      %v1152 = vunpack.c.h.b16 %v1083
      %v1153 = vunpack.c.l.b16 %v1084
      %v1154 = vunpack.c.h.b16 %v1084
      %v1155 = vunpack.c.l.b16 %v1085
      %v1156 = vunpack.c.h.b16 %v1085
      %v1157 = vunpack.c.l.b16 %v1086
      %v1158 = vunpack.c.h.b16 %v1086
      %v1159 = vunpack.c.l.b16 %v1087
      %v1160 = vunpack.c.h.b16 %v1087
      %v1161 = vunpack.c.l.b16 %v1088
      %v1162 = vunpack.c.h.b16 %v1088
      %v1163 = vunpack.c.l.b16 %v1089
      %v1164 = vunpack.c.h.b16 %v1089
      %v1165 = vunpack.c.l.b16 %v1090
      %v1166 = vunpack.c.h.b16 %v1090
      %v1167 = vunpack.c.l.b16 %v1091
      %v1168 = vunpack.c.h.b16 %v1091
      %v1169 = vunpack.c.l.b16 %v1092
      %v1170 = vunpack.c.h.b16 %v1092
      %v1171 = vunpack.c.l.b16 %v1093
      %v1172 = vunpack.c.h.b16 %v1093
      %v1173 = vunpack.c.l.b16 %v1094
      %v1174 = vunpack.c.h.b16 %v1094
      %v1175 = vunpack.c.l.b16 %v1095
      %v1176 = vunpack.c.h.b16 %v1095
      %v1177 = vunpack.c.l.b16 %v1096
      %v1178 = vunpack.c.h.b16 %v1096
      %v1179 = vunpack.c.l.b16 %v1097
      %v1180 = vunpack.c.h.b16 %v1097
      %v1181 = vunpack.c.l.b16 %v1098
      %v1182 = vunpack.c.h.b16 %v1098
      %v1183 = vunpack.c.l.b16 %v1099
      %v1184 = vunpack.c.h.b16 %v1099
      %v1185 = vunpack.c.l.b16 %v1100
      %v1186 = vunpack.c.h.b16 %v1100
      %v1187 = vunpack.c.l.b16 %v1101
      %v1188 = vunpack.c.h.b16 %v1101
      %v1189 = vunpack.c.l.b16 %v1102
      %v1190 = vunpack.c.h.b16 %v1102
      %v1191 = vunpack.c.l.b16 %v1103
      %v1192 = vunpack.c.h.b16 %v1103
      %v1193 = vunpack.c.l.b16 %v1104
      %v1194 = vunpack.c.h.b16 %v1104
      %v1195 = vunpack.c.l.b16 %v1105
      %v1196 = vunpack.c.h.b16 %v1105
      %v1197 = vunpack.c.l.b16 %v1106
      %v1198 = vunpack.c.h.b16 %v1106
      %v1199 = vunpack.c.l.b16 %v1107
      %v1200 = vunpack.c.h.b16 %v1107
      %v1201 = vunpack.c.l.b16 %v1108
      %v1202 = vunpack.c.h.b16 %v1108
      %v1203 = vunpack.c.l.b16 %v1109
      %v1204 = vunpack.c.h.b16 %v1109
      %v1205 = vunpack.c.l.b16 %v1110
      %v1206 = vunpack.c.h.b16 %v1110
      %v1207 = vpack.c.b16 %v1143, %v1143
      %v1208 = vpack.c.b16 %v1144, %v1144
      %v1209 = vpack.c.b16 %v1145, %v1145
      %v1210 = vpack.c.b16 %v1146, %v1146
      %v1211 = vpack.c.b16 %v1147, %v1147
      %v1212 = vpack.c.b16 %v1148, %v1148
      %v1213 = vpack.c.b16 %v1149, %v1149
      %v1214 = vpack.c.b16 %v1150, %v1150
      %v1215 = vpack.c.b16 %v1151, %v1151
      %v1216 = vpack.c.b16 %v1152, %v1152
      %v1217 = vpack.c.b16 %v1153, %v1153
      %v1218 = vpack.c.b16 %v1154, %v1154
      %v1219 = vpack.c.b16 %v1155, %v1155
      %v1220 = vpack.c.b16 %v1156, %v1156
      %v1221 = vpack.c.b16 %v1157, %v1157
      %v1222 = vpack.c.b16 %v1158, %v1158
      %v1223 = vpack.c.b16 %v1159, %v1159
      %v1224 = vpack.c.b16 %v1160, %v1160
      %v1225 = vpack.c.b16 %v1161, %v1161
      %v1226 = vpack.c.b16 %v1162, %v1162
      %v1227 = vpack.c.b16 %v1163, %v1163
      %v1228 = vpack.c.b16 %v1164, %v1164
      %v1229 = vpack.c.b16 %v1165, %v1165
      %v1230 = vpack.c.b16 %v1166, %v1166
      %v1231 = vpack.c.b16 %v1167, %v1167
      %v1232 = vpack.c.b16 %v1168, %v1168
      %v1233 = vpack.c.b16 %v1169, %v1169
      %v1234 = vpack.c.b16 %v1170, %v1170
      %v1235 = vpack.c.b16 %v1171, %v1171
      %v1236 = vpack.c.b16 %v1172, %v1172
      %v1237 = vpack.c.b16 %v1173, %v1173
      %v1238 = vpack.c.b16 %v1174, %v1174
      %v1239 = vpack.c.b16 %v1175, %v1175
      %v1240 = vpack.c.b16 %v1176, %v1176
      %v1241 = vpack.c.b16 %v1177, %v1177
      %v1242 = vpack.c.b16 %v1178, %v1178
      %v1243 = vpack.c.b16 %v1179, %v1179
      %v1244 = vpack.c.b16 %v1180, %v1180
      %v1245 = vpack.c.b16 %v1181, %v1181
      %v1246 = vpack.c.b16 %v1182, %v1182
      %v1247 = vpack.c.b16 %v1183, %v1183
      %v1248 = vpack.c.b16 %v1184, %v1184
      %v1249 = vpack.c.b16 %v1185, %v1185
      %v1250 = vpack.c.b16 %v1186, %v1186
      %v1251 = vpack.c.b16 %v1187, %v1187
      %v1252 = vpack.c.b16 %v1188, %v1188
      %v1253 = vpack.c.b16 %v1189, %v1189
      %v1254 = vpack.c.b16 %v1190, %v1190
      %v1255 = vpack.c.b16 %v1191, %v1191
      %v1256 = vpack.c.b16 %v1192, %v1192
      %v1257 = vpack.c.b16 %v1193, %v1193
      %v1258 = vpack.c.b16 %v1194, %v1194
      %v1259 = vpack.c.b16 %v1195, %v1195
      %v1260 = vpack.c.b16 %v1196, %v1196
      %v1261 = vpack.c.b16 %v1197, %v1197
      %v1262 = vpack.c.b16 %v1198, %v1198
      %v1263 = vpack.c.b16 %v1199, %v1199
      %v1264 = vpack.c.b16 %v1200, %v1200
      %v1265 = vpack.c.b16 %v1201, %v1201
      %v1266 = vpack.c.b16 %v1202, %v1202
      %v1267 = vpack.c.b16 %v1203, %v1203
      %v1268 = vpack.c.b16 %v1204, %v1204
      %v1269 = vpack.c.b16 %v1205, %v1205
      %v1270 = vpack.c.b16 %v1206, %v1206
      %1335 = vst [vmem:[%s226] sm:$0xf] %v1207
      %1336 = vst [vmem:[%s226 + $0x4] sm:$0xf] %v1208
      %1337 = vst [vmem:[%s226 + $0x8] sm:$0xf] %v1209
      %1338 = vst [vmem:[%s226 + $0xc] sm:$0xf] %v1210
      %1339 = vst [vmem:[%s226 + $0x10] sm:$0xf] %v1211
      %1340 = vst [vmem:[%s226 + $0x14] sm:$0xf] %v1212
      %1341 = vst [vmem:[%s226 + $0x18] sm:$0xf] %v1213
      %1342 = vst [vmem:[%s226 + $0x1c] sm:$0xf] %v1214
      %1343 = vst [vmem:[%s226 + $0x20] sm:$0xf] %v1215
      %1344 = vst [vmem:[%s226 + $0x24] sm:$0xf] %v1216
      %1345 = vst [vmem:[%s226 + $0x28] sm:$0xf] %v1217
      %1346 = vst [vmem:[%s226 + $0x2c] sm:$0xf] %v1218
      %1347 = vst [vmem:[%s226 + $0x30] sm:$0xf] %v1219
      %1348 = vst [vmem:[%s226 + $0x34] sm:$0xf] %v1220
      %1349 = vst [vmem:[%s226 + $0x38] sm:$0xf] %v1221
      %1350 = vst [vmem:[%s226 + $0x3c] sm:$0xf] %v1222
      %1351 = vst [vmem:[%s226 + $0x40] sm:$0xf] %v1223
      %1352 = vst [vmem:[%s226 + $0x44] sm:$0xf] %v1224
      %1353 = vst [vmem:[%s226 + $0x48] sm:$0xf] %v1225
      %1354 = vst [vmem:[%s226 + $0x4c] sm:$0xf] %v1226
      %1355 = vst [vmem:[%s226 + $0x50] sm:$0xf] %v1227
      %1356 = vst [vmem:[%s226 + $0x54] sm:$0xf] %v1228
      %1357 = vst [vmem:[%s226 + $0x58] sm:$0xf] %v1229
      %1358 = vst [vmem:[%s226 + $0x5c] sm:$0xf] %v1230
      %1359 = vst [vmem:[%s226 + $0x60] sm:$0xf] %v1231
      %1360 = vst [vmem:[%s226 + $0x64] sm:$0xf] %v1232
      %1361 = vst [vmem:[%s226 + $0x68] sm:$0xf] %v1233
      %1362 = vst [vmem:[%s226 + $0x6c] sm:$0xf] %v1234
      %1363 = vst [vmem:[%s226 + $0x70] sm:$0xf] %v1235
      %1364 = vst [vmem:[%s226 + $0x74] sm:$0xf] %v1236
      %1365 = vst [vmem:[%s226 + $0x78] sm:$0xf] %v1237
      %1366 = vst [vmem:[%s226 + $0x7c] sm:$0xf] %v1238
      %1367 = vst [vmem:[%s226 + $0x80] sm:$0xf] %v1239
      %1368 = vst [vmem:[%s226 + $0x84] sm:$0xf] %v1240
      %1369 = vst [vmem:[%s226 + $0x88] sm:$0xf] %v1241
      %1370 = vst [vmem:[%s226 + $0x8c] sm:$0xf] %v1242
      %1371 = vst [vmem:[%s226 + $0x90] sm:$0xf] %v1243
      %1372 = vst [vmem:[%s226 + $0x94] sm:$0xf] %v1244
      %1373 = vst [vmem:[%s226 + $0x98] sm:$0xf] %v1245
      %1374 = vst [vmem:[%s226 + $0x9c] sm:$0xf] %v1246
      %1375 = vst [vmem:[%s226 + $0xa0] sm:$0xf] %v1247
      %1376 = vst [vmem:[%s226 + $0xa4] sm:$0xf] %v1248
      %1377 = vst [vmem:[%s226 + $0xa8] sm:$0xf] %v1249
      %1378 = vst [vmem:[%s226 + $0xac] sm:$0xf] %v1250
      %1379 = vst [vmem:[%s226 + $0xb0] sm:$0xf] %v1251
      %1380 = vst [vmem:[%s226 + $0xb4] sm:$0xf] %v1252
      %1381 = vst [vmem:[%s226 + $0xb8] sm:$0xf] %v1253
      %1382 = vst [vmem:[%s226 + $0xbc] sm:$0xf] %v1254
      %1383 = vst [vmem:[%s226 + $0xc0] sm:$0xf] %v1255
      %1384 = vst [vmem:[%s226 + $0xc4] sm:$0xf] %v1256
      %1385 = vst [vmem:[%s226 + $0xc8] sm:$0xf] %v1257
      %1386 = vst [vmem:[%s226 + $0xcc] sm:$0xf] %v1258
      %1387 = vst [vmem:[%s226 + $0xd0] sm:$0xf] %v1259
      %1388 = vst [vmem:[%s226 + $0xd4] sm:$0xf] %v1260
      %1389 = vst [vmem:[%s226 + $0xd8] sm:$0xf] %v1261
      %1390 = vst [vmem:[%s226 + $0xdc] sm:$0xf] %v1262
      %1391 = vst [vmem:[%s226 + $0xe0] sm:$0xf] %v1263
      %1392 = vst [vmem:[%s226 + $0xe4] sm:$0xf] %v1264
      %1393 = vst [vmem:[%s226 + $0xe8] sm:$0xf] %v1265
      %1394 = vst [vmem:[%s226 + $0xec] sm:$0xf] %v1266
      %1395 = vst [vmem:[%s226 + $0xf0] sm:$0xf] %v1267
      %1396 = vst [vmem:[%s226 + $0xf4] sm:$0xf] %v1268
      %1397 = vst [vmem:[%s226 + $0xf8] sm:$0xf] %v1269
      %1398 = vst [vmem:[%s226 + $0xfc] sm:$0xf] %v1270
      %s1399 = smul.u32 64, %s16
      %p1400 = scmp.lt.s32.totalorder %s1399, 127
      %s1401 = scalar_select %p1400, %s1399, 127
      %s1402 = smul.addr %s1401, 4
      %s1403 = scalar_lea.vmem %s5, %s1402
      // Predicated region
      $region41: #{basic_block_forward.5} parent=39 // pred_check
        %p1404 = pneg %p144
      $region42: #{basic_block_forward.5} parent=39 // pred_check_branch
        %1406 = sbr.rel (%p1404) target = $region44
      $region43: #{basic_block_forward.5} parent=39 // pred_region
        %s1407 = smul.u32 64, %s16
      $region44: #{basic_block_forward.5} parent=39 // pred_fallthru
        _
    $region40: #{basic_block_forward.5} parent=5 // pred_fallthru
      _
    %p1408 = scmp.le.s32.totalorder 2, %s11
    // Predicated region
    $region45: #{basic_block_forward.5} parent=5 // pred_check
      %p1409 = pneg %p1408
    $region46: #{basic_block_forward.5} parent=5 // pred_check_branch
      %1411 = sbr.rel (%p1409) target = $region48
    $region47: #{basic_block_forward.5} parent=5 // pred_region
      %s1412 = ssub.s32 %s11, 2
      // Predicated region
      $region49: #{basic_block_forward.5} parent=47 // pred_check
        %p1413 = pneg %p150
      $region50: #{basic_block_forward.5} parent=47 // pred_check_branch
        %1415 = sbr.rel (%p1413) target = $region52
      $region51: #{basic_block_forward.5} parent=47 // pred_region
        %s1416 = smul.u32 64, %s17
        %p1417 = scmp.lt.s32.totalorder %s1416, 127
        %s1418 = scalar_select %p1417, %s1416, 127
        %s1419 = smul.addr %s1418, 4
        %s1420 = scalar_lea.vmem %s5, %s1419
      $region52: #{basic_block_forward.5} parent=47 // pred_fallthru
        _
    $region48: #{basic_block_forward.5} parent=5 // pred_fallthru
      _
  $region6: #{basic_block_forward.5} parent=0 // loop_footer
    %s15 = sadd.s32 1, %s11
  $region7: #{basic_block_forward.5} parent=0 // loop_footer_branch
    %10 = sbr.rel target = $region3
  $region8: #{basic_block_forward.5} parent=0 // loop_exit
    _

// kernel: basic_block_forward.6
$region0: #{basic_block_forward.6}
  #allocation0 [shape = 'u32[]', space=smem, size = 0x4, offset = 0x4, fixed_abs, tag = 'smem constant byte address 0x4 - core index']
  #allocation1 [shape = 'u32[144,128]{1,0:T(1,128)}', space=vmem, size = 0x12000, scoped, tag = 'internal scratch']
  %s0 = inlined_call_operand.vmem [shape: bf16[128,256], index: 0, kind: input, shape index: {}]
  %s1 = inlined_call_operand.vmem [shape: bf16[256,256], index: 1, kind: input, shape index: {}]
  %s2 = inlined_call_operand.vmem [shape: f32[2,2,256], index: 2, kind: output, shape index: {}]
  %s3 = sld [smem:[#allocation0]]
  $region41: #{basic_block_forward.6} parent=0
    _
  %s5 = ssub.s32 1, %s3
  %s6 = scalar_select 0, %s5, %s3
  loop: start=0, step=1, limit=4
  $region2: #{basic_block_forward.6} parent=0 // loop_pre_header
    _
  $region3: #{basic_block_forward.6} parent=0 // loop_header
    %s8 = sphi 0, %s12
    %p9 = scmp.ge.s32.totalorder %s8, 4
    %s18 = sphi 0, %s20
    %s21 = sphi 0, %s18
    %s22 = sphi 0, %s21
    %s38 = sphi 0, %s22
    %s42 = sphi 0, %s42
    %s44 = sphi 0, %s42
    %s45 = sphi 0, %s44
    %s59 = sphi 0, %s45
    %s65 = sphi 0, %s67
    %s68 = sphi 0, %s65
    %s69 = sphi 0, %s68
    %s85 = sphi 0, %s69
  $region4: #{basic_block_forward.6} parent=0 // loop_header_branch
    %11 = sbr.rel (%p9) target = $region8
  $region5: #{basic_block_forward.6} parent=0 // loop_body
    %s13 = ssub.s32 %s8, 1
    %s14 = ssub.s32 %s8, 2
    %s15 = sadd.s32 %s8, 1
    %s16 = ssub.s32 %s8, %s15
    %p17 = scmp.eq.s32.totalorder %s16, 0
    %s19 = sadd.s32 %s18, 1
    %s20 = scalar_select %p17, %s18, %s19
    %p23 = pneg %p17
    %p24 = scmp.eq.s32.totalorder %s8, 1
    %p25 = por %p23, %p24
    %p26 = scmp.ne.s32.totalorder %s18, %s21
    %p27 = scmp.eq.s32.totalorder %s8, 0
    %p28 = por %p26, %p27
    %p29 = scmp.ne.s32.totalorder %s18, %s21
    %p30 = scmp.eq.s32.totalorder %s13, 1
    %p31 = por %p29, %p30
    %p32 = scmp.ne.s32.totalorder %s21, %s22
    %p33 = scmp.eq.s32.totalorder %s13, 0
    %p34 = por %p32, %p33
    %p35 = scmp.ne.s32.totalorder %s21, %s22
    %p36 = scmp.eq.s32.totalorder %s14, 1
    %p37 = por %p35, %p36
    %p39 = scmp.ne.s32.totalorder %s22, %s38
    %p40 = scmp.eq.s32.totalorder %s14, 0
    %p41 = por %p39, %p40
    %s43 = sadd.s32 %s42, 1
    %p46 = scmp.eq.s32.totalorder %s8, 1
    %p47 = scmp.ne.s32.totalorder %s42, %s44
    %p48 = scmp.eq.s32.totalorder %s8, 0
    %p49 = por %p47, %p48
    %p50 = scmp.ne.s32.totalorder %s42, %s44
    %p51 = scmp.eq.s32.totalorder %s13, 1
    %p52 = por %p50, %p51
    %p53 = scmp.ne.s32.totalorder %s44, %s45
    %p54 = scmp.eq.s32.totalorder %s13, 0
    %p55 = por %p53, %p54
    %p56 = scmp.ne.s32.totalorder %s44, %s45
    %p57 = scmp.eq.s32.totalorder %s14, 1
    %p58 = por %p56, %p57
    %p60 = scmp.ne.s32.totalorder %s45, %s59
    %p61 = scmp.eq.s32.totalorder %s14, 0
    %p62 = por %p60, %p61
    %s63 = ssub.s32 %s8, %s15
    %p64 = scmp.eq.s32.totalorder %s63, 0
    %s66 = sadd.s32 %s65, 1
    %s67 = scalar_select %p64, %s65, %s66
    %p70 = pneg %p64
    %p71 = scmp.eq.s32.totalorder %s8, 1
    %p72 = por %p70, %p71
    %p73 = scmp.ne.s32.totalorder %s65, %s68
    %p74 = scmp.eq.s32.totalorder %s8, 0
    %p75 = por %p73, %p74
    %p76 = scmp.ne.s32.totalorder %s65, %s68
    %p77 = scmp.eq.s32.totalorder %s13, 1
    %p78 = por %p76, %p77
    %p79 = scmp.ne.s32.totalorder %s68, %s69
    %p80 = scmp.eq.s32.totalorder %s13, 0
    %p81 = por %p79, %p80
    %p82 = scmp.ne.s32.totalorder %s68, %s69
    %p83 = scmp.eq.s32.totalorder %s14, 1
    %p84 = por %p82, %p83
    %p86 = scmp.ne.s32.totalorder %s69, %s85
    %p87 = scmp.eq.s32.totalorder %s14, 0
    %p88 = por %p86, %p87
    %p89 = scmp.le.s32.totalorder 1, %s8
    %p90 = scmp.lt.s32.totalorder %s8, 3
    %p91 = pnand %p89, %p90
    %p92 = pneg %p91
    // Predicated region
    $region9: #{basic_block_forward.6} parent=5 // pred_check
      _
    $region10: #{basic_block_forward.6} parent=5 // pred_check_branch
      %94 = sbr.rel (%p91) target = $region12
    $region11: #{basic_block_forward.6} parent=5 // pred_region
      %s95 = ssub.s32 %s8, 1
      // Predicated region
      $region13: #{basic_block_forward.6} parent=11 // pred_check
        %p96 = pneg %p55
      $region14: #{basic_block_forward.6} parent=11 // pred_check_branch
        %98 = sbr.rel (%p96) target = $region16
      $region15: #{basic_block_forward.6} parent=11 // pred_region
        _
      $region16: #{basic_block_forward.6} parent=11 // pred_fallthru
        _
    $region12: #{basic_block_forward.6} parent=5 // pred_fallthru
      _
    %p99 = scmp.lt.s32.totalorder %s8, 2
    // Predicated region
    $region17: #{basic_block_forward.6} parent=5 // pred_check
      %p100 = pneg %p99
    $region18: #{basic_block_forward.6} parent=5 // pred_check_branch
      %102 = sbr.rel (%p100) target = $region20
    $region19: #{basic_block_forward.6} parent=5 // pred_region
      // Predicated region
      $region21: #{basic_block_forward.6} parent=19 // pred_check
        %p103 = pneg %p28
      $region22: #{basic_block_forward.6} parent=19 // pred_check_branch
        %105 = sbr.rel (%p103) target = $region24
      $region23: #{basic_block_forward.6} parent=19 // pred_region
        %s106 = smul.u32 8, %s8
        %p107 = scmp.lt.s32.totalorder %s106, 15
        %s108 = scalar_select %p107, %s106, 15
        %s109 = smul.addr %s108, 2
        %s110 = smul.addr %s109, 4
        %s111 = scalar_lea.vmem %s0, %s110
        %s112 = smul.u32 8, %s8
      $region24: #{basic_block_forward.6} parent=19 // pred_fallthru
        _
    $region20: #{basic_block_forward.6} parent=5 // pred_fallthru
      _
    %p113 = scmp.le.s32.totalorder 1, %s8
    %p114 = scmp.lt.s32.totalorder %s8, 3
    %p115 = pnand %p113, %p114
    %p116 = pneg %p115
    // Predicated region
    $region25: #{basic_block_forward.6} parent=5 // pred_check
      _
    $region26: #{basic_block_forward.6} parent=5 // pred_check_branch
      %118 = sbr.rel (%p115) target = $region28
    $region27: #{basic_block_forward.6} parent=5 // pred_region
      %s119 = ssub.s32 %s8, 1
      %s120 = smul.u32 8, %s13
      %p121 = scmp.lt.s32.totalorder %s120, 15
      %s122 = scalar_select %p121, %s120, 15
      %s123 = smul.addr %s122, 2
      %s124 = smul.addr %s123, 4
      %s125 = scalar_lea.vmem %s0, %s124
      %p126 = pneg %p34
      %p127 = pneg %p31
      %p128 = pneg %p55
      %p129 = pneg %p52
      %p130 = pneg %p81
      %p131 = pneg %p78
      %p132 = scmp.lt.s32.totalorder %s13, 1
      %s133 = scalar_select %p132, %s13, 1
      %s134 = smul.addr %s133, 2
      %s135 = smul.addr %s134, 2
      %s136 = scalar_lea.vmem %s2, %s135
      %s137 = smul.u32 8, %s13
      %p138 = scmp.lt.s32.totalorder %s137, 15
      %s139 = scalar_select %p138, %s137, 15
      %s140 = smul.addr %s139, 2
      %s141 = smul.addr %s140, 4
      %s142 = scalar_lea.vmem %s0, %s141
      %s143 = smul.u32 8, %s13
      %p144 = scmp.lt.s32.totalorder %s13, 1
      %s145 = scalar_select %p144, %s13, 1
      %s146 = smul.addr %s145, 2
      %s147 = smul.addr %s146, 2
      %s148 = scalar_lea.vmem %s2, %s147
      %v149 = vld [vmem:[%s142] sm:$0xff]
      %v150 = vld [vmem:[%s142 + $0x8] sm:$0xff]
      %v151 = vld [vmem:[%s142 + $0x10] sm:$0xff]
      %v152 = vld [vmem:[%s142 + $0x18] sm:$0xff]
      %v153 = vld [vmem:[%s142 + $0x20] sm:$0xff]
      %v154 = vld [vmem:[%s142 + $0x28] sm:$0xff]
      %v155 = vld [vmem:[%s142 + $0x30] sm:$0xff]
      %v156 = vld [vmem:[%s142 + $0x38] sm:$0xff]
      %v157 = vld [vmem:[%s1] sm:$0xff]
      %v158 = vld [vmem:[%s1 + $0x8] sm:$0xff]
      %v159 = vld [vmem:[%s1 + $0x10] sm:$0xff]
      %v160 = vld [vmem:[%s1 + $0x18] sm:$0xff]
      %v161 = vld [vmem:[%s1 + $0x20] sm:$0xff]
      %v162 = vld [vmem:[%s1 + $0x28] sm:$0xff]
      %v163 = vld [vmem:[%s1 + $0x30] sm:$0xff]
      %v164 = vld [vmem:[%s1 + $0x38] sm:$0xff]
      %v165 = vld [vmem:[%s1 + $0x40] sm:$0xff]
      %v166 = vld [vmem:[%s1 + $0x48] sm:$0xff]
      %v167 = vld [vmem:[%s1 + $0x50] sm:$0xff]
      %v168 = vld [vmem:[%s1 + $0x58] sm:$0xff]
      %v169 = vld [vmem:[%s1 + $0x60] sm:$0xff]
      %v170 = vld [vmem:[%s1 + $0x68] sm:$0xff]
      %v171 = vld [vmem:[%s1 + $0x70] sm:$0xff]
      %v172 = vld [vmem:[%s1 + $0x78] sm:$0xff]
      %v173 = vld [vmem:[%s1 + $0x80] sm:$0xff]
      %v174 = vld [vmem:[%s1 + $0x88] sm:$0xff]
      %v175 = vld [vmem:[%s1 + $0x90] sm:$0xff]
      %v176 = vld [vmem:[%s1 + $0x98] sm:$0xff]
      %v177 = vld [vmem:[%s1 + $0xa0] sm:$0xff]
      %v178 = vld [vmem:[%s1 + $0xa8] sm:$0xff]
      %v179 = vld [vmem:[%s1 + $0xb0] sm:$0xff]
      %v180 = vld [vmem:[%s1 + $0xb8] sm:$0xff]
      %v181 = vld [vmem:[%s1 + $0xc0] sm:$0xff]
      %v182 = vld [vmem:[%s1 + $0xc8] sm:$0xff]
      %v183 = vld [vmem:[%s1 + $0xd0] sm:$0xff]
      %v184 = vld [vmem:[%s1 + $0xd8] sm:$0xff]
      %v185 = vld [vmem:[%s1 + $0xe0] sm:$0xff]
      %v186 = vld [vmem:[%s1 + $0xe8] sm:$0xff]
      %v187 = vld [vmem:[%s1 + $0xf0] sm:$0xff]
      %v188 = vld [vmem:[%s1 + $0xf8] sm:$0xff]
      %v197 = vunpack.c.l.b16 %v149
      %v198 = vunpack.c.h.b16 %v149
      %v199 = vunpack.c.l.b16 %v150
      %v200 = vunpack.c.h.b16 %v150
      %v201 = vunpack.c.l.b16 %v151
      %v202 = vunpack.c.h.b16 %v151
      %v203 = vunpack.c.l.b16 %v152
      %v204 = vunpack.c.h.b16 %v152
      %v205 = vunpack.c.l.b16 %v153
      %v206 = vunpack.c.h.b16 %v153
      %v207 = vunpack.c.l.b16 %v154
      %v208 = vunpack.c.h.b16 %v154
      %v209 = vunpack.c.l.b16 %v155
      %v210 = vunpack.c.h.b16 %v155
      %v211 = vunpack.c.l.b16 %v156
      %v212 = vunpack.c.h.b16 %v156
      %v213 = vpack.c.b16 %v199, %v197
      %v214 = vpack.c.b16 %v200, %v198
      %v215 = vpack.c.b16 %v203, %v201
      %v216 = vpack.c.b16 %v204, %v202
      %v217 = vpack.c.b16 %v207, %v205
      %v218 = vpack.c.b16 %v208, %v206
      %v219 = vpack.c.b16 %v211, %v209
      %v220 = vpack.c.b16 %v212, %v210
      %v261 = vunpack.c.l.b16 %v157
      %v262 = vunpack.c.h.b16 %v157
      %v263 = vunpack.c.l.b16 %v158
      %v264 = vunpack.c.h.b16 %v158
      %v265 = vunpack.c.l.b16 %v159
      %v266 = vunpack.c.h.b16 %v159
      %v267 = vunpack.c.l.b16 %v160
      %v268 = vunpack.c.h.b16 %v160
      %v269 = vunpack.c.l.b16 %v161
      %v270 = vunpack.c.h.b16 %v161
      %v271 = vunpack.c.l.b16 %v162
      %v272 = vunpack.c.h.b16 %v162
      %v273 = vunpack.c.l.b16 %v163
      %v274 = vunpack.c.h.b16 %v163
      %v275 = vunpack.c.l.b16 %v164
      %v276 = vunpack.c.h.b16 %v164
      %v277 = vunpack.c.l.b16 %v165
      %v278 = vunpack.c.h.b16 %v165
      %v279 = vunpack.c.l.b16 %v166
      %v280 = vunpack.c.h.b16 %v166
      %v281 = vunpack.c.l.b16 %v167
      %v282 = vunpack.c.h.b16 %v167
      %v283 = vunpack.c.l.b16 %v168
      %v284 = vunpack.c.h.b16 %v168
      %v285 = vunpack.c.l.b16 %v169
      %v286 = vunpack.c.h.b16 %v169
      %v287 = vunpack.c.l.b16 %v170
      %v288 = vunpack.c.h.b16 %v170
      %v289 = vunpack.c.l.b16 %v171
      %v290 = vunpack.c.h.b16 %v171
      %v291 = vunpack.c.l.b16 %v172
      %v292 = vunpack.c.h.b16 %v172
      %v293 = vunpack.c.l.b16 %v173
      %v294 = vunpack.c.h.b16 %v173
      %v295 = vunpack.c.l.b16 %v174
      %v296 = vunpack.c.h.b16 %v174
      %v297 = vunpack.c.l.b16 %v175
      %v298 = vunpack.c.h.b16 %v175
      %v299 = vunpack.c.l.b16 %v176
      %v300 = vunpack.c.h.b16 %v176
      %v301 = vunpack.c.l.b16 %v177
      %v302 = vunpack.c.h.b16 %v177
      %v303 = vunpack.c.l.b16 %v178
      %v304 = vunpack.c.h.b16 %v178
      %v305 = vunpack.c.l.b16 %v179
      %v306 = vunpack.c.h.b16 %v179
      %v307 = vunpack.c.l.b16 %v180
      %v308 = vunpack.c.h.b16 %v180
      %v309 = vunpack.c.l.b16 %v181
      %v310 = vunpack.c.h.b16 %v181
      %v311 = vunpack.c.l.b16 %v182
      %v312 = vunpack.c.h.b16 %v182
      %v313 = vunpack.c.l.b16 %v183
      %v314 = vunpack.c.h.b16 %v183
      %v315 = vunpack.c.l.b16 %v184
      %v316 = vunpack.c.h.b16 %v184
      %v317 = vunpack.c.l.b16 %v185
      %v318 = vunpack.c.h.b16 %v185
      %v319 = vunpack.c.l.b16 %v186
      %v320 = vunpack.c.h.b16 %v186
      %v321 = vunpack.c.l.b16 %v187
      %v322 = vunpack.c.h.b16 %v187
      %v323 = vunpack.c.l.b16 %v188
      %v324 = vunpack.c.h.b16 %v188
      %v325 = vpack.c.b16 %v263, %v261
      %v326 = vpack.c.b16 %v264, %v262
      %v327 = vpack.c.b16 %v267, %v265
      %v328 = vpack.c.b16 %v268, %v266
      %v329 = vpack.c.b16 %v271, %v269
      %v330 = vpack.c.b16 %v272, %v270
      %v331 = vpack.c.b16 %v275, %v273
      %v332 = vpack.c.b16 %v276, %v274
      %v333 = vpack.c.b16 %v279, %v277
      %v334 = vpack.c.b16 %v280, %v278
      %v335 = vpack.c.b16 %v283, %v281
      %v336 = vpack.c.b16 %v284, %v282
      %v337 = vpack.c.b16 %v287, %v285
      %v338 = vpack.c.b16 %v288, %v286
      %v339 = vpack.c.b16 %v291, %v289
      %v340 = vpack.c.b16 %v292, %v290
      %v341 = vpack.c.b16 %v295, %v293
      %v342 = vpack.c.b16 %v296, %v294
      %v343 = vpack.c.b16 %v299, %v297
      %v344 = vpack.c.b16 %v300, %v298
      %v345 = vpack.c.b16 %v303, %v301
      %v346 = vpack.c.b16 %v304, %v302
      %v347 = vpack.c.b16 %v307, %v305
      %v348 = vpack.c.b16 %v308, %v306
      %v349 = vpack.c.b16 %v311, %v309
      %v350 = vpack.c.b16 %v312, %v310
      %v351 = vpack.c.b16 %v315, %v313
      %v352 = vpack.c.b16 %v316, %v314
      %v353 = vpack.c.b16 %v319, %v317
      %v354 = vpack.c.b16 %v320, %v318
      %v355 = vpack.c.b16 %v323, %v321
      %v356 = vpack.c.b16 %v324, %v322
      %389 = vmatprep.subr.bf16.mxu0 %v326
      %390 = vmatpush1.bf16.msra.mxu0 %v325
      %391 = vmatprep.subr.bf16.mxu0 %v328
      %392 = vmatpush1.bf16.msra.mxu0 %v327
      %393 = vmatprep.subr.bf16.mxu0 %v330
      %394 = vmatpush1.bf16.msra.mxu0 %v329
      %395 = vmatprep.subr.bf16.mxu0 %v332
      %396 = vmatpush1.bf16.msra.mxu0 %v331
      %397 = vmatprep.subr.bf16.mxu0 %v334
      %398 = vmatpush1.bf16.msra.mxu0 %v333
      %399 = vmatprep.subr.bf16.mxu0 %v336
      %400 = vmatpush1.bf16.msra.mxu0 %v335
      %401 = vmatprep.subr.bf16.mxu0 %v338
      %402 = vmatpush1.bf16.msra.mxu0 %v337
      %403 = vmatprep.subr.bf16.mxu0 %v340
      %404 = vmatpush1.bf16.msra.mxu0 %v339
      %405 = vmatprep.subr.bf16.mxu0 %v342
      %406 = vmatpush1.bf16.msra.mxu0 %v341
      %407 = vmatprep.subr.bf16.mxu0 %v344
      %408 = vmatpush1.bf16.msra.mxu0 %v343
      %409 = vmatprep.subr.bf16.mxu0 %v346
      %410 = vmatpush1.bf16.msra.mxu0 %v345
      %411 = vmatprep.subr.bf16.mxu0 %v348
      %412 = vmatpush1.bf16.msra.mxu0 %v347
      %413 = vmatprep.subr.bf16.mxu0 %v350
      %414 = vmatpush1.bf16.msra.mxu0 %v349
      %415 = vmatprep.subr.bf16.mxu0 %v352
      %416 = vmatpush1.bf16.msra.mxu0 %v351
      %417 = vmatprep.subr.bf16.mxu0 %v354
      %418 = vmatpush1.bf16.msra.mxu0 %v353
      %419 = vmatprep.subr.bf16.mxu0 %v356
      %420 = vmatpush1.bf16.msra.mxu0 %v355
      %421 = vmatprep.mubr.bf16.mxu0 %v214
      %422 = vmatmul.mubr.bf16.gmra.mrb[0].mxu0 %v213
      %v423 = vpop.f32.mrb[0].mxu0
      %v424 = vadd.f32 0.0, %v423
      %v425 = vpop.f32.mrb[0].mxu0
      %v426 = vadd.f32 0.0, %v425
      %v427 = vpop.f32.mrb[0].mxu0
      %v428 = vadd.f32 0.0, %v427
      %v429 = vpop.f32.mrb[0].mxu0
      %v430 = vadd.f32 0.0, %v429
      %431 = vmatprep.mubr.bf16.mxu0 %v216
      %432 = vmatmul.mubr.bf16.gmra.mrb[0].mxu0 %v215
      %v433 = vpop.f32.mrb[0].mxu0
      %v434 = vadd.f32 0.0, %v433
      %v435 = vpop.f32.mrb[0].mxu0
      %v436 = vadd.f32 0.0, %v435
      %v437 = vpop.f32.mrb[0].mxu0
      %v438 = vadd.f32 0.0, %v437
      %v439 = vpop.f32.mrb[0].mxu0
      %v440 = vadd.f32 0.0, %v439
      %441 = vmatprep.mubr.bf16.mxu0 %v218
      %442 = vmatmul.mubr.bf16.gmra.mrb[0].mxu0 %v217
      %v443 = vpop.f32.mrb[0].mxu0
      %v444 = vadd.f32 0.0, %v443
      %v445 = vpop.f32.mrb[0].mxu0
      %v446 = vadd.f32 0.0, %v445
      %v447 = vpop.f32.mrb[0].mxu0
      %v448 = vadd.f32 0.0, %v447
      %v449 = vpop.f32.mrb[0].mxu0
      %v450 = vadd.f32 0.0, %v449
      %451 = vmatprep.mubr.bf16.mxu0 %v220
      %452 = vmatmul.mubr.bf16.gmra.mrb[0].mxu0 %v219
      %v453 = vpop.f32.mrb[0].mxu0
      %v454 = vadd.f32 0.0, %v453
      %v455 = vpop.f32.mrb[0].mxu0
      %v456 = vadd.f32 0.0, %v455
      %v457 = vpop.f32.mrb[0].mxu0
      %v458 = vadd.f32 0.0, %v457
      %v459 = vpop.f32.mrb[0].mxu0
      %v460 = vadd.f32 0.0, %v459
      %461 = vdwg.mxu0
      %v462 = vadd.f32 %v424, %v428
      %v463 = vadd.f32 %v462, %v434
      %v464 = vadd.f32 %v463, %v438
      %v465 = vadd.f32 %v464, %v444
      %v466 = vadd.f32 %v465, %v448
      %v467 = vadd.f32 %v466, %v454
      %v468 = vadd.f32 %v467, %v458
      %v469 = vrot.slane %v468, 4
      %v470 = vadd.f32 %v468, %v469
      %v471 = vrot.slane %v470, 2
      %v472 = vadd.f32 %v470, %v471
      %v473 = vrot.slane %v472, 1
      %v474 = vadd.f32 %v472, %v473
      %v475 = vadd.f32 %v426, %v430
      %v476 = vadd.f32 %v475, %v436
      %v477 = vadd.f32 %v476, %v440
      %v478 = vadd.f32 %v477, %v446
      %v479 = vadd.f32 %v478, %v450
      %v480 = vadd.f32 %v479, %v456
      %v481 = vadd.f32 %v480, %v460
      %v482 = vrot.slane %v481, 4
      %v483 = vadd.f32 %v481, %v482
      %v484 = vrot.slane %v483, 2
      %v485 = vadd.f32 %v483, %v484
      %v486 = vrot.slane %v485, 1
      %v487 = vadd.f32 %v485, %v486
      %v490 = vcombine.low %v474, %v487
      %v492 = vunpack.c.l.s4 1966171168
      %v493 = vunpack.c.0.s8 %v492
      %v494 = vlaneseq
      %v495 = vshrl.u32 %v494, 7
      %v496 = vsub.s32 %v493, %v495
      %v497 = vrot.slane %v490, %v496
      %v499 = vunpack.c.l.s4 1966171168
      %v500 = vunpack.c.0.s8 %v499
      %v501 = vlaneseq
      %v502 = vshrl.u32 %v501, 7
      %v503 = vsub.s32 %v500, %v502
      %v504 = vrot.slane %v497, %v503
      %v506 = vlaneseq
      %vm507 = vcmp.ge.s32.totalorder %v506, 0
      %vm508 = vcmp.lt.s32.totalorder %v506, 256
      %vm509 = vmand %vm507, %vm508
      %510 = vst.msk [vmem:[%s148] ss:$2 sm:$0x3] %vm509, %v504
      %v511 = vmul.f32 %v424, %v424
      %v512 = vmul.f32 %v426, %v426
      %v513 = vmul.f32 %v428, %v428
      %v514 = vmul.f32 %v430, %v430
      %v515 = vmul.f32 %v434, %v434
      %v516 = vmul.f32 %v436, %v436
      %v517 = vmul.f32 %v438, %v438
      %v518 = vmul.f32 %v440, %v440
      %v519 = vmul.f32 %v444, %v444
      %v520 = vmul.f32 %v446, %v446
      %v521 = vmul.f32 %v448, %v448
      %v522 = vmul.f32 %v450, %v450
      %v523 = vmul.f32 %v454, %v454
      %v524 = vmul.f32 %v456, %v456
      %v525 = vmul.f32 %v458, %v458
      %v526 = vmul.f32 %v460, %v460
      %v527 = vadd.f32 %v511, %v513
      %v528 = vadd.f32 %v527, %v515
      %v529 = vadd.f32 %v528, %v517
      %v530 = vadd.f32 %v529, %v519
      %v531 = vadd.f32 %v530, %v521
      %v532 = vadd.f32 %v531, %v523
      %v533 = vadd.f32 %v532, %v525
      %v534 = vrot.slane %v533, 4
      %v535 = vadd.f32 %v533, %v534
      %v536 = vrot.slane %v535, 2
      %v537 = vadd.f32 %v535, %v536
      %v538 = vrot.slane %v537, 1
      %v539 = vadd.f32 %v537, %v538
      %v540 = vadd.f32 %v512, %v514
      %v541 = vadd.f32 %v540, %v516
      %v542 = vadd.f32 %v541, %v518
      %v543 = vadd.f32 %v542, %v520
      %v544 = vadd.f32 %v543, %v522
      %v545 = vadd.f32 %v544, %v524
      %v546 = vadd.f32 %v545, %v526
      %v547 = vrot.slane %v546, 4
      %v548 = vadd.f32 %v546, %v547
      %v549 = vrot.slane %v548, 2
      %v550 = vadd.f32 %v548, %v549
      %v551 = vrot.slane %v550, 1
      %v552 = vadd.f32 %v550, %v551
      %v555 = vcombine.low %v539, %v552
      %v557 = vunpack.c.l.s4 1966171168
      %v558 = vunpack.c.0.s8 %v557
      %v559 = vlaneseq
      %v560 = vshrl.u32 %v559, 7
      %v561 = vsub.s32 %v558, %v560
      %v562 = vrot.slane %v555, %v561
      %v564 = vunpack.c.l.s4 1966171168
      %v565 = vunpack.c.0.s8 %v564
      %v566 = vlaneseq
      %v567 = vshrl.u32 %v566, 7
      %v568 = vsub.s32 %v565, %v567
      %v569 = vrot.slane %v562, %v568
      %s571 = scalar_lea.vmem %s148, 1
      %572 = vst.msk [vmem:[%s571] ss:$2 sm:$0x3] %vm509, %v569
      %p573 = scmp.lt.s32.totalorder %s13, 1
      %s574 = scalar_select %p573, %s13, 1
      %s575 = smul.addr %s574, 2
      %s576 = smul.addr %s575, 2
      %s577 = scalar_lea.vmem %s2, %s576
      // Predicated region
      $region29: #{basic_block_forward.6} parent=27 // pred_check
        %p578 = pneg %p78
      $region30: #{basic_block_forward.6} parent=27 // pred_check_branch
        %580 = sbr.rel (%p578) target = $region32
      $region31: #{basic_block_forward.6} parent=27 // pred_region
        _
      $region32: #{basic_block_forward.6} parent=27 // pred_fallthru
        _
    $region28: #{basic_block_forward.6} parent=5 // pred_fallthru
      _
    %p581 = scmp.le.s32.totalorder 2, %s8
    // Predicated region
    $region33: #{basic_block_forward.6} parent=5 // pred_check
      %p582 = pneg %p581
    $region34: #{basic_block_forward.6} parent=5 // pred_check_branch
      %584 = sbr.rel (%p582) target = $region36
    $region35: #{basic_block_forward.6} parent=5 // pred_region
      %s585 = ssub.s32 %s8, 2
      // Predicated region
      $region37: #{basic_block_forward.6} parent=35 // pred_check
        %p586 = pneg %p84
      $region38: #{basic_block_forward.6} parent=35 // pred_check_branch
        %588 = sbr.rel (%p586) target = $region40
      $region39: #{basic_block_forward.6} parent=35 // pred_region
        %p589 = scmp.lt.s32.totalorder %s14, 1
        %s590 = scalar_select %p589, %s14, 1
        %s591 = smul.addr %s590, 2
        %s592 = smul.addr %s591, 2
        %s593 = scalar_lea.vmem %s2, %s592
      $region40: #{basic_block_forward.6} parent=35 // pred_fallthru
        _
    $region36: #{basic_block_forward.6} parent=5 // pred_fallthru
      _
  $region6: #{basic_block_forward.6} parent=0 // loop_footer
    %s12 = sadd.s32 1, %s8
  $region7: #{basic_block_forward.6} parent=0 // loop_footer_branch
    %7 = sbr.rel target = $region3
  $region8: #{basic_block_forward.6} parent=0 // loop_exit
    _

// kernel: basic_block_forward.7
$region0: #{basic_block_forward.7}
  #allocation0 [shape = 'u32[]', space=smem, size = 0x4, offset = 0x4, fixed_abs, tag = 'smem constant byte address 0x4 - core index']
  #allocation1 [shape = 'u32[144,128]{1,0:T(1,128)}', space=vmem, size = 0x12000, scoped, tag = 'internal scratch']
  %s0 = inlined_call_operand.vmem [shape: bf16[128,256], index: 0, kind: input, shape index: {}]
  %s1 = inlined_call_operand.vmem [shape: bf16[256,256], index: 1, kind: input, shape index: {}]
  %s2 = inlined_call_operand.vmem [shape: f32[2,2,256], index: 2, kind: input, shape index: {}]
  %s3 = inlined_call_operand.vmem [shape: f32[1,256], index: 3, kind: input, shape index: {}]
  %s4 = inlined_call_operand.vmem [shape: f32[1,256], index: 4, kind: input, shape index: {}]
  %s5 = inlined_call_operand.hbm [shape: f32[128,128], index: 5, kind: output, shape index: {}]
  %s6 = sld [smem:[#allocation0]]
  $region53: #{basic_block_forward.7} parent=0
    _
  %s8 = ssub.s32 1, %s6
  %s9 = scalar_select 0, %s8, %s6
  $region1: #{basic_block_forward.7} parent=0
    #allocation2 [shape = 'u8[65536]{0}', space=vmem, size = 0x10000, scoped, tag = 'output window, operand 0']
    #allocation3 [shape = 's32[2]{0}', space=sflag, size = 0x8, scoped, tag = 'scoped memory for basic_block_forward.7']
    %10 = vsyncpa [#allocation3], 0
    %s11 = scalar_lea.sflag [#allocation3], 1
    %12 = vsyncpa %s11, 0
    loop: start=0, step=1, limit=4
    $region2: #{basic_block_forward.7} parent=1 // loop_pre_header
      _
    $region3: #{basic_block_forward.7} parent=1 // loop_header
      %s14 = sphi 0, %s18
      %p15 = scmp.ge.s32.totalorder %s14, 4
      %s24 = sphi 0, %s26
      %s27 = sphi 0, %s24
      %s28 = sphi 0, %s27
      %s44 = sphi 0, %s28
      %s48 = sphi 0, %s48
      %s50 = sphi 0, %s48
      %s51 = sphi 0, %s50
      %s65 = sphi 0, %s51
      %s69 = sphi 0, %s69
      %s71 = sphi 0, %s69
      %s72 = sphi 0, %s71
      %s86 = sphi 0, %s72
      %s90 = sphi 0, %s90
      %s92 = sphi 0, %s90
      %s93 = sphi 0, %s92
      %s107 = sphi 0, %s93
      %s111 = sphi 0, %s111
      %s113 = sphi 0, %s111
      %s114 = sphi 0, %s113
      %s128 = sphi 0, %s114
      %s134 = sphi 0, %s136
      %s137 = sphi 0, %s134
      %s138 = sphi 0, %s137
      %s154 = sphi 0, %s138
    $region4: #{basic_block_forward.7} parent=1 // loop_header_branch
      %17 = sbr.rel (%p15) target = $region8
    $region5: #{basic_block_forward.7} parent=1 // loop_body
      %s19 = ssub.s32 %s14, 1
      %s20 = ssub.s32 %s14, 2
      %s21 = sadd.s32 %s14, 1
      %s22 = ssub.s32 %s14, %s21
      %p23 = scmp.eq.s32.totalorder %s22, 0
      %s25 = sadd.s32 %s24, 1
      %s26 = scalar_select %p23, %s24, %s25
      %p29 = pneg %p23
      %p30 = scmp.eq.s32.totalorder %s14, 1
      %p31 = por %p29, %p30
      %p32 = scmp.ne.s32.totalorder %s24, %s27
      %p33 = scmp.eq.s32.totalorder %s14, 0
      %p34 = por %p32, %p33
      %p35 = scmp.ne.s32.totalorder %s24, %s27
      %p36 = scmp.eq.s32.totalorder %s19, 1
      %p37 = por %p35, %p36
      %p38 = scmp.ne.s32.totalorder %s27, %s28
      %p39 = scmp.eq.s32.totalorder %s19, 0
      %p40 = por %p38, %p39
      %p41 = scmp.ne.s32.totalorder %s27, %s28
      %p42 = scmp.eq.s32.totalorder %s20, 1
      %p43 = por %p41, %p42
      %p45 = scmp.ne.s32.totalorder %s28, %s44
      %p46 = scmp.eq.s32.totalorder %s20, 0
      %p47 = por %p45, %p46
      %s49 = sadd.s32 %s48, 1
      %p52 = scmp.eq.s32.totalorder %s14, 1
      %p53 = scmp.ne.s32.totalorder %s48, %s50
      %p54 = scmp.eq.s32.totalorder %s14, 0
      %p55 = por %p53, %p54
      %p56 = scmp.ne.s32.totalorder %s48, %s50
      %p57 = scmp.eq.s32.totalorder %s19, 1
      %p58 = por %p56, %p57
      %p59 = scmp.ne.s32.totalorder %s50, %s51
      %p60 = scmp.eq.s32.totalorder %s19, 0
      %p61 = por %p59, %p60
      %p62 = scmp.ne.s32.totalorder %s50, %s51
      %p63 = scmp.eq.s32.totalorder %s20, 1
      %p64 = por %p62, %p63
      %p66 = scmp.ne.s32.totalorder %s51, %s65
      %p67 = scmp.eq.s32.totalorder %s20, 0
      %p68 = por %p66, %p67
      %s70 = sadd.s32 %s69, 1
      %p73 = scmp.eq.s32.totalorder %s14, 1
      %p74 = scmp.ne.s32.totalorder %s69, %s71
      %p75 = scmp.eq.s32.totalorder %s14, 0
      %p76 = por %p74, %p75
      %p77 = scmp.ne.s32.totalorder %s69, %s71
      %p78 = scmp.eq.s32.totalorder %s19, 1
      %p79 = por %p77, %p78
      %p80 = scmp.ne.s32.totalorder %s71, %s72
      %p81 = scmp.eq.s32.totalorder %s19, 0
      %p82 = por %p80, %p81
      %p83 = scmp.ne.s32.totalorder %s71, %s72
      %p84 = scmp.eq.s32.totalorder %s20, 1
      %p85 = por %p83, %p84
      %p87 = scmp.ne.s32.totalorder %s72, %s86
      %p88 = scmp.eq.s32.totalorder %s20, 0
      %p89 = por %p87, %p88
      %s91 = sadd.s32 %s90, 1
      %p94 = scmp.eq.s32.totalorder %s14, 1
      %p95 = scmp.ne.s32.totalorder %s90, %s92
      %p96 = scmp.eq.s32.totalorder %s14, 0
      %p97 = por %p95, %p96
      %p98 = scmp.ne.s32.totalorder %s90, %s92
      %p99 = scmp.eq.s32.totalorder %s19, 1
      %p100 = por %p98, %p99
      %p101 = scmp.ne.s32.totalorder %s92, %s93
      %p102 = scmp.eq.s32.totalorder %s19, 0
      %p103 = por %p101, %p102
      %p104 = scmp.ne.s32.totalorder %s92, %s93
      %p105 = scmp.eq.s32.totalorder %s20, 1
      %p106 = por %p104, %p105
      %p108 = scmp.ne.s32.totalorder %s93, %s107
      %p109 = scmp.eq.s32.totalorder %s20, 0
      %p110 = por %p108, %p109
      %s112 = sadd.s32 %s111, 1
      %p115 = scmp.eq.s32.totalorder %s14, 1
      %p116 = scmp.ne.s32.totalorder %s111, %s113
      %p117 = scmp.eq.s32.totalorder %s14, 0
      %p118 = por %p116, %p117
      %p119 = scmp.ne.s32.totalorder %s111, %s113
      %p120 = scmp.eq.s32.totalorder %s19, 1
      %p121 = por %p119, %p120
      %p122 = scmp.ne.s32.totalorder %s113, %s114
      %p123 = scmp.eq.s32.totalorder %s19, 0
      %p124 = por %p122, %p123
      %p125 = scmp.ne.s32.totalorder %s113, %s114
      %p126 = scmp.eq.s32.totalorder %s20, 1
      %p127 = por %p125, %p126
      %p129 = scmp.ne.s32.totalorder %s114, %s128
      %p130 = scmp.eq.s32.totalorder %s20, 0
      %p131 = por %p129, %p130
      %s132 = ssub.s32 %s14, %s21
      %p133 = scmp.eq.s32.totalorder %s132, 0
      %s135 = sadd.s32 %s134, 1
      %s136 = scalar_select %p133, %s134, %s135
      %p139 = pneg %p133
      %p140 = scmp.eq.s32.totalorder %s14, 1
      %p141 = por %p139, %p140
      %p142 = scmp.ne.s32.totalorder %s134, %s137
      %p143 = scmp.eq.s32.totalorder %s14, 0
      %p144 = por %p142, %p143
      %p145 = scmp.ne.s32.totalorder %s134, %s137
      %p146 = scmp.eq.s32.totalorder %s19, 1
      %p147 = por %p145, %p146
      %p148 = scmp.ne.s32.totalorder %s137, %s138
      %p149 = scmp.eq.s32.totalorder %s19, 0
      %p150 = por %p148, %p149
      %p151 = scmp.ne.s32.totalorder %s137, %s138
      %p152 = scmp.eq.s32.totalorder %s20, 1
      %p153 = por %p151, %p152
      %p155 = scmp.ne.s32.totalorder %s138, %s154
      %p156 = scmp.eq.s32.totalorder %s20, 0
      %p157 = por %p155, %p156
      %p158 = scmp.le.s32.totalorder 1, %s14
      %p159 = scmp.lt.s32.totalorder %s14, 3
      %p160 = pnand %p158, %p159
      %p161 = pneg %p160
      // Predicated region
      $region9: #{basic_block_forward.7} parent=5 // pred_check
        _
      $region10: #{basic_block_forward.7} parent=5 // pred_check_branch
        %163 = sbr.rel (%p160) target = $region12
      $region11: #{basic_block_forward.7} parent=5 // pred_region
        %s164 = ssub.s32 %s14, 1
        // Predicated region
        $region13: #{basic_block_forward.7} parent=11 // pred_check
          %p165 = pneg %p61
        $region14: #{basic_block_forward.7} parent=11 // pred_check_branch
          %167 = sbr.rel (%p165) target = $region16
        $region15: #{basic_block_forward.7} parent=11 // pred_region
          _
        $region16: #{basic_block_forward.7} parent=11 // pred_fallthru
          _
        // Predicated region
        $region17: #{basic_block_forward.7} parent=11 // pred_check
          %p168 = pneg %p82
        $region18: #{basic_block_forward.7} parent=11 // pred_check_branch
          %170 = sbr.rel (%p168) target = $region20
        $region19: #{basic_block_forward.7} parent=11 // pred_region
          _
        $region20: #{basic_block_forward.7} parent=11 // pred_fallthru
          _
        // Predicated region
        $region21: #{basic_block_forward.7} parent=11 // pred_check
          %p171 = pneg %p103
        $region22: #{basic_block_forward.7} parent=11 // pred_check_branch
          %173 = sbr.rel (%p171) target = $region24
        $region23: #{basic_block_forward.7} parent=11 // pred_region
          _
        $region24: #{basic_block_forward.7} parent=11 // pred_fallthru
          _
        // Predicated region
        $region25: #{basic_block_forward.7} parent=11 // pred_check
          %p174 = pneg %p124
        $region26: #{basic_block_forward.7} parent=11 // pred_check_branch
          %176 = sbr.rel (%p174) target = $region28
        $region27: #{basic_block_forward.7} parent=11 // pred_region
          _
        $region28: #{basic_block_forward.7} parent=11 // pred_fallthru
          _
      $region12: #{basic_block_forward.7} parent=5 // pred_fallthru
        _
      %p177 = scmp.lt.s32.totalorder %s14, 2
      // Predicated region
      $region29: #{basic_block_forward.7} parent=5 // pred_check
        %p178 = pneg %p177
      $region30: #{basic_block_forward.7} parent=5 // pred_check_branch
        %180 = sbr.rel (%p178) target = $region32
      $region31: #{basic_block_forward.7} parent=5 // pred_region
        // Predicated region
        $region33: #{basic_block_forward.7} parent=31 // pred_check
          %p181 = pneg %p34
        $region34: #{basic_block_forward.7} parent=31 // pred_check_branch
          %183 = sbr.rel (%p181) target = $region36
        $region35: #{basic_block_forward.7} parent=31 // pred_region
          %s184 = smul.u32 8, %s14
          %p185 = scmp.lt.s32.totalorder %s184, 15
          %s186 = scalar_select %p185, %s184, 15
          %s187 = smul.addr %s186, 2
          %s188 = smul.addr %s187, 4
          %s189 = scalar_lea.vmem %s0, %s188
          %s190 = smul.u32 8, %s14
        $region36: #{basic_block_forward.7} parent=31 // pred_fallthru
          _
      $region32: #{basic_block_forward.7} parent=5 // pred_fallthru
        _
      %p191 = scmp.le.s32.totalorder 1, %s14
      %p192 = scmp.lt.s32.totalorder %s14, 3
      %p193 = pnand %p191, %p192
      %p194 = pneg %p193
      // Predicated region
      $region37: #{basic_block_forward.7} parent=5 // pred_check
        _
      $region38: #{basic_block_forward.7} parent=5 // pred_check_branch
        %196 = sbr.rel (%p193) target = $region40
      $region39: #{basic_block_forward.7} parent=5 // pred_region
        %s197 = ssub.s32 %s14, 1
        %s198 = smul.u32 8, %s19
        %p199 = scmp.lt.s32.totalorder %s198, 15
        %s200 = scalar_select %p199, %s198, 15
        %s201 = smul.addr %s200, 2
        %s202 = smul.addr %s201, 4
        %s203 = scalar_lea.vmem %s0, %s202
        %p204 = pneg %p40
        %p205 = pneg %p37
        %p206 = pneg %p61
        %p207 = pneg %p58
        %p208 = pneg %p82
        %p209 = pneg %p79
        %p210 = pneg %p103
        %p211 = pneg %p100
        %p212 = pneg %p124
        %p213 = pneg %p121
        %p214 = pneg %p150
        %p215 = pneg %p147
        %s216 = sand.u32 %s137, 1
        %s217 = scalar_lea.sflag [#allocation3], %s216
        %s218 = sand.u32 %s137, 1
        %s219 = smul.addr %s218, 64
        %s220 = scalar_lea.vmem [#allocation2], %s219
        %s221 = smul.u32 8, %s19
        %p222 = scmp.lt.s32.totalorder %s221, 15
        %s223 = scalar_select %p222, %s221, 15
        %s224 = smul.addr %s223, 2
        %s225 = smul.addr %s224, 4
        %s226 = scalar_lea.vmem %s0, %s225
        %s227 = smul.u32 8, %s19
        %s228 = smul.u32 8, %s19
        %v229 = vld [vmem:[%s226] sm:$0xff]
        %v230 = vld [vmem:[%s226 + $0x8] sm:$0xff]
        %v231 = vld [vmem:[%s226 + $0x10] sm:$0xff]
        %v232 = vld [vmem:[%s226 + $0x18] sm:$0xff]
        %v233 = vld [vmem:[%s226 + $0x20] sm:$0xff]
        %v234 = vld [vmem:[%s226 + $0x28] sm:$0xff]
        %v235 = vld [vmem:[%s226 + $0x30] sm:$0xff]
        %v236 = vld [vmem:[%s226 + $0x38] sm:$0xff]
        %v237 = vld [vmem:[%s1] sm:$0xff]
        %v238 = vld [vmem:[%s1 + $0x8] sm:$0xff]
        %v239 = vld [vmem:[%s1 + $0x10] sm:$0xff]
        %v240 = vld [vmem:[%s1 + $0x18] sm:$0xff]
        %v241 = vld [vmem:[%s1 + $0x20] sm:$0xff]
        %v242 = vld [vmem:[%s1 + $0x28] sm:$0xff]
        %v243 = vld [vmem:[%s1 + $0x30] sm:$0xff]
        %v244 = vld [vmem:[%s1 + $0x38] sm:$0xff]
        %v245 = vld [vmem:[%s1 + $0x40] sm:$0xff]
        %v246 = vld [vmem:[%s1 + $0x48] sm:$0xff]
        %v247 = vld [vmem:[%s1 + $0x50] sm:$0xff]
        %v248 = vld [vmem:[%s1 + $0x58] sm:$0xff]
        %v249 = vld [vmem:[%s1 + $0x60] sm:$0xff]
        %v250 = vld [vmem:[%s1 + $0x68] sm:$0xff]
        %v251 = vld [vmem:[%s1 + $0x70] sm:$0xff]
        %v252 = vld [vmem:[%s1 + $0x78] sm:$0xff]
        %v253 = vld [vmem:[%s1 + $0x80] sm:$0xff]
        %v254 = vld [vmem:[%s1 + $0x88] sm:$0xff]
        %v255 = vld [vmem:[%s1 + $0x90] sm:$0xff]
        %v256 = vld [vmem:[%s1 + $0x98] sm:$0xff]
        %v257 = vld [vmem:[%s1 + $0xa0] sm:$0xff]
        %v258 = vld [vmem:[%s1 + $0xa8] sm:$0xff]
        %v259 = vld [vmem:[%s1 + $0xb0] sm:$0xff]
        %v260 = vld [vmem:[%s1 + $0xb8] sm:$0xff]
        %v261 = vld [vmem:[%s1 + $0xc0] sm:$0xff]
        %v262 = vld [vmem:[%s1 + $0xc8] sm:$0xff]
        %v263 = vld [vmem:[%s1 + $0xd0] sm:$0xff]
        %v264 = vld [vmem:[%s1 + $0xd8] sm:$0xff]
        %v265 = vld [vmem:[%s1 + $0xe0] sm:$0xff]
        %v266 = vld [vmem:[%s1 + $0xe8] sm:$0xff]
        %v267 = vld [vmem:[%s1 + $0xf0] sm:$0xff]
        %v268 = vld [vmem:[%s1 + $0xf8] sm:$0xff]
        %v277 = vunpack.c.l.b16 %v229
        %v278 = vunpack.c.h.b16 %v229
        %v279 = vunpack.c.l.b16 %v230
        %v280 = vunpack.c.h.b16 %v230
        %v281 = vunpack.c.l.b16 %v231
        %v282 = vunpack.c.h.b16 %v231
        %v283 = vunpack.c.l.b16 %v232
        %v284 = vunpack.c.h.b16 %v232
        %v285 = vunpack.c.l.b16 %v233
        %v286 = vunpack.c.h.b16 %v233
        %v287 = vunpack.c.l.b16 %v234
        %v288 = vunpack.c.h.b16 %v234
        %v289 = vunpack.c.l.b16 %v235
        %v290 = vunpack.c.h.b16 %v235
        %v291 = vunpack.c.l.b16 %v236
        %v292 = vunpack.c.h.b16 %v236
        %v293 = vpack.c.b16 %v279, %v277
        %v294 = vpack.c.b16 %v280, %v278
        %v295 = vpack.c.b16 %v283, %v281
        %v296 = vpack.c.b16 %v284, %v282
        %v297 = vpack.c.b16 %v287, %v285
        %v298 = vpack.c.b16 %v288, %v286
        %v299 = vpack.c.b16 %v291, %v289
        %v300 = vpack.c.b16 %v292, %v290
        %v341 = vunpack.c.l.b16 %v237
        %v342 = vunpack.c.h.b16 %v237
        %v343 = vunpack.c.l.b16 %v238
        %v344 = vunpack.c.h.b16 %v238
        %v345 = vunpack.c.l.b16 %v239
        %v346 = vunpack.c.h.b16 %v239
        %v347 = vunpack.c.l.b16 %v240
        %v348 = vunpack.c.h.b16 %v240
        %v349 = vunpack.c.l.b16 %v241
        %v350 = vunpack.c.h.b16 %v241
        %v351 = vunpack.c.l.b16 %v242
        %v352 = vunpack.c.h.b16 %v242
        %v353 = vunpack.c.l.b16 %v243
        %v354 = vunpack.c.h.b16 %v243
        %v355 = vunpack.c.l.b16 %v244
        %v356 = vunpack.c.h.b16 %v244
        %v357 = vunpack.c.l.b16 %v245
        %v358 = vunpack.c.h.b16 %v245
        %v359 = vunpack.c.l.b16 %v246
        %v360 = vunpack.c.h.b16 %v246
        %v361 = vunpack.c.l.b16 %v247
        %v362 = vunpack.c.h.b16 %v247
        %v363 = vunpack.c.l.b16 %v248
        %v364 = vunpack.c.h.b16 %v248
        %v365 = vunpack.c.l.b16 %v249
        %v366 = vunpack.c.h.b16 %v249
        %v367 = vunpack.c.l.b16 %v250
        %v368 = vunpack.c.h.b16 %v250
        %v369 = vunpack.c.l.b16 %v251
        %v370 = vunpack.c.h.b16 %v251
        %v371 = vunpack.c.l.b16 %v252
        %v372 = vunpack.c.h.b16 %v252
        %v373 = vunpack.c.l.b16 %v253
        %v374 = vunpack.c.h.b16 %v253
        %v375 = vunpack.c.l.b16 %v254
        %v376 = vunpack.c.h.b16 %v254
        %v377 = vunpack.c.l.b16 %v255
        %v378 = vunpack.c.h.b16 %v255
        %v379 = vunpack.c.l.b16 %v256
        %v380 = vunpack.c.h.b16 %v256
        %v381 = vunpack.c.l.b16 %v257
        %v382 = vunpack.c.h.b16 %v257
        %v383 = vunpack.c.l.b16 %v258
        %v384 = vunpack.c.h.b16 %v258
        %v385 = vunpack.c.l.b16 %v259
        %v386 = vunpack.c.h.b16 %v259
        %v387 = vunpack.c.l.b16 %v260
        %v388 = vunpack.c.h.b16 %v260
        %v389 = vunpack.c.l.b16 %v261
        %v390 = vunpack.c.h.b16 %v261
        %v391 = vunpack.c.l.b16 %v262
        %v392 = vunpack.c.h.b16 %v262
        %v393 = vunpack.c.l.b16 %v263
        %v394 = vunpack.c.h.b16 %v263
        %v395 = vunpack.c.l.b16 %v264
        %v396 = vunpack.c.h.b16 %v264
        %v397 = vunpack.c.l.b16 %v265
        %v398 = vunpack.c.h.b16 %v265
        %v399 = vunpack.c.l.b16 %v266
        %v400 = vunpack.c.h.b16 %v266
        %v401 = vunpack.c.l.b16 %v267
        %v402 = vunpack.c.h.b16 %v267
        %v403 = vunpack.c.l.b16 %v268
        %v404 = vunpack.c.h.b16 %v268
        %v405 = vpack.c.b16 %v343, %v341
        %v406 = vpack.c.b16 %v344, %v342
        %v407 = vpack.c.b16 %v347, %v345
        %v408 = vpack.c.b16 %v348, %v346
        %v409 = vpack.c.b16 %v351, %v349
        %v410 = vpack.c.b16 %v352, %v350
        %v411 = vpack.c.b16 %v355, %v353
        %v412 = vpack.c.b16 %v356, %v354
        %v413 = vpack.c.b16 %v359, %v357
        %v414 = vpack.c.b16 %v360, %v358
        %v415 = vpack.c.b16 %v363, %v361
        %v416 = vpack.c.b16 %v364, %v362
        %v417 = vpack.c.b16 %v367, %v365
        %v418 = vpack.c.b16 %v368, %v366
        %v419 = vpack.c.b16 %v371, %v369
        %v420 = vpack.c.b16 %v372, %v370
        %v421 = vpack.c.b16 %v375, %v373
        %v422 = vpack.c.b16 %v376, %v374
        %v423 = vpack.c.b16 %v379, %v377
        %v424 = vpack.c.b16 %v380, %v378
        %v425 = vpack.c.b16 %v383, %v381
        %v426 = vpack.c.b16 %v384, %v382
        %v427 = vpack.c.b16 %v387, %v385
        %v428 = vpack.c.b16 %v388, %v386
        %v429 = vpack.c.b16 %v391, %v389
        %v430 = vpack.c.b16 %v392, %v390
        %v431 = vpack.c.b16 %v395, %v393
        %v432 = vpack.c.b16 %v396, %v394
        %v433 = vpack.c.b16 %v399, %v397
        %v434 = vpack.c.b16 %v400, %v398
        %v435 = vpack.c.b16 %v403, %v401
        %v436 = vpack.c.b16 %v404, %v402
        %469 = vmatprep.subr.bf16.mxu0 %v406
        %470 = vmatpush1.bf16.msra.mxu0 %v405
        %471 = vmatprep.subr.bf16.mxu0 %v408
        %472 = vmatpush1.bf16.msra.mxu0 %v407
        %473 = vmatprep.subr.bf16.mxu0 %v410
        %474 = vmatpush1.bf16.msra.mxu0 %v409
        %475 = vmatprep.subr.bf16.mxu0 %v412
        %476 = vmatpush1.bf16.msra.mxu0 %v411
        %477 = vmatprep.subr.bf16.mxu0 %v414
        %478 = vmatpush1.bf16.msra.mxu0 %v413
        %479 = vmatprep.subr.bf16.mxu0 %v416
        %480 = vmatpush1.bf16.msra.mxu0 %v415
        %481 = vmatprep.subr.bf16.mxu0 %v418
        %482 = vmatpush1.bf16.msra.mxu0 %v417
        %483 = vmatprep.subr.bf16.mxu0 %v420
        %484 = vmatpush1.bf16.msra.mxu0 %v419
        %485 = vmatprep.subr.bf16.mxu0 %v422
        %486 = vmatpush1.bf16.msra.mxu0 %v421
        %487 = vmatprep.subr.bf16.mxu0 %v424
        %488 = vmatpush1.bf16.msra.mxu0 %v423
        %489 = vmatprep.subr.bf16.mxu0 %v426
        %490 = vmatpush1.bf16.msra.mxu0 %v425
        %491 = vmatprep.subr.bf16.mxu0 %v428
        %492 = vmatpush1.bf16.msra.mxu0 %v427
        %493 = vmatprep.subr.bf16.mxu0 %v430
        %494 = vmatpush1.bf16.msra.mxu0 %v429
        %495 = vmatprep.subr.bf16.mxu0 %v432
        %496 = vmatpush1.bf16.msra.mxu0 %v431
        %497 = vmatprep.subr.bf16.mxu0 %v434
        %498 = vmatpush1.bf16.msra.mxu0 %v433
        %499 = vmatprep.subr.bf16.mxu0 %v436
        %500 = vmatpush1.bf16.msra.mxu0 %v435
        %501 = vmatprep.mubr.bf16.mxu0 %v294
        %502 = vmatmul.mubr.bf16.gmra.mrb[0].mxu0 %v293
        %v503 = vpop.f32.mrb[0].mxu0
        %v504 = vadd.f32 0.0, %v503
        %v505 = vpop.f32.mrb[0].mxu0
        %v506 = vadd.f32 0.0, %v505
        %v507 = vpop.f32.mrb[0].mxu0
        %v508 = vadd.f32 0.0, %v507
        %v509 = vpop.f32.mrb[0].mxu0
        %v510 = vadd.f32 0.0, %v509
        %511 = vmatprep.mubr.bf16.mxu0 %v296
        %512 = vmatmul.mubr.bf16.gmra.mrb[0].mxu0 %v295
        %v513 = vpop.f32.mrb[0].mxu0
        %v514 = vadd.f32 0.0, %v513
        %v515 = vpop.f32.mrb[0].mxu0
        %v516 = vadd.f32 0.0, %v515
        %v517 = vpop.f32.mrb[0].mxu0
        %v518 = vadd.f32 0.0, %v517
        %v519 = vpop.f32.mrb[0].mxu0
        %v520 = vadd.f32 0.0, %v519
        %521 = vmatprep.mubr.bf16.mxu0 %v298
        %522 = vmatmul.mubr.bf16.gmra.mrb[0].mxu0 %v297
        %v523 = vpop.f32.mrb[0].mxu0
        %v524 = vadd.f32 0.0, %v523
        %v525 = vpop.f32.mrb[0].mxu0
        %v526 = vadd.f32 0.0, %v525
        %v527 = vpop.f32.mrb[0].mxu0
        %v528 = vadd.f32 0.0, %v527
        %v529 = vpop.f32.mrb[0].mxu0
        %v530 = vadd.f32 0.0, %v529
        %531 = vmatprep.mubr.bf16.mxu0 %v300
        %532 = vmatmul.mubr.bf16.gmra.mrb[0].mxu0 %v299
        %v533 = vpop.f32.mrb[0].mxu0
        %v534 = vadd.f32 0.0, %v533
        %v535 = vpop.f32.mrb[0].mxu0
        %v536 = vadd.f32 0.0, %v535
        %v537 = vpop.f32.mrb[0].mxu0
        %v538 = vadd.f32 0.0, %v537
        %v539 = vpop.f32.mrb[0].mxu0
        %v540 = vadd.f32 0.0, %v539
        %541 = vdwg.mxu0
        %v542 = vld [vmem:[%s2] sm:$0xf]
        %v543 = vld [vmem:[%s2 + $0x4] sm:$0xf]
        %v547 = vunpack.c.l.s4 1983009808
        %v548 = vunpack.c.0.s8 %v547
        %v549 = vlaneseq
        %v550 = vshrl.u32 %v549, 7
        %v551 = vsub.s32 %v548, %v550
        %v552 = vrot.slane %v542, %v551
        %v553 = vcombine.high %v552, %v552
        %v555 = vunpack.c.l.s4 1983009808
        %v556 = vunpack.c.0.s8 %v555
        %v557 = vlaneseq
        %v558 = vshrl.u32 %v557, 7
        %v559 = vsub.s32 %v556, %v558
        %v560 = vrot.slane %v543, %v559
        %v561 = vcombine.high %v560, %v560
        %vm566 = vcmask 1041408
        %v567 = vsel %vm566, %v552, 0.0
        %v568 = vsel %vm566, %v560, 0.0
        %v569 = vadd.f32 %v567, %v568
        %v570 = vsel %vm566, %v553, 0.0
        %v571 = vsel %vm566, %v561, 0.0
        %v572 = vadd.f32 %v570, %v571
        %v573 = vmul.f32 %v569, 0.0078125
        %v574 = vmul.f32 %v572, 0.0078125
        %v575 = vmul.f32 %v573, %v573
        %v576 = vmul.f32 %v574, %v574
        %v579 = vrot.slane %v575, 7
        %v580 = vrot.slane %v576, 7
        %v583 = vsub.f32 %v573, %v579
        %v584 = vsub.f32 %v574, %v580
        %v585 = vmax.f32 %v583, 0.0
        %v586 = vmax.f32 %v584, 0.0
        %v587 = vld [vmem:[%s3] sm:$0x3]
        %v588 = vadd.f32 %v585, 1e-05
        %v589 = vadd.f32 %v586, 1e-05
        %v590 = vrsqrt.pop %v588
        %v591 = vrsqrt.pop %v589
        %v594 = vcombine.low %v590, %v591
        %v596 = vunpack.c.l.s4 1966171168
        %v597 = vunpack.c.0.s8 %v596
        %v598 = vlaneseq
        %v599 = vshrl.u32 %v598, 7
        %v600 = vsub.s32 %v597, %v599
        %v601 = vrot.slane %v594, %v600
        %v602 = vcombine.high %v601, %v601
        %v604 = vunpack.c.l.s4 1966171168
        %v605 = vunpack.c.0.s8 %v604
        %v606 = vlaneseq
        %v607 = vshrl.u32 %v606, 7
        %v608 = vsub.s32 %v605, %v607
        %v609 = vrot.slane %v602, %v608
        %v611 = vmul.f32 %v587, %v609
        %v612 = vld [vmem:[%s4] sm:$0x3]
        %v614 = vlaneseq
        %v615 = vshrl.u32 %v614, 7
        %v616 = vsub.s32 0, %v615
        %v617 = vrot.slane %v611, %v616
        %v618 = vlaneseq
        %v619 = vshrl.u32 %v618, 7
        %v620 = vsub.s32 1, %v619
        %v621 = vrot.slane %v611, %v620
        %v624 = vmul.f32 %v573, %v617
        %v625 = vmul.f32 %v574, %v621
        %v628 = vcombine.low %v624, %v625
        %v630 = vunpack.c.l.s4 1966171168
        %v631 = vunpack.c.0.s8 %v630
        %v632 = vlaneseq
        %v633 = vshrl.u32 %v632, 7
        %v634 = vsub.s32 %v631, %v633
        %v635 = vrot.slane %v628, %v634
        %v637 = vunpack.c.l.s4 1966171168
        %v638 = vunpack.c.0.s8 %v637
        %v639 = vlaneseq
        %v640 = vshrl.u32 %v639, 7
        %v641 = vsub.s32 %v638, %v640
        %v642 = vrot.slane %v635, %v641
        %v644 = vsub.f32 %v612, %v642
        %v645 = vmul.f32 %v504, %v617
        %v646 = vmul.f32 %v506, %v621
        %v647 = vmul.f32 %v508, %v617
        %v648 = vmul.f32 %v510, %v621
        %v649 = vmul.f32 %v514, %v617
        %v650 = vmul.f32 %v516, %v621
        %v651 = vmul.f32 %v518, %v617
        %v652 = vmul.f32 %v520, %v621
        %v653 = vmul.f32 %v524, %v617
        %v654 = vmul.f32 %v526, %v621
        %v655 = vmul.f32 %v528, %v617
        %v656 = vmul.f32 %v530, %v621
        %v657 = vmul.f32 %v534, %v617
        %v658 = vmul.f32 %v536, %v621
        %v659 = vmul.f32 %v538, %v617
        %v660 = vmul.f32 %v540, %v621
        %v662 = vlaneseq
        %v663 = vshrl.u32 %v662, 7
        %v664 = vsub.s32 0, %v663
        %v665 = vrot.slane %v644, %v664
        %v666 = vlaneseq
        %v667 = vshrl.u32 %v666, 7
        %v668 = vsub.s32 1, %v667
        %v669 = vrot.slane %v644, %v668
        %v672 = vadd.f32 %v645, %v665
        %v673 = vadd.f32 %v646, %v669
        %v674 = vadd.f32 %v647, %v665
        %v675 = vadd.f32 %v648, %v669
        %v676 = vadd.f32 %v649, %v665
        %v677 = vadd.f32 %v650, %v669
        %v678 = vadd.f32 %v651, %v665
        %v679 = vadd.f32 %v652, %v669
        %v680 = vadd.f32 %v653, %v665
        %v681 = vadd.f32 %v654, %v669
        %v682 = vadd.f32 %v655, %v665
        %v683 = vadd.f32 %v656, %v669
        %v684 = vadd.f32 %v657, %v665
        %v685 = vadd.f32 %v658, %v669
        %v686 = vadd.f32 %v659, %v665
        %v687 = vadd.f32 %v660, %v669
        %v688 = vadd.f32 %v672, %v673
        %v689 = vadd.f32 %v674, %v675
        %v690 = vadd.f32 %v676, %v677
        %v691 = vadd.f32 %v678, %v679
        %v692 = vadd.f32 %v680, %v681
        %v693 = vadd.f32 %v682, %v683
        %v694 = vadd.f32 %v684, %v685
        %v695 = vadd.f32 %v686, %v687
        %v696 = vmax.f32 %v688, 0.0
        %v697 = vmax.f32 %v689, 0.0
        %v698 = vmax.f32 %v690, 0.0
        %v699 = vmax.f32 %v691, 0.0
        %v700 = vmax.f32 %v692, 0.0
        %v701 = vmax.f32 %v693, 0.0
        %v702 = vmax.f32 %v694, 0.0
        %v703 = vmax.f32 %v695, 0.0
        %704 = vst [vmem:[%s220] sm:$0xff] %v696
        %705 = vst [vmem:[%s220 + $0x8] sm:$0xff] %v697
        %706 = vst [vmem:[%s220 + $0x10] sm:$0xff] %v698
        %707 = vst [vmem:[%s220 + $0x18] sm:$0xff] %v699
        %708 = vst [vmem:[%s220 + $0x20] sm:$0xff] %v700
        %709 = vst [vmem:[%s220 + $0x28] sm:$0xff] %v701
        %710 = vst [vmem:[%s220 + $0x30] sm:$0xff] %v702
        %711 = vst [vmem:[%s220 + $0x38] sm:$0xff] %v703
        %s712 = sand.u32 %s137, 1
        %s713 = scalar_lea.sflag [#allocation3], %s712
        %s714 = sand.u32 %s137, 1
        %s715 = smul.addr %s714, 64
        %s716 = scalar_lea.vmem [#allocation2], %s715
        // Predicated region
        $region41: #{basic_block_forward.7} parent=39 // pred_check
          %p717 = pneg %p147
        $region42: #{basic_block_forward.7} parent=39 // pred_check_branch
          %719 = sbr.rel (%p717) target = $region44
        $region43: #{basic_block_forward.7} parent=39 // pred_region
          %s720 = smul.u32 8, %s19
          %s722 = ssub.s32 1024, 1024
          %723 = vsyncadd %s713, %s722
          %s724 = smul.addr %s720, 128
          %s725 = scalar_lea.hbm %s5, %s724
          %s726 = sshll.u32 %s716, 4
          %s727 = int_to_ptr.vmem [resolvable:$true] %s726
          %732 = dma.vmem_to_hbm [thread:$0]  %s727, 1024, %s725, %s713, 128, 128, 8
        $region44: #{basic_block_forward.7} parent=39 // pred_fallthru
          _
      $region40: #{basic_block_forward.7} parent=5 // pred_fallthru
        _
      %p733 = scmp.le.s32.totalorder 2, %s14
      // Predicated region
      $region45: #{basic_block_forward.7} parent=5 // pred_check
        %p734 = pneg %p733
      $region46: #{basic_block_forward.7} parent=5 // pred_check_branch
        %736 = sbr.rel (%p734) target = $region48
      $region47: #{basic_block_forward.7} parent=5 // pred_region
        %s737 = ssub.s32 %s14, 2
        // Predicated region
        $region49: #{basic_block_forward.7} parent=47 // pred_check
          %p738 = pneg %p153
        $region50: #{basic_block_forward.7} parent=47 // pred_check_branch
          %740 = sbr.rel (%p738) target = $region52
        $region51: #{basic_block_forward.7} parent=47 // pred_region
          %s741 = sand.u32 %s138, 1
          %s742 = scalar_lea.sflag [#allocation3], %s741
          %s743 = sand.u32 %s138, 1
          %s744 = smul.addr %s743, 64
          %s745 = scalar_lea.vmem [#allocation2], %s744
          %746 = dma.done %s742, 1024
        $region52: #{basic_block_forward.7} parent=47 // pred_fallthru
          _
      $region48: #{basic_block_forward.7} parent=5 // pred_fallthru
        _
    $region6: #{basic_block_forward.7} parent=1 // loop_footer
      %s18 = sadd.s32 1, %s14
    $region7: #{basic_block_forward.7} parent=1 // loop_footer_branch
      %13 = sbr.rel target = $region3
    $region8: #{basic_block_forward.7} parent=1 // loop_exit
      _
    %747 = vsyncpa [#allocation3], 1
    %s748 = scalar_lea.sflag [#allocation3], 1
    %749 = vsyncpa %s748, 1

</llo_original>
